<compile_context>
chip_gen: v7x
topology: tpu7x:2x2x1
jax: 0.10.0
libtpu: 0.0.40
codegen_flags: <defaults>
</compile_context>

<pallas_src>
import functools

import jax
import jax.numpy as jnp
from jax import lax
from jax.experimental import pallas as pl
from jax.experimental.pallas import tpu as pltpu


# ----------------------------------------------------------------------------
# Fused kernel: `block_b` batch elements per grid step.
# ----------------------------------------------------------------------------
def temporal_kernel(x_ref, m_ref, mt_ref,
                    w_in_ref, b_in_ref, whh_ref, bhh_ref,
                    wo_ref, bo_ref, wg_ref, wa_ref, bf_ref,
                    o_ref,
                    *, num_heads, seq_len, hidden_dim, block_b):
    H = hidden_dim
    S = seq_len
    Bt = block_b
    hd = H // num_heads
    wdt = w_in_ref.dtype          # matmul operand dtype (f32, or bf16 on v6e/v7x)

    x = x_ref[...]                # (Bt, S, D)
    m_col = m_ref[...]            # (Bt, S, 1)
    m_row = mt_ref[...]           # (Bt, 1, S)

    # ---------------- fused input projections: gi | (q*scale)|k|v ----------
    x2 = x.reshape(Bt * S, x.shape[-1]).astype(wdt)                      # (Bt*S, D)
    proj = jnp.dot(x2, w_in_ref[...],
                   preferred_element_type=jnp.float32) + b_in_ref[...]   # (Bt*S, 6H)
    gi = proj[:, :3 * H].reshape(Bt, S, 3 * H)                           # (Bt, S, 3H)
    qkv = proj[:, 3 * H:]                                                # (Bt*S, 3H)

    # ------------------------------------------------------------------ GRU
    whh = whh_ref[...]            # (H, 3H)
    bhh = bhh_ref[...]            # (1, 3H)
    h = jnp.zeros((Bt, H), jnp.float32)
    h_rows = []
    for t in range(S):            # static unroll; only the recurrence is serial
        gh = jnp.dot(h.astype(wdt), whh,
                     preferred_element_type=jnp.float32) + bhh           # (Bt, 3H)
        gi_t = gi[:, t, :]                                               # (Bt, 3H)
        r = jax.nn.sigmoid(gi_t[:, :H] + gh[:, :H])
        z = jax.nn.sigmoid(gi_t[:, H:2 * H] + gh[:, H:2 * H])
        n = jnp.tanh(gi_t[:, 2 * H:] + r * gh[:, 2 * H:])
        h = (1.0 - z) * n + z * h
        h_rows.append(h)
    # Register-resident gru_out; row order (b, t) matches x2 / the output.
    gru_flat = jnp.concatenate([hr.reshape(Bt, 1, H) for hr in h_rows],
                               axis=1).reshape(Bt * S, H)                # (Bt*S, H)

    # ------------------------------------------------------- attention (MHA)
    # (Bt,S,S) validity mask built in-kernel from the (Bt,S,1)/(Bt,1,S) vectors.
    valid = jnp.logical_and(m_col != 0.0, m_row != 0.0)                  # (Bt, S, S)
    q3 = qkv[:, :H].reshape(Bt, S, H)          # already scaled by head_dim^-0.5
    k3 = qkv[:, H:2 * H].reshape(Bt, S, H)
    v3 = qkv[:, 2 * H:].reshape(Bt, S, H)

    acc = jnp.zeros((Bt * S, H), jnp.float32)
    for hh in range(num_heads):   # static unroll; each head batched over Bt
        lo = hh * hd
        q_h = q3[:, :, lo:lo + hd].astype(wdt)
        k_h = k3[:, :, lo:lo + hd].astype(wdt)
        v_h = v3[:, :, lo:lo + hd].astype(wdt)
        s = jnp.einsum('bqd,bkd->bqk', q_h, k_h,
                       preferred_element_type=jnp.float32)               # (Bt, S, S)
        s = jnp.where(valid, s, jnp.float32(-1e9))
        p = jax.nn.softmax(s, axis=-1)
        ctx = jnp.einsum('bqk,bkd->bqd', p.astype(wdt), v_h,
                         preferred_element_type=jnp.float32)             # (Bt, S, hd)
        # Folded output projection: sum_h ctx_h @ Wo^T[lo:lo+hd, :]
        # is identical to concat_h(ctx_h) @ Wo^T (no lane concat required).
        acc = acc + jnp.dot(ctx.reshape(Bt * S, hd).astype(wdt),
                            wo_ref[lo:lo + hd, :],
                            preferred_element_type=jnp.float32)
    attn_flat = acc + bo_ref[...]                                        # (Bt*S, H)

    # ---------------------------------------------------------------- fusion
    fused = (jnp.dot(gru_flat.astype(wdt), wg_ref[...],
                     preferred_element_type=jnp.float32)
             + jnp.dot(attn_flat.astype(wdt), wa_ref[...],
                       preferred_element_type=jnp.float32)
             + bf_ref[...])                                              # (Bt*S, H)
    o_ref[...] = fused.reshape(Bt, S, H) * m_col


# ----------------------------------------------------------------------------
# Wrapper: weight repacking + pallas_call.
# ----------------------------------------------------------------------------
def _pick_block_b(batch, max_block=8, min_grid=2):
    """Largest divisor of `batch` (<= max_block) keeping grid >= min_grid (v7x)."""
    best = 1
    for cand in range(1, min(batch, max_block) + 1):
        if batch % cand == 0 and batch // cand >= min_grid:
            best = cand
    return best


def temporal_processor_forward(x, mask, params, num_heads, *,
                               block_b=None, use_bf16_matmul=False):
    """x: (B, S, D) with D == hidden_dim; mask: (B, S, 1) float or None."""
    B, S, D = x.shape
    H = params["W_hh"].shape[1]
    assert D == H, "attention is applied to x, so input_dim must equal hidden_dim"
    hd = H // num_heads
    scale = float(hd) ** -0.5

    if mask is None:
        mask = jnp.ones((B, S, 1), jnp.float32)   # equivalent to no masking
    mask = mask.astype(jnp.float32)
    mask_t = jnp.transpose(mask, (0, 2, 1))       # (B, 1, S) -- tiny

    if block_b is None:
        block_b = _pick_block_b(B)
    assert B % block_b == 0
    wdt = jnp.bfloat16 if use_bf16_matmul else jnp.float32

    # Fused x-projection weight (D, 6H) = [W_ih^T | Wq^T*scale | Wk^T | Wv^T];
    # attention scale folded into the Q columns/bias at repack time.
    w_in = jnp.concatenate(
        [params["W_ih"].T,
         params["Wq"].T * scale, params["Wk"].T, params["Wv"].T],
        axis=1).astype(wdt)                                    # (D, 6H)
    b_in = jnp.concatenate(
        [params["b_ih"],
         params["bq"] * scale, params["bk"], params["bv"]]).reshape(1, 6 * H)

    whh = params["W_hh"].T.astype(wdt)                         # (H, 3H)
    bhh = params["b_hh"].reshape(1, 3 * H)
    wo = params["Wo"].T.astype(wdt)                            # (H, H)
    bo = params["bo"].reshape(1, H)
    wfT = params["Wf"].T                                       # (2H, H)
    wg = wfT[:H].astype(wdt)                                   # gru half
    wa = wfT[H:].astype(wdt)                                   # attn half
    bf = params["bf"].reshape(1, H)

    kernel = functools.partial(
        temporal_kernel, num_heads=num_heads, seq_len=S, hidden_dim=H,
        block_b=block_b)

    return pl.pallas_call(
        kernel,
        out_shape=jax.ShapeDtypeStruct((B, S, H), jnp.float32),
        grid_spec=pltpu.PrefetchScalarGridSpec(
            num_scalar_prefetch=0,
            grid=(B // block_b,),
            in_specs=[
                pl.BlockSpec((block_b, S, D), lambda b: (b, 0, 0)),   # x
                pl.BlockSpec((block_b, S, 1), lambda b: (b, 0, 0)),   # mask (col)
                pl.BlockSpec((block_b, 1, S), lambda b: (b, 0, 0)),   # mask (row)
                pl.BlockSpec((D, 6 * H), lambda b: (0, 0)),           # [W_ih^T|Wqkv]
                pl.BlockSpec((1, 6 * H), lambda b: (0, 0)),           # [b_ih|bqkv]
                pl.BlockSpec((H, 3 * H), lambda b: (0, 0)),           # W_hh^T
                pl.BlockSpec((1, 3 * H), lambda b: (0, 0)),           # b_hh
                pl.BlockSpec((H, H), lambda b: (0, 0)),               # Wo^T
                pl.BlockSpec((1, H), lambda b: (0, 0)),               # bo
                pl.BlockSpec((H, H), lambda b: (0, 0)),               # Wf^T (gru half)
                pl.BlockSpec((H, H), lambda b: (0, 0)),               # Wf^T (attn half)
                pl.BlockSpec((1, H), lambda b: (0, 0)),               # bf
            ],
            out_specs=pl.BlockSpec((block_b, S, H), lambda b: (b, 0, 0)),
        ),
        compiler_params=pltpu.CompilerParams(dimension_semantics=("parallel",)),
    )(x, mask, mask_t, w_in, b_in, whh, bhh, wo, bo, wg, wa, bf)


# ----------------------------------------------------------------------------
# Deterministic parameter init (PyTorch layouts) + pure-JAX reference.
# ----------------------------------------------------------------------------
def init_params(key, input_dim, hidden_dim):
    H, D = hidden_dim, input_dim
    ks = jax.random.split(key, 14)
    s = 0.1
    nrm = lambda k, shp: (s * jax.random.normal(k, shp, jnp.float32))
    return {
        "W_ih": nrm(ks[0], (3 * H, D)), "W_hh": nrm(ks[1], (3 * H, H)),
        "b_ih": nrm(ks[2], (3 * H,)),   "b_hh": nrm(ks[3], (3 * H,)),
        "Wq": nrm(ks[4], (H, H)), "bq": nrm(ks[5], (H,)),
        "Wk": nrm(ks[6], (H, H)), "bk": nrm(ks[7], (H,)),
        "Wv": nrm(ks[8], (H, H)), "bv": nrm(ks[9], (H,)),
        "Wo": nrm(ks[10], (H, H)), "bo": nrm(ks[11], (H,)),
        "Wf": nrm(ks[12], (H, 2 * H)), "bf": nrm(ks[13], (H,)),
    }


def ref_forward(x, mask, p, num_heads):
    B, S, D = x.shape
    H = p["W_hh"].shape[1]
    hd = H // num_heads

    def step(h, x_t):
        gi = x_t @ p["W_ih"].T + p["b_ih"]
        gh = h @ p["W_hh"].T + p["b_hh"]
        i_r, i_z, i_n = jnp.split(gi, 3, axis=-1)
        h_r, h_z, h_n = jnp.split(gh, 3, axis=-1)
        r = jax.nn.sigmoid(i_r + h_r)
        z = jax.nn.sigmoid(i_z + h_z)
        n = jnp.tanh(i_n + r * h_n)
        h_new = (1.0 - z) * n + z * h
        return h_new, h_new

    _, ys = lax.scan(step, jnp.zeros((B, H), jnp.float32), jnp.transpose(x, (1, 0, 2)))
    gru_out = jnp.transpose(ys, (1, 0, 2))

    def heads(W, b):
        return (x @ W.T + b).reshape(B, S, num_heads, hd).transpose(0, 2, 1, 3)

    q, k, v = heads(p["Wq"], p["bq"]), heads(p["Wk"], p["bk"]), heads(p["Wv"], p["bv"])
    scores = jnp.einsum("bhqd,bhkd->bhqk", q, k) * (float(hd) ** -0.5)
    am = (mask @ jnp.transpose(mask, (0, 2, 1)))[:, None]
    scores = jnp.where(am == 0, -1e9, scores)
    attn = jax.nn.softmax(scores, axis=-1)
    ctx = jnp.einsum("bhqk,bhkd->bhqd", attn, v).transpose(0, 2, 1, 3).reshape(B, S, H)
    attn_out = ctx @ p["Wo"].T + p["bo"]

    combined = jnp.concatenate([gru_out, attn_out], axis=-1)
    out = combined @ p["Wf"].T + p["bf"]
    return out * mask


if __name__ == "__main__":
    # input_dim must equal hidden_dim (attention is applied directly to x).
    B, S, D, H, NH = 4, 8, 32, 32, 4
    key = jax.random.PRNGKey(0)
    kx, kp = jax.random.split(key)
    x = jax.random.normal(kx, (B, S, D), jnp.float32)
    # mask (B, S, 1): last 2 timesteps padded out
    mask = jnp.concatenate(
        [jnp.ones((B, S - 2, 1), jnp.float32), jnp.zeros((B, 2, 1), jnp.float32)], axis=1)

    params = init_params(kp, D, H)

    out = temporal_processor_forward(x, mask, params, NH)   # f32 operands -> 1e-4 check
    out = jax.block_until_ready(out)
    assert out.shape == (B, S, H)

    ref = ref_forward(x, mask, params, NH)
    err = float(jnp.max(jnp.abs(out - ref)))
    assert jnp.allclose(out, ref, atol=1e-4, rtol=1e-4), f"max abs err = {err}"

    print("KERNEL_OK")
</pallas_src>

<mosaic_0001>
module attributes {stable_mosaic.version = 11 : i64} {
  func.func @temporal_kernel(%arg0: i32, %arg1: memref<2x8x32xf32, #tpu.memory_space<vmem>>, %arg2: memref<2x8x1xf32, #tpu.memory_space<vmem>>, %arg3: memref<2x1x8xf32, #tpu.memory_space<vmem>>, %arg4: memref<32x192xf32, #tpu.memory_space<vmem>>, %arg5: memref<1x192xf32, #tpu.memory_space<vmem>>, %arg6: memref<32x96xf32, #tpu.memory_space<vmem>>, %arg7: memref<1x96xf32, #tpu.memory_space<vmem>>, %arg8: memref<32x32xf32, #tpu.memory_space<vmem>>, %arg9: memref<1x32xf32, #tpu.memory_space<vmem>>, %arg10: memref<32x32xf32, #tpu.memory_space<vmem>>, %arg11: memref<32x32xf32, #tpu.memory_space<vmem>>, %arg12: memref<1x32xf32, #tpu.memory_space<vmem>>, %arg13: memref<2x8x32xf32, #tpu.memory_space<vmem>>) attributes {dimension_semantics = [#tpu.dimension_semantics<parallel>], iteration_bounds = array<i64: 2>, scalar_prefetch = 0 : i64, scratch_operands = 0 : i64, tpu.core_type = #tpu.core_type<tc>, window_params = [{transform_indices = @transform_0, window_bounds = array<i64: 2, 8, 32>}, {transform_indices = @transform_1, window_bounds = array<i64: 2, 8, 1>}, {transform_indices = @transform_2, window_bounds = array<i64: 2, 1, 8>}, {pipeline_mode = #tpu.pipeline_mode<synchronous>, transform_indices = @transform_3, window_bounds = array<i64: 32, 192>}, {pipeline_mode = #tpu.pipeline_mode<synchronous>, transform_indices = @transform_4, window_bounds = array<i64: 1, 192>}, {pipeline_mode = #tpu.pipeline_mode<synchronous>, transform_indices = @transform_5, window_bounds = array<i64: 32, 96>}, {pipeline_mode = #tpu.pipeline_mode<synchronous>, transform_indices = @transform_6, window_bounds = array<i64: 1, 96>}, {pipeline_mode = #tpu.pipeline_mode<synchronous>, transform_indices = @transform_7, window_bounds = array<i64: 32, 32>}, {pipeline_mode = #tpu.pipeline_mode<synchronous>, transform_indices = @transform_8, window_bounds = array<i64: 1, 32>}, {pipeline_mode = #tpu.pipeline_mode<synchronous>, transform_indices = @transform_9, window_bounds = array<i64: 32, 32>}, {pipeline_mode = #tpu.pipeline_mode<synchronous>, transform_indices = @transform_10, window_bounds = array<i64: 32, 32>}, {pipeline_mode = #tpu.pipeline_mode<synchronous>, transform_indices = @transform_11, window_bounds = array<i64: 1, 32>}, {transform_indices = @transform_12, window_bounds = array<i64: 2, 8, 32>}]} {
    %c0 = arith.constant 0 : index
    %c0_0 = arith.constant 0 : index
    %c0_1 = arith.constant 0 : index
    %0 = vector.load %arg1[%c0, %c0_0, %c0_1] : memref<2x8x32xf32, #tpu.memory_space<vmem>>, vector<2x8x32xf32>
    %c0_2 = arith.constant 0 : index
    %c0_3 = arith.constant 0 : index
    %c0_4 = arith.constant 0 : index
    %1 = vector.load %arg2[%c0_2, %c0_3, %c0_4] : memref<2x8x1xf32, #tpu.memory_space<vmem>>, vector<2x8x1xf32>
    %c0_5 = arith.constant 0 : index
    %c0_6 = arith.constant 0 : index
    %c0_7 = arith.constant 0 : index
    %2 = vector.load %arg3[%c0_5, %c0_6, %c0_7] : memref<2x1x8xf32, #tpu.memory_space<vmem>>, vector<2x1x8xf32>
    %3 = vector.shape_cast %0 : vector<2x8x32xf32> to vector<16x32xf32>
    %c0_8 = arith.constant 0 : index
    %c0_9 = arith.constant 0 : index
    %4 = vector.load %arg4[%c0_8, %c0_9] : memref<32x192xf32, #tpu.memory_space<vmem>>, vector<32x192xf32>
    %cst = arith.constant dense<0.000000e+00> : vector<16x192xf32>
    %5 = tpu.matmul %3, %4, %cst {dimension_numbers = #tpu.dot_dimension_numbers<[1], [0], [0], [1], [0, 0, 1, 1], [], []>} : vector<16x32xf32>, vector<32x192xf32>, vector<16x192xf32> -> vector<16x192xf32>
    %c0_10 = arith.constant 0 : index
    %c0_11 = arith.constant 0 : index
    %6 = vector.load %arg5[%c0_10, %c0_11] : memref<1x192xf32, #tpu.memory_space<vmem>>, vector<1x192xf32>
    %7 = vector.broadcast %6 : vector<1x192xf32> to vector<16x192xf32>
    %8 = arith.addf %5, %7 : vector<16x192xf32>
    %9 = vector.extract_strided_slice %8 {offsets = [0, 0], sizes = [16, 96], strides = [1, 1]} : vector<16x192xf32> to vector<16x96xf32>
    %10 = vector.shape_cast %9 : vector<16x96xf32> to vector<2x8x96xf32>
    %11 = vector.extract_strided_slice %8 {offsets = [0, 96], sizes = [16, 96], strides = [1, 1]} : vector<16x192xf32> to vector<16x96xf32>
    %c0_12 = arith.constant 0 : index
    %c0_13 = arith.constant 0 : index
    %12 = vector.load %arg6[%c0_12, %c0_13] : memref<32x96xf32, #tpu.memory_space<vmem>>, vector<32x96xf32>
    %c0_14 = arith.constant 0 : index
    %c0_15 = arith.constant 0 : index
    %13 = vector.load %arg7[%c0_14, %c0_15] : memref<1x96xf32, #tpu.memory_space<vmem>>, vector<1x96xf32>
    %cst_16 = arith.constant 0.000000e+00 : f32
    %14 = vector.broadcast %cst_16 : f32 to vector<2x32xf32>
    %cst_17 = arith.constant dense<0.000000e+00> : vector<2x96xf32>
    %15 = tpu.matmul %14, %12, %cst_17 {dimension_numbers = #tpu.dot_dimension_numbers<[1], [0], [0], [1], [0, 0, 1, 1], [], []>} : vector<2x32xf32>, vector<32x96xf32>, vector<2x96xf32> -> vector<2x96xf32>
    %16 = vector.broadcast %13 : vector<1x96xf32> to vector<2x96xf32>
    %17 = arith.addf %15, %16 : vector<2x96xf32>
    %18 = vector.extract_strided_slice %10 {offsets = [0, 0, 0], sizes = [2, 1, 96], strides = [1, 1, 1]} : vector<2x8x96xf32> to vector<2x1x96xf32>
    %19 = vector.shape_cast %18 : vector<2x1x96xf32> to vector<2x96xf32>
    %20 = vector.extract_strided_slice %19 {offsets = [0, 0], sizes = [2, 32], strides = [1, 1]} : vector<2x96xf32> to vector<2x32xf32>
    %21 = vector.extract_strided_slice %17 {offsets = [0, 0], sizes = [2, 32], strides = [1, 1]} : vector<2x96xf32> to vector<2x32xf32>
    %22 = arith.addf %20, %21 : vector<2x32xf32>
    %23 = arith.negf %22 : vector<2x32xf32>
    %24 = math.exp %23 : vector<2x32xf32>
    %cst_18 = arith.constant 1.000000e+00 : f32
    %25 = vector.broadcast %cst_18 : f32 to vector<2x32xf32>
    %26 = arith.addf %25, %24 : vector<2x32xf32>
    %27 = arith.divf %25, %26 : vector<2x32xf32>
    %28 = vector.extract_strided_slice %19 {offsets = [0, 32], sizes = [2, 32], strides = [1, 1]} : vector<2x96xf32> to vector<2x32xf32>
    %29 = vector.extract_strided_slice %17 {offsets = [0, 32], sizes = [2, 32], strides = [1, 1]} : vector<2x96xf32> to vector<2x32xf32>
    %30 = arith.addf %28, %29 : vector<2x32xf32>
    %31 = arith.negf %30 : vector<2x32xf32>
    %32 = math.exp %31 : vector<2x32xf32>
    %cst_19 = arith.constant 1.000000e+00 : f32
    %33 = vector.broadcast %cst_19 : f32 to vector<2x32xf32>
    %34 = arith.addf %33, %32 : vector<2x32xf32>
    %35 = arith.divf %33, %34 : vector<2x32xf32>
    %36 = vector.extract_strided_slice %19 {offsets = [0, 64], sizes = [2, 32], strides = [1, 1]} : vector<2x96xf32> to vector<2x32xf32>
    %37 = vector.extract_strided_slice %17 {offsets = [0, 64], sizes = [2, 32], strides = [1, 1]} : vector<2x96xf32> to vector<2x32xf32>
    %38 = arith.mulf %27, %37 : vector<2x32xf32>
    %39 = arith.addf %36, %38 : vector<2x32xf32>
    %40 = math.tanh %39 : vector<2x32xf32>
    %cst_20 = arith.constant 1.000000e+00 : f32
    %41 = vector.broadcast %cst_20 : f32 to vector<2x32xf32>
    %42 = arith.subf %41, %35 : vector<2x32xf32>
    %43 = arith.mulf %42, %40 : vector<2x32xf32>
    %44 = arith.mulf %35, %14 : vector<2x32xf32>
    %45 = arith.addf %43, %44 : vector<2x32xf32>
    %cst_21 = arith.constant dense<0.000000e+00> : vector<2x96xf32>
    %46 = tpu.matmul %45, %12, %cst_21 {dimension_numbers = #tpu.dot_dimension_numbers<[1], [0], [0], [1], [0, 0, 1, 1], [], []>} : vector<2x32xf32>, vector<32x96xf32>, vector<2x96xf32> -> vector<2x96xf32>
    %47 = vector.broadcast %13 : vector<1x96xf32> to vector<2x96xf32>
    %48 = arith.addf %46, %47 : vector<2x96xf32>
    %49 = vector.extract_strided_slice %10 {offsets = [0, 1, 0], sizes = [2, 1, 96], strides = [1, 1, 1]} : vector<2x8x96xf32> to vector<2x1x96xf32>
    %50 = vector.shape_cast %49 : vector<2x1x96xf32> to vector<2x96xf32>
    %51 = vector.extract_strided_slice %50 {offsets = [0, 0], sizes = [2, 32], strides = [1, 1]} : vector<2x96xf32> to vector<2x32xf32>
    %52 = vector.extract_strided_slice %48 {offsets = [0, 0], sizes = [2, 32], strides = [1, 1]} : vector<2x96xf32> to vector<2x32xf32>
    %53 = arith.addf %51, %52 : vector<2x32xf32>
    %54 = arith.negf %53 : vector<2x32xf32>
    %55 = math.exp %54 : vector<2x32xf32>
    %cst_22 = arith.constant 1.000000e+00 : f32
    %56 = vector.broadcast %cst_22 : f32 to vector<2x32xf32>
    %57 = arith.addf %56, %55 : vector<2x32xf32>
    %58 = arith.divf %56, %57 : vector<2x32xf32>
    %59 = vector.extract_strided_slice %50 {offsets = [0, 32], sizes = [2, 32], strides = [1, 1]} : vector<2x96xf32> to vector<2x32xf32>
    %60 = vector.extract_strided_slice %48 {offsets = [0, 32], sizes = [2, 32], strides = [1, 1]} : vector<2x96xf32> to vector<2x32xf32>
    %61 = arith.addf %59, %60 : vector<2x32xf32>
    %62 = arith.negf %61 : vector<2x32xf32>
    %63 = math.exp %62 : vector<2x32xf32>
    %cst_23 = arith.constant 1.000000e+00 : f32
    %64 = vector.broadcast %cst_23 : f32 to vector<2x32xf32>
    %65 = arith.addf %64, %63 : vector<2x32xf32>
    %66 = arith.divf %64, %65 : vector<2x32xf32>
    %67 = vector.extract_strided_slice %50 {offsets = [0, 64], sizes = [2, 32], strides = [1, 1]} : vector<2x96xf32> to vector<2x32xf32>
    %68 = vector.extract_strided_slice %48 {offsets = [0, 64], sizes = [2, 32], strides = [1, 1]} : vector<2x96xf32> to vector<2x32xf32>
    %69 = arith.mulf %58, %68 : vector<2x32xf32>
    %70 = arith.addf %67, %69 : vector<2x32xf32>
    %71 = math.tanh %70 : vector<2x32xf32>
    %cst_24 = arith.constant 1.000000e+00 : f32
    %72 = vector.broadcast %cst_24 : f32 to vector<2x32xf32>
    %73 = arith.subf %72, %66 : vector<2x32xf32>
    %74 = arith.mulf %73, %71 : vector<2x32xf32>
    %75 = arith.mulf %66, %45 : vector<2x32xf32>
    %76 = arith.addf %74, %75 : vector<2x32xf32>
    %cst_25 = arith.constant dense<0.000000e+00> : vector<2x96xf32>
    %77 = tpu.matmul %76, %12, %cst_25 {dimension_numbers = #tpu.dot_dimension_numbers<[1], [0], [0], [1], [0, 0, 1, 1], [], []>} : vector<2x32xf32>, vector<32x96xf32>, vector<2x96xf32> -> vector<2x96xf32>
    %78 = vector.broadcast %13 : vector<1x96xf32> to vector<2x96xf32>
    %79 = arith.addf %77, %78 : vector<2x96xf32>
    %80 = vector.extract_strided_slice %10 {offsets = [0, 2, 0], sizes = [2, 1, 96], strides = [1, 1, 1]} : vector<2x8x96xf32> to vector<2x1x96xf32>
    %81 = vector.shape_cast %80 : vector<2x1x96xf32> to vector<2x96xf32>
    %82 = vector.extract_strided_slice %81 {offsets = [0, 0], sizes = [2, 32], strides = [1, 1]} : vector<2x96xf32> to vector<2x32xf32>
    %83 = vector.extract_strided_slice %79 {offsets = [0, 0], sizes = [2, 32], strides = [1, 1]} : vector<2x96xf32> to vector<2x32xf32>
    %84 = arith.addf %82, %83 : vector<2x32xf32>
    %85 = arith.negf %84 : vector<2x32xf32>
    %86 = math.exp %85 : vector<2x32xf32>
    %cst_26 = arith.constant 1.000000e+00 : f32
    %87 = vector.broadcast %cst_26 : f32 to vector<2x32xf32>
    %88 = arith.addf %87, %86 : vector<2x32xf32>
    %89 = arith.divf %87, %88 : vector<2x32xf32>
    %90 = vector.extract_strided_slice %81 {offsets = [0, 32], sizes = [2, 32], strides = [1, 1]} : vector<2x96xf32> to vector<2x32xf32>
    %91 = vector.extract_strided_slice %79 {offsets = [0, 32], sizes = [2, 32], strides = [1, 1]} : vector<2x96xf32> to vector<2x32xf32>
    %92 = arith.addf %90, %91 : vector<2x32xf32>
    %93 = arith.negf %92 : vector<2x32xf32>
    %94 = math.exp %93 : vector<2x32xf32>
    %cst_27 = arith.constant 1.000000e+00 : f32
    %95 = vector.broadcast %cst_27 : f32 to vector<2x32xf32>
    %96 = arith.addf %95, %94 : vector<2x32xf32>
    %97 = arith.divf %95, %96 : vector<2x32xf32>
    %98 = vector.extract_strided_slice %81 {offsets = [0, 64], sizes = [2, 32], strides = [1, 1]} : vector<2x96xf32> to vector<2x32xf32>
    %99 = vector.extract_strided_slice %79 {offsets = [0, 64], sizes = [2, 32], strides = [1, 1]} : vector<2x96xf32> to vector<2x32xf32>
    %100 = arith.mulf %89, %99 : vector<2x32xf32>
    %101 = arith.addf %98, %100 : vector<2x32xf32>
    %102 = math.tanh %101 : vector<2x32xf32>
    %cst_28 = arith.constant 1.000000e+00 : f32
    %103 = vector.broadcast %cst_28 : f32 to vector<2x32xf32>
    %104 = arith.subf %103, %97 : vector<2x32xf32>
    %105 = arith.mulf %104, %102 : vector<2x32xf32>
    %106 = arith.mulf %97, %76 : vector<2x32xf32>
    %107 = arith.addf %105, %106 : vector<2x32xf32>
    %cst_29 = arith.constant dense<0.000000e+00> : vector<2x96xf32>
    %108 = tpu.matmul %107, %12, %cst_29 {dimension_numbers = #tpu.dot_dimension_numbers<[1], [0], [0], [1], [0, 0, 1, 1], [], []>} : vector<2x32xf32>, vector<32x96xf32>, vector<2x96xf32> -> vector<2x96xf32>
    %109 = vector.broadcast %13 : vector<1x96xf32> to vector<2x96xf32>
    %110 = arith.addf %108, %109 : vector<2x96xf32>
    %111 = vector.extract_strided_slice %10 {offsets = [0, 3, 0], sizes = [2, 1, 96], strides = [1, 1, 1]} : vector<2x8x96xf32> to vector<2x1x96xf32>
    %112 = vector.shape_cast %111 : vector<2x1x96xf32> to vector<2x96xf32>
    %113 = vector.extract_strided_slice %112 {offsets = [0, 0], sizes = [2, 32], strides = [1, 1]} : vector<2x96xf32> to vector<2x32xf32>
    %114 = vector.extract_strided_slice %110 {offsets = [0, 0], sizes = [2, 32], strides = [1, 1]} : vector<2x96xf32> to vector<2x32xf32>
    %115 = arith.addf %113, %114 : vector<2x32xf32>
    %116 = arith.negf %115 : vector<2x32xf32>
    %117 = math.exp %116 : vector<2x32xf32>
    %cst_30 = arith.constant 1.000000e+00 : f32
    %118 = vector.broadcast %cst_30 : f32 to vector<2x32xf32>
    %119 = arith.addf %118, %117 : vector<2x32xf32>
    %120 = arith.divf %118, %119 : vector<2x32xf32>
    %121 = vector.extract_strided_slice %112 {offsets = [0, 32], sizes = [2, 32], strides = [1, 1]} : vector<2x96xf32> to vector<2x32xf32>
    %122 = vector.extract_strided_slice %110 {offsets = [0, 32], sizes = [2, 32], strides = [1, 1]} : vector<2x96xf32> to vector<2x32xf32>
    %123 = arith.addf %121, %122 : vector<2x32xf32>
    %124 = arith.negf %123 : vector<2x32xf32>
    %125 = math.exp %124 : vector<2x32xf32>
    %cst_31 = arith.constant 1.000000e+00 : f32
    %126 = vector.broadcast %cst_31 : f32 to vector<2x32xf32>
    %127 = arith.addf %126, %125 : vector<2x32xf32>
    %128 = arith.divf %126, %127 : vector<2x32xf32>
    %129 = vector.extract_strided_slice %112 {offsets = [0, 64], sizes = [2, 32], strides = [1, 1]} : vector<2x96xf32> to vector<2x32xf32>
    %130 = vector.extract_strided_slice %110 {offsets = [0, 64], sizes = [2, 32], strides = [1, 1]} : vector<2x96xf32> to vector<2x32xf32>
    %131 = arith.mulf %120, %130 : vector<2x32xf32>
    %132 = arith.addf %129, %131 : vector<2x32xf32>
    %133 = math.tanh %132 : vector<2x32xf32>
    %cst_32 = arith.constant 1.000000e+00 : f32
    %134 = vector.broadcast %cst_32 : f32 to vector<2x32xf32>
    %135 = arith.subf %134, %128 : vector<2x32xf32>
    %136 = arith.mulf %135, %133 : vector<2x32xf32>
    %137 = arith.mulf %128, %107 : vector<2x32xf32>
    %138 = arith.addf %136, %137 : vector<2x32xf32>
    %cst_33 = arith.constant dense<0.000000e+00> : vector<2x96xf32>
    %139 = tpu.matmul %138, %12, %cst_33 {dimension_numbers = #tpu.dot_dimension_numbers<[1], [0], [0], [1], [0, 0, 1, 1], [], []>} : vector<2x32xf32>, vector<32x96xf32>, vector<2x96xf32> -> vector<2x96xf32>
    %140 = vector.broadcast %13 : vector<1x96xf32> to vector<2x96xf32>
    %141 = arith.addf %139, %140 : vector<2x96xf32>
    %142 = vector.extract_strided_slice %10 {offsets = [0, 4, 0], sizes = [2, 1, 96], strides = [1, 1, 1]} : vector<2x8x96xf32> to vector<2x1x96xf32>
    %143 = vector.shape_cast %142 : vector<2x1x96xf32> to vector<2x96xf32>
    %144 = vector.extract_strided_slice %143 {offsets = [0, 0], sizes = [2, 32], strides = [1, 1]} : vector<2x96xf32> to vector<2x32xf32>
    %145 = vector.extract_strided_slice %141 {offsets = [0, 0], sizes = [2, 32], strides = [1, 1]} : vector<2x96xf32> to vector<2x32xf32>
    %146 = arith.addf %144, %145 : vector<2x32xf32>
    %147 = arith.negf %146 : vector<2x32xf32>
    %148 = math.exp %147 : vector<2x32xf32>
    %cst_34 = arith.constant 1.000000e+00 : f32
    %149 = vector.broadcast %cst_34 : f32 to vector<2x32xf32>
    %150 = arith.addf %149, %148 : vector<2x32xf32>
    %151 = arith.divf %149, %150 : vector<2x32xf32>
    %152 = vector.extract_strided_slice %143 {offsets = [0, 32], sizes = [2, 32], strides = [1, 1]} : vector<2x96xf32> to vector<2x32xf32>
    %153 = vector.extract_strided_slice %141 {offsets = [0, 32], sizes = [2, 32], strides = [1, 1]} : vector<2x96xf32> to vector<2x32xf32>
    %154 = arith.addf %152, %153 : vector<2x32xf32>
    %155 = arith.negf %154 : vector<2x32xf32>
    %156 = math.exp %155 : vector<2x32xf32>
    %cst_35 = arith.constant 1.000000e+00 : f32
    %157 = vector.broadcast %cst_35 : f32 to vector<2x32xf32>
    %158 = arith.addf %157, %156 : vector<2x32xf32>
    %159 = arith.divf %157, %158 : vector<2x32xf32>
    %160 = vector.extract_strided_slice %143 {offsets = [0, 64], sizes = [2, 32], strides = [1, 1]} : vector<2x96xf32> to vector<2x32xf32>
    %161 = vector.extract_strided_slice %141 {offsets = [0, 64], sizes = [2, 32], strides = [1, 1]} : vector<2x96xf32> to vector<2x32xf32>
    %162 = arith.mulf %151, %161 : vector<2x32xf32>
    %163 = arith.addf %160, %162 : vector<2x32xf32>
    %164 = math.tanh %163 : vector<2x32xf32>
    %cst_36 = arith.constant 1.000000e+00 : f32
    %165 = vector.broadcast %cst_36 : f32 to vector<2x32xf32>
    %166 = arith.subf %165, %159 : vector<2x32xf32>
    %167 = arith.mulf %166, %164 : vector<2x32xf32>
    %168 = arith.mulf %159, %138 : vector<2x32xf32>
    %169 = arith.addf %167, %168 : vector<2x32xf32>
    %cst_37 = arith.constant dense<0.000000e+00> : vector<2x96xf32>
    %170 = tpu.matmul %169, %12, %cst_37 {dimension_numbers = #tpu.dot_dimension_numbers<[1], [0], [0], [1], [0, 0, 1, 1], [], []>} : vector<2x32xf32>, vector<32x96xf32>, vector<2x96xf32> -> vector<2x96xf32>
    %171 = vector.broadcast %13 : vector<1x96xf32> to vector<2x96xf32>
    %172 = arith.addf %170, %171 : vector<2x96xf32>
    %173 = vector.extract_strided_slice %10 {offsets = [0, 5, 0], sizes = [2, 1, 96], strides = [1, 1, 1]} : vector<2x8x96xf32> to vector<2x1x96xf32>
    %174 = vector.shape_cast %173 : vector<2x1x96xf32> to vector<2x96xf32>
    %175 = vector.extract_strided_slice %174 {offsets = [0, 0], sizes = [2, 32], strides = [1, 1]} : vector<2x96xf32> to vector<2x32xf32>
    %176 = vector.extract_strided_slice %172 {offsets = [0, 0], sizes = [2, 32], strides = [1, 1]} : vector<2x96xf32> to vector<2x32xf32>
    %177 = arith.addf %175, %176 : vector<2x32xf32>
    %178 = arith.negf %177 : vector<2x32xf32>
    %179 = math.exp %178 : vector<2x32xf32>
    %cst_38 = arith.constant 1.000000e+00 : f32
    %180 = vector.broadcast %cst_38 : f32 to vector<2x32xf32>
    %181 = arith.addf %180, %179 : vector<2x32xf32>
    %182 = arith.divf %180, %181 : vector<2x32xf32>
    %183 = vector.extract_strided_slice %174 {offsets = [0, 32], sizes = [2, 32], strides = [1, 1]} : vector<2x96xf32> to vector<2x32xf32>
    %184 = vector.extract_strided_slice %172 {offsets = [0, 32], sizes = [2, 32], strides = [1, 1]} : vector<2x96xf32> to vector<2x32xf32>
    %185 = arith.addf %183, %184 : vector<2x32xf32>
    %186 = arith.negf %185 : vector<2x32xf32>
    %187 = math.exp %186 : vector<2x32xf32>
    %cst_39 = arith.constant 1.000000e+00 : f32
    %188 = vector.broadcast %cst_39 : f32 to vector<2x32xf32>
    %189 = arith.addf %188, %187 : vector<2x32xf32>
    %190 = arith.divf %188, %189 : vector<2x32xf32>
    %191 = vector.extract_strided_slice %174 {offsets = [0, 64], sizes = [2, 32], strides = [1, 1]} : vector<2x96xf32> to vector<2x32xf32>
    %192 = vector.extract_strided_slice %172 {offsets = [0, 64], sizes = [2, 32], strides = [1, 1]} : vector<2x96xf32> to vector<2x32xf32>
    %193 = arith.mulf %182, %192 : vector<2x32xf32>
    %194 = arith.addf %191, %193 : vector<2x32xf32>
    %195 = math.tanh %194 : vector<2x32xf32>
    %cst_40 = arith.constant 1.000000e+00 : f32
    %196 = vector.broadcast %cst_40 : f32 to vector<2x32xf32>
    %197 = arith.subf %196, %190 : vector<2x32xf32>
    %198 = arith.mulf %197, %195 : vector<2x32xf32>
    %199 = arith.mulf %190, %169 : vector<2x32xf32>
    %200 = arith.addf %198, %199 : vector<2x32xf32>
    %cst_41 = arith.constant dense<0.000000e+00> : vector<2x96xf32>
    %201 = tpu.matmul %200, %12, %cst_41 {dimension_numbers = #tpu.dot_dimension_numbers<[1], [0], [0], [1], [0, 0, 1, 1], [], []>} : vector<2x32xf32>, vector<32x96xf32>, vector<2x96xf32> -> vector<2x96xf32>
    %202 = vector.broadcast %13 : vector<1x96xf32> to vector<2x96xf32>
    %203 = arith.addf %201, %202 : vector<2x96xf32>
    %204 = vector.extract_strided_slice %10 {offsets = [0, 6, 0], sizes = [2, 1, 96], strides = [1, 1, 1]} : vector<2x8x96xf32> to vector<2x1x96xf32>
    %205 = vector.shape_cast %204 : vector<2x1x96xf32> to vector<2x96xf32>
    %206 = vector.extract_strided_slice %205 {offsets = [0, 0], sizes = [2, 32], strides = [1, 1]} : vector<2x96xf32> to vector<2x32xf32>
    %207 = vector.extract_strided_slice %203 {offsets = [0, 0], sizes = [2, 32], strides = [1, 1]} : vector<2x96xf32> to vector<2x32xf32>
    %208 = arith.addf %206, %207 : vector<2x32xf32>
    %209 = arith.negf %208 : vector<2x32xf32>
    %210 = math.exp %209 : vector<2x32xf32>
    %cst_42 = arith.constant 1.000000e+00 : f32
    %211 = vector.broadcast %cst_42 : f32 to vector<2x32xf32>
    %212 = arith.addf %211, %210 : vector<2x32xf32>
    %213 = arith.divf %211, %212 : vector<2x32xf32>
    %214 = vector.extract_strided_slice %205 {offsets = [0, 32], sizes = [2, 32], strides = [1, 1]} : vector<2x96xf32> to vector<2x32xf32>
    %215 = vector.extract_strided_slice %203 {offsets = [0, 32], sizes = [2, 32], strides = [1, 1]} : vector<2x96xf32> to vector<2x32xf32>
    %216 = arith.addf %214, %215 : vector<2x32xf32>
    %217 = arith.negf %216 : vector<2x32xf32>
    %218 = math.exp %217 : vector<2x32xf32>
    %cst_43 = arith.constant 1.000000e+00 : f32
    %219 = vector.broadcast %cst_43 : f32 to vector<2x32xf32>
    %220 = arith.addf %219, %218 : vector<2x32xf32>
    %221 = arith.divf %219, %220 : vector<2x32xf32>
    %222 = vector.extract_strided_slice %205 {offsets = [0, 64], sizes = [2, 32], strides = [1, 1]} : vector<2x96xf32> to vector<2x32xf32>
    %223 = vector.extract_strided_slice %203 {offsets = [0, 64], sizes = [2, 32], strides = [1, 1]} : vector<2x96xf32> to vector<2x32xf32>
    %224 = arith.mulf %213, %223 : vector<2x32xf32>
    %225 = arith.addf %222, %224 : vector<2x32xf32>
    %226 = math.tanh %225 : vector<2x32xf32>
    %cst_44 = arith.constant 1.000000e+00 : f32
    %227 = vector.broadcast %cst_44 : f32 to vector<2x32xf32>
    %228 = arith.subf %227, %221 : vector<2x32xf32>
    %229 = arith.mulf %228, %226 : vector<2x32xf32>
    %230 = arith.mulf %221, %200 : vector<2x32xf32>
    %231 = arith.addf %229, %230 : vector<2x32xf32>
    %cst_45 = arith.constant dense<0.000000e+00> : vector<2x96xf32>
    %232 = tpu.matmul %231, %12, %cst_45 {dimension_numbers = #tpu.dot_dimension_numbers<[1], [0], [0], [1], [0, 0, 1, 1], [], []>} : vector<2x32xf32>, vector<32x96xf32>, vector<2x96xf32> -> vector<2x96xf32>
    %233 = vector.broadcast %13 : vector<1x96xf32> to vector<2x96xf32>
    %234 = arith.addf %232, %233 : vector<2x96xf32>
    %235 = vector.extract_strided_slice %10 {offsets = [0, 7, 0], sizes = [2, 1, 96], strides = [1, 1, 1]} : vector<2x8x96xf32> to vector<2x1x96xf32>
    %236 = vector.shape_cast %235 : vector<2x1x96xf32> to vector<2x96xf32>
    %237 = vector.extract_strided_slice %236 {offsets = [0, 0], sizes = [2, 32], strides = [1, 1]} : vector<2x96xf32> to vector<2x32xf32>
    %238 = vector.extract_strided_slice %234 {offsets = [0, 0], sizes = [2, 32], strides = [1, 1]} : vector<2x96xf32> to vector<2x32xf32>
    %239 = arith.addf %237, %238 : vector<2x32xf32>
    %240 = arith.negf %239 : vector<2x32xf32>
    %241 = math.exp %240 : vector<2x32xf32>
    %cst_46 = arith.constant 1.000000e+00 : f32
    %242 = vector.broadcast %cst_46 : f32 to vector<2x32xf32>
    %243 = arith.addf %242, %241 : vector<2x32xf32>
    %244 = arith.divf %242, %243 : vector<2x32xf32>
    %245 = vector.extract_strided_slice %236 {offsets = [0, 32], sizes = [2, 32], strides = [1, 1]} : vector<2x96xf32> to vector<2x32xf32>
    %246 = vector.extract_strided_slice %234 {offsets = [0, 32], sizes = [2, 32], strides = [1, 1]} : vector<2x96xf32> to vector<2x32xf32>
    %247 = arith.addf %245, %246 : vector<2x32xf32>
    %248 = arith.negf %247 : vector<2x32xf32>
    %249 = math.exp %248 : vector<2x32xf32>
    %cst_47 = arith.constant 1.000000e+00 : f32
    %250 = vector.broadcast %cst_47 : f32 to vector<2x32xf32>
    %251 = arith.addf %250, %249 : vector<2x32xf32>
    %252 = arith.divf %250, %251 : vector<2x32xf32>
    %253 = vector.extract_strided_slice %236 {offsets = [0, 64], sizes = [2, 32], strides = [1, 1]} : vector<2x96xf32> to vector<2x32xf32>
    %254 = vector.extract_strided_slice %234 {offsets = [0, 64], sizes = [2, 32], strides = [1, 1]} : vector<2x96xf32> to vector<2x32xf32>
    %255 = arith.mulf %244, %254 : vector<2x32xf32>
    %256 = arith.addf %253, %255 : vector<2x32xf32>
    %257 = math.tanh %256 : vector<2x32xf32>
    %cst_48 = arith.constant 1.000000e+00 : f32
    %258 = vector.broadcast %cst_48 : f32 to vector<2x32xf32>
    %259 = arith.subf %258, %252 : vector<2x32xf32>
    %260 = arith.mulf %259, %257 : vector<2x32xf32>
    %261 = arith.mulf %252, %231 : vector<2x32xf32>
    %262 = arith.addf %260, %261 : vector<2x32xf32>
    %263 = vector.shape_cast %45 : vector<2x32xf32> to vector<2x1x32xf32>
    %264 = vector.shape_cast %76 : vector<2x32xf32> to vector<2x1x32xf32>
    %265 = vector.shape_cast %107 : vector<2x32xf32> to vector<2x1x32xf32>
    %266 = vector.shape_cast %138 : vector<2x32xf32> to vector<2x1x32xf32>
    %267 = vector.shape_cast %169 : vector<2x32xf32> to vector<2x1x32xf32>
    %268 = vector.shape_cast %200 : vector<2x32xf32> to vector<2x1x32xf32>
    %269 = vector.shape_cast %231 : vector<2x32xf32> to vector<2x1x32xf32>
    %270 = vector.shape_cast %262 : vector<2x32xf32> to vector<2x1x32xf32>
    %271 = tpu.concatenate %263, %264, %265, %266, %267, %268, %269, %270 in 1 : vector<2x1x32xf32>, vector<2x1x32xf32>, vector<2x1x32xf32>, vector<2x1x32xf32>, vector<2x1x32xf32>, vector<2x1x32xf32>, vector<2x1x32xf32>, vector<2x1x32xf32> -> vector<2x8x32xf32>
    %272 = vector.shape_cast %271 : vector<2x8x32xf32> to vector<16x32xf32>
    %cst_49 = arith.constant 0.000000e+00 : f32
    %273 = vector.broadcast %cst_49 : f32 to vector<2x8x1xf32>
    %274 = arith.cmpf one, %1, %273 : vector<2x8x1xf32>
    %cst_50 = arith.constant 0.000000e+00 : f32
    %275 = vector.broadcast %cst_50 : f32 to vector<2x1x8xf32>
    %276 = arith.cmpf one, %2, %275 : vector<2x1x8xf32>
    %277 = vector.broadcast %274 : vector<2x8x1xi1> to vector<2x8x8xi1>
    %278 = vector.broadcast %276 : vector<2x1x8xi1> to vector<2x8x8xi1>
    %279 = arith.andi %277, %278 : vector<2x8x8xi1>
    %280 = vector.extract_strided_slice %11 {offsets = [0, 0], sizes = [16, 32], strides = [1, 1]} : vector<16x96xf32> to vector<16x32xf32>
    %281 = vector.shape_cast %280 : vector<16x32xf32> to vector<2x8x32xf32>
    %282 = vector.extract_strided_slice %11 {offsets = [0, 32], sizes = [16, 32], strides = [1, 1]} : vector<16x96xf32> to vector<16x32xf32>
    %283 = vector.shape_cast %282 : vector<16x32xf32> to vector<2x8x32xf32>
    %284 = vector.extract_strided_slice %11 {offsets = [0, 64], sizes = [16, 32], strides = [1, 1]} : vector<16x96xf32> to vector<16x32xf32>
    %285 = vector.shape_cast %284 : vector<16x32xf32> to vector<2x8x32xf32>
    %cst_51 = arith.constant 0.000000e+00 : f32
    %286 = vector.broadcast %cst_51 : f32 to vector<16x32xf32>
    %287 = vector.extract_strided_slice %281 {offsets = [0, 0, 0], sizes = [2, 8, 8], strides = [1, 1, 1]} : vector<2x8x32xf32> to vector<2x8x8xf32>
    %288 = vector.extract_strided_slice %283 {offsets = [0, 0, 0], sizes = [2, 8, 8], strides = [1, 1, 1]} : vector<2x8x32xf32> to vector<2x8x8xf32>
    %289 = vector.extract_strided_slice %285 {offsets = [0, 0, 0], sizes = [2, 8, 8], strides = [1, 1, 1]} : vector<2x8x32xf32> to vector<2x8x8xf32>
    "tpu.trace_start"() <{level = 10 : i32, message = "bqd,bkd->bqk"}> : () -> ()
    %cst_52 = arith.constant dense<0.000000e+00> : vector<2x8x8xf32>
    %290 = tpu.matmul %287, %288, %cst_52 {dimension_numbers = #tpu.dot_dimension_numbers<[2], [2], [1], [1], [0, 0, 0, 1, 1, 1], [0], [0]>} : vector<2x8x8xf32>, vector<2x8x8xf32>, vector<2x8x8xf32> -> vector<2x8x8xf32>
    %cst_53 = arith.constant -1.000000e+09 : f32
    "tpu.trace_stop"() : () -> ()
    %291 = vector.broadcast %cst_53 : f32 to vector<2x8x8xf32>
    %292 = arith.select %279, %290, %291 : vector<2x8x8xi1>, vector<2x8x8xf32>
    %cst_54 = arith.constant dense<0xFF800000> : vector<2x8xf32>
    %293 = vector.multi_reduction <maximumf>, %292, %cst_54 [2] : vector<2x8x8xf32> to vector<2x8xf32>
    %cst_55 = arith.constant 0xFF800000 : f32
    %294 = vector.broadcast %cst_55 : f32 to vector<2x8xf32>
    %295 = arith.maximumf %294, %293 : vector<2x8xf32>
    %296 = vector.shape_cast %295 : vector<2x8xf32> to vector<2x8x1xf32>
    %297 = vector.broadcast %296 : vector<2x8x1xf32> to vector<2x8x8xf32>
    %298 = arith.subf %292, %297 : vector<2x8x8xf32>
    %299 = math.exp %298 : vector<2x8x8xf32>
    %cst_56 = arith.constant dense<0.000000e+00> : vector<2x8xf32>
    %300 = vector.multi_reduction <add>, %299, %cst_56 [2] : vector<2x8x8xf32> to vector<2x8xf32>
    %301 = vector.shape_cast %300 : vector<2x8xf32> to vector<2x8x1xf32>
    %302 = vector.broadcast %301 : vector<2x8x1xf32> to vector<2x8x8xf32>
    %303 = arith.divf %299, %302 : vector<2x8x8xf32>
    "tpu.trace_start"() <{level = 10 : i32, message = "bqk,bkd->bqd"}> : () -> ()
    %cst_57 = arith.constant dense<0.000000e+00> : vector<2x8x8xf32>
    %304 = tpu.matmul %303, %289, %cst_57 {dimension_numbers = #tpu.dot_dimension_numbers<[2], [1], [1], [2], [0, 0, 0, 1, 1, 2], [0], [0]>} : vector<2x8x8xf32>, vector<2x8x8xf32>, vector<2x8x8xf32> -> vector<2x8x8xf32>
    "tpu.trace_stop"() : () -> ()
    %305 = vector.shape_cast %304 : vector<2x8x8xf32> to vector<16x8xf32>
    %c0_58 = arith.constant 0 : index
    %c0_59 = arith.constant 0 : index
    %306 = vector.load %arg8[%c0_58, %c0_59] : memref<32x32xf32, #tpu.memory_space<vmem>>, vector<8x32xf32>
    %cst_60 = arith.constant dense<0.000000e+00> : vector<16x32xf32>
    %307 = tpu.matmul %305, %306, %cst_60 {dimension_numbers = #tpu.dot_dimension_numbers<[1], [0], [0], [1], [0, 0, 1, 1], [], []>} : vector<16x8xf32>, vector<8x32xf32>, vector<16x32xf32> -> vector<16x32xf32>
    %308 = arith.addf %286, %307 : vector<16x32xf32>
    %309 = vector.extract_strided_slice %281 {offsets = [0, 0, 8], sizes = [2, 8, 8], strides = [1, 1, 1]} : vector<2x8x32xf32> to vector<2x8x8xf32>
    %310 = vector.extract_strided_slice %283 {offsets = [0, 0, 8], sizes = [2, 8, 8], strides = [1, 1, 1]} : vector<2x8x32xf32> to vector<2x8x8xf32>
    %311 = vector.extract_strided_slice %285 {offsets = [0, 0, 8], sizes = [2, 8, 8], strides = [1, 1, 1]} : vector<2x8x32xf32> to vector<2x8x8xf32>
    "tpu.trace_start"() <{level = 10 : i32, message = "bqd,bkd->bqk"}> : () -> ()
    %cst_61 = arith.constant dense<0.000000e+00> : vector<2x8x8xf32>
    %312 = tpu.matmul %309, %310, %cst_61 {dimension_numbers = #tpu.dot_dimension_numbers<[2], [2], [1], [1], [0, 0, 0, 1, 1, 1], [0], [0]>} : vector<2x8x8xf32>, vector<2x8x8xf32>, vector<2x8x8xf32> -> vector<2x8x8xf32>
    %cst_62 = arith.constant -1.000000e+09 : f32
    "tpu.trace_stop"() : () -> ()
    %313 = vector.broadcast %cst_62 : f32 to vector<2x8x8xf32>
    %314 = arith.select %279, %312, %313 : vector<2x8x8xi1>, vector<2x8x8xf32>
    %cst_63 = arith.constant dense<0xFF800000> : vector<2x8xf32>
    %315 = vector.multi_reduction <maximumf>, %314, %cst_63 [2] : vector<2x8x8xf32> to vector<2x8xf32>
    %cst_64 = arith.constant 0xFF800000 : f32
    %316 = vector.broadcast %cst_64 : f32 to vector<2x8xf32>
    %317 = arith.maximumf %316, %315 : vector<2x8xf32>
    %318 = vector.shape_cast %317 : vector<2x8xf32> to vector<2x8x1xf32>
    %319 = vector.broadcast %318 : vector<2x8x1xf32> to vector<2x8x8xf32>
    %320 = arith.subf %314, %319 : vector<2x8x8xf32>
    %321 = math.exp %320 : vector<2x8x8xf32>
    %cst_65 = arith.constant dense<0.000000e+00> : vector<2x8xf32>
    %322 = vector.multi_reduction <add>, %321, %cst_65 [2] : vector<2x8x8xf32> to vector<2x8xf32>
    %323 = vector.shape_cast %322 : vector<2x8xf32> to vector<2x8x1xf32>
    %324 = vector.broadcast %323 : vector<2x8x1xf32> to vector<2x8x8xf32>
    %325 = arith.divf %321, %324 : vector<2x8x8xf32>
    "tpu.trace_start"() <{level = 10 : i32, message = "bqk,bkd->bqd"}> : () -> ()
    %cst_66 = arith.constant dense<0.000000e+00> : vector<2x8x8xf32>
    %326 = tpu.matmul %325, %311, %cst_66 {dimension_numbers = #tpu.dot_dimension_numbers<[2], [1], [1], [2], [0, 0, 0, 1, 1, 2], [0], [0]>} : vector<2x8x8xf32>, vector<2x8x8xf32>, vector<2x8x8xf32> -> vector<2x8x8xf32>
    "tpu.trace_stop"() : () -> ()
    %327 = vector.shape_cast %326 : vector<2x8x8xf32> to vector<16x8xf32>
    %c8 = arith.constant 8 : index
    %c0_67 = arith.constant 0 : index
    %328 = vector.load %arg8[%c8, %c0_67] : memref<32x32xf32, #tpu.memory_space<vmem>>, vector<8x32xf32>
    %cst_68 = arith.constant dense<0.000000e+00> : vector<16x32xf32>
    %329 = tpu.matmul %327, %328, %cst_68 {dimension_numbers = #tpu.dot_dimension_numbers<[1], [0], [0], [1], [0, 0, 1, 1], [], []>} : vector<16x8xf32>, vector<8x32xf32>, vector<16x32xf32> -> vector<16x32xf32>
    %330 = arith.addf %308, %329 : vector<16x32xf32>
    %331 = vector.extract_strided_slice %281 {offsets = [0, 0, 16], sizes = [2, 8, 8], strides = [1, 1, 1]} : vector<2x8x32xf32> to vector<2x8x8xf32>
    %332 = vector.extract_strided_slice %283 {offsets = [0, 0, 16], sizes = [2, 8, 8], strides = [1, 1, 1]} : vector<2x8x32xf32> to vector<2x8x8xf32>
    %333 = vector.extract_strided_slice %285 {offsets = [0, 0, 16], sizes = [2, 8, 8], strides = [1, 1, 1]} : vector<2x8x32xf32> to vector<2x8x8xf32>
    "tpu.trace_start"() <{level = 10 : i32, message = "bqd,bkd->bqk"}> : () -> ()
    %cst_69 = arith.constant dense<0.000000e+00> : vector<2x8x8xf32>
    %334 = tpu.matmul %331, %332, %cst_69 {dimension_numbers = #tpu.dot_dimension_numbers<[2], [2], [1], [1], [0, 0, 0, 1, 1, 1], [0], [0]>} : vector<2x8x8xf32>, vector<2x8x8xf32>, vector<2x8x8xf32> -> vector<2x8x8xf32>
    %cst_70 = arith.constant -1.000000e+09 : f32
    "tpu.trace_stop"() : () -> ()
    %335 = vector.broadcast %cst_70 : f32 to vector<2x8x8xf32>
    %336 = arith.select %279, %334, %335 : vector<2x8x8xi1>, vector<2x8x8xf32>
    %cst_71 = arith.constant dense<0xFF800000> : vector<2x8xf32>
    %337 = vector.multi_reduction <maximumf>, %336, %cst_71 [2] : vector<2x8x8xf32> to vector<2x8xf32>
    %cst_72 = arith.constant 0xFF800000 : f32
    %338 = vector.broadcast %cst_72 : f32 to vector<2x8xf32>
    %339 = arith.maximumf %338, %337 : vector<2x8xf32>
    %340 = vector.shape_cast %339 : vector<2x8xf32> to vector<2x8x1xf32>
    %341 = vector.broadcast %340 : vector<2x8x1xf32> to vector<2x8x8xf32>
    %342 = arith.subf %336, %341 : vector<2x8x8xf32>
    %343 = math.exp %342 : vector<2x8x8xf32>
    %cst_73 = arith.constant dense<0.000000e+00> : vector<2x8xf32>
    %344 = vector.multi_reduction <add>, %343, %cst_73 [2] : vector<2x8x8xf32> to vector<2x8xf32>
    %345 = vector.shape_cast %344 : vector<2x8xf32> to vector<2x8x1xf32>
    %346 = vector.broadcast %345 : vector<2x8x1xf32> to vector<2x8x8xf32>
    %347 = arith.divf %343, %346 : vector<2x8x8xf32>
    "tpu.trace_start"() <{level = 10 : i32, message = "bqk,bkd->bqd"}> : () -> ()
    %cst_74 = arith.constant dense<0.000000e+00> : vector<2x8x8xf32>
    %348 = tpu.matmul %347, %333, %cst_74 {dimension_numbers = #tpu.dot_dimension_numbers<[2], [1], [1], [2], [0, 0, 0, 1, 1, 2], [0], [0]>} : vector<2x8x8xf32>, vector<2x8x8xf32>, vector<2x8x8xf32> -> vector<2x8x8xf32>
    "tpu.trace_stop"() : () -> ()
    %349 = vector.shape_cast %348 : vector<2x8x8xf32> to vector<16x8xf32>
    %c16 = arith.constant 16 : index
    %c0_75 = arith.constant 0 : index
    %350 = vector.load %arg8[%c16, %c0_75] : memref<32x32xf32, #tpu.memory_space<vmem>>, vector<8x32xf32>
    %cst_76 = arith.constant dense<0.000000e+00> : vector<16x32xf32>
    %351 = tpu.matmul %349, %350, %cst_76 {dimension_numbers = #tpu.dot_dimension_numbers<[1], [0], [0], [1], [0, 0, 1, 1], [], []>} : vector<16x8xf32>, vector<8x32xf32>, vector<16x32xf32> -> vector<16x32xf32>
    %352 = arith.addf %330, %351 : vector<16x32xf32>
    %353 = vector.extract_strided_slice %281 {offsets = [0, 0, 24], sizes = [2, 8, 8], strides = [1, 1, 1]} : vector<2x8x32xf32> to vector<2x8x8xf32>
    %354 = vector.extract_strided_slice %283 {offsets = [0, 0, 24], sizes = [2, 8, 8], strides = [1, 1, 1]} : vector<2x8x32xf32> to vector<2x8x8xf32>
    %355 = vector.extract_strided_slice %285 {offsets = [0, 0, 24], sizes = [2, 8, 8], strides = [1, 1, 1]} : vector<2x8x32xf32> to vector<2x8x8xf32>
    "tpu.trace_start"() <{level = 10 : i32, message = "bqd,bkd->bqk"}> : () -> ()
    %cst_77 = arith.constant dense<0.000000e+00> : vector<2x8x8xf32>
    %356 = tpu.matmul %353, %354, %cst_77 {dimension_numbers = #tpu.dot_dimension_numbers<[2], [2], [1], [1], [0, 0, 0, 1, 1, 1], [0], [0]>} : vector<2x8x8xf32>, vector<2x8x8xf32>, vector<2x8x8xf32> -> vector<2x8x8xf32>
    %cst_78 = arith.constant -1.000000e+09 : f32
    "tpu.trace_stop"() : () -> ()
    %357 = vector.broadcast %cst_78 : f32 to vector<2x8x8xf32>
    %358 = arith.select %279, %356, %357 : vector<2x8x8xi1>, vector<2x8x8xf32>
    %cst_79 = arith.constant dense<0xFF800000> : vector<2x8xf32>
    %359 = vector.multi_reduction <maximumf>, %358, %cst_79 [2] : vector<2x8x8xf32> to vector<2x8xf32>
    %cst_80 = arith.constant 0xFF800000 : f32
    %360 = vector.broadcast %cst_80 : f32 to vector<2x8xf32>
    %361 = arith.maximumf %360, %359 : vector<2x8xf32>
    %362 = vector.shape_cast %361 : vector<2x8xf32> to vector<2x8x1xf32>
    %363 = vector.broadcast %362 : vector<2x8x1xf32> to vector<2x8x8xf32>
    %364 = arith.subf %358, %363 : vector<2x8x8xf32>
    %365 = math.exp %364 : vector<2x8x8xf32>
    %cst_81 = arith.constant dense<0.000000e+00> : vector<2x8xf32>
    %366 = vector.multi_reduction <add>, %365, %cst_81 [2] : vector<2x8x8xf32> to vector<2x8xf32>
    %367 = vector.shape_cast %366 : vector<2x8xf32> to vector<2x8x1xf32>
    %368 = vector.broadcast %367 : vector<2x8x1xf32> to vector<2x8x8xf32>
    %369 = arith.divf %365, %368 : vector<2x8x8xf32>
    "tpu.trace_start"() <{level = 10 : i32, message = "bqk,bkd->bqd"}> : () -> ()
    %cst_82 = arith.constant dense<0.000000e+00> : vector<2x8x8xf32>
    %370 = tpu.matmul %369, %355, %cst_82 {dimension_numbers = #tpu.dot_dimension_numbers<[2], [1], [1], [2], [0, 0, 0, 1, 1, 2], [0], [0]>} : vector<2x8x8xf32>, vector<2x8x8xf32>, vector<2x8x8xf32> -> vector<2x8x8xf32>
    "tpu.trace_stop"() : () -> ()
    %371 = vector.shape_cast %370 : vector<2x8x8xf32> to vector<16x8xf32>
    %c24 = arith.constant 24 : index
    %c0_83 = arith.constant 0 : index
    %372 = vector.load %arg8[%c24, %c0_83] : memref<32x32xf32, #tpu.memory_space<vmem>>, vector<8x32xf32>
    %cst_84 = arith.constant dense<0.000000e+00> : vector<16x32xf32>
    %373 = tpu.matmul %371, %372, %cst_84 {dimension_numbers = #tpu.dot_dimension_numbers<[1], [0], [0], [1], [0, 0, 1, 1], [], []>} : vector<16x8xf32>, vector<8x32xf32>, vector<16x32xf32> -> vector<16x32xf32>
    %374 = arith.addf %352, %373 : vector<16x32xf32>
    %c0_85 = arith.constant 0 : index
    %c0_86 = arith.constant 0 : index
    %375 = vector.load %arg9[%c0_85, %c0_86] : memref<1x32xf32, #tpu.memory_space<vmem>>, vector<1x32xf32>
    %376 = vector.broadcast %375 : vector<1x32xf32> to vector<16x32xf32>
    %377 = arith.addf %374, %376 : vector<16x32xf32>
    %c0_87 = arith.constant 0 : index
    %c0_88 = arith.constant 0 : index
    %378 = vector.load %arg10[%c0_87, %c0_88] : memref<32x32xf32, #tpu.memory_space<vmem>>, vector<32x32xf32>
    %cst_89 = arith.constant dense<0.000000e+00> : vector<16x32xf32>
    %379 = tpu.matmul %272, %378, %cst_89 {dimension_numbers = #tpu.dot_dimension_numbers<[1], [0], [0], [1], [0, 0, 1, 1], [], []>} : vector<16x32xf32>, vector<32x32xf32>, vector<16x32xf32> -> vector<16x32xf32>
    %c0_90 = arith.constant 0 : index
    %c0_91 = arith.constant 0 : index
    %380 = vector.load %arg11[%c0_90, %c0_91] : memref<32x32xf32, #tpu.memory_space<vmem>>, vector<32x32xf32>
    %cst_92 = arith.constant dense<0.000000e+00> : vector<16x32xf32>
    %381 = tpu.matmul %377, %380, %cst_92 {dimension_numbers = #tpu.dot_dimension_numbers<[1], [0], [0], [1], [0, 0, 1, 1], [], []>} : vector<16x32xf32>, vector<32x32xf32>, vector<16x32xf32> -> vector<16x32xf32>
    %382 = arith.addf %379, %381 : vector<16x32xf32>
    %c0_93 = arith.constant 0 : index
    %c0_94 = arith.constant 0 : index
    %383 = vector.load %arg12[%c0_93, %c0_94] : memref<1x32xf32, #tpu.memory_space<vmem>>, vector<1x32xf32>
    %384 = vector.broadcast %383 : vector<1x32xf32> to vector<16x32xf32>
    %385 = arith.addf %382, %384 : vector<16x32xf32>
    %386 = vector.shape_cast %385 : vector<16x32xf32> to vector<2x8x32xf32>
    %387 = vector.broadcast %1 : vector<2x8x1xf32> to vector<2x8x32xf32>
    %388 = arith.mulf %386, %387 : vector<2x8x32xf32>
    %c0_95 = arith.constant 0 : index
    %c0_96 = arith.constant 0 : index
    %c0_97 = arith.constant 0 : index
    %389 = vector.load %arg13[%c0_95, %c0_96, %c0_97] : memref<2x8x32xf32, #tpu.memory_space<vmem>>, vector<2x8x32xf32>
    tpu.vector_store %arg13[%c0_95, %c0_96, %c0_97], %388 {strides = array<i32>} : memref<2x8x32xf32, #tpu.memory_space<vmem>>, vector<2x8x32xf32>,
    return
  }
  func.func @transform_0(%arg0: i32) -> (i32, i32, i32) {
    %c0_i32 = arith.constant 0 : i32
    %c0_i32_0 = arith.constant 0 : i32
    %c0_i32_1 = arith.constant 0 : i32
    return %arg0, %c0_i32, %c0_i32_0 : i32, i32, i32
  }
  func.func @transform_1(%arg0: i32) -> (i32, i32, i32) {
    %c0_i32 = arith.constant 0 : i32
    %c0_i32_0 = arith.constant 0 : i32
    %c0_i32_1 = arith.constant 0 : i32
    return %arg0, %c0_i32, %c0_i32_0 : i32, i32, i32
  }
  func.func @transform_2(%arg0: i32) -> (i32, i32, i32) {
    %c0_i32 = arith.constant 0 : i32
    %c0_i32_0 = arith.constant 0 : i32
    %c0_i32_1 = arith.constant 0 : i32
    return %arg0, %c0_i32, %c0_i32_0 : i32, i32, i32
  }
  func.func @transform_3(%arg0: i32) -> (i32, i32) {
    %c0_i32 = arith.constant 0 : i32
    %c0_i32_0 = arith.constant 0 : i32
    %c0_i32_1 = arith.constant 0 : i32
    return %c0_i32, %c0_i32_0 : i32, i32
  }
  func.func @transform_4(%arg0: i32) -> (i32, i32) {
    %c0_i32 = arith.constant 0 : i32
    %c0_i32_0 = arith.constant 0 : i32
    %c0_i32_1 = arith.constant 0 : i32
    return %c0_i32, %c0_i32_0 : i32, i32
  }
  func.func @transform_5(%arg0: i32) -> (i32, i32) {
    %c0_i32 = arith.constant 0 : i32
    %c0_i32_0 = arith.constant 0 : i32
    %c0_i32_1 = arith.constant 0 : i32
    return %c0_i32, %c0_i32_0 : i32, i32
  }
  func.func @transform_6(%arg0: i32) -> (i32, i32) {
    %c0_i32 = arith.constant 0 : i32
    %c0_i32_0 = arith.constant 0 : i32
    %c0_i32_1 = arith.constant 0 : i32
    return %c0_i32, %c0_i32_0 : i32, i32
  }
  func.func @transform_7(%arg0: i32) -> (i32, i32) {
    %c0_i32 = arith.constant 0 : i32
    %c0_i32_0 = arith.constant 0 : i32
    %c0_i32_1 = arith.constant 0 : i32
    return %c0_i32, %c0_i32_0 : i32, i32
  }
  func.func @transform_8(%arg0: i32) -> (i32, i32) {
    %c0_i32 = arith.constant 0 : i32
    %c0_i32_0 = arith.constant 0 : i32
    %c0_i32_1 = arith.constant 0 : i32
    return %c0_i32, %c0_i32_0 : i32, i32
  }
  func.func @transform_9(%arg0: i32) -> (i32, i32) {
    %c0_i32 = arith.constant 0 : i32
    %c0_i32_0 = arith.constant 0 : i32
    %c0_i32_1 = arith.constant 0 : i32
    return %c0_i32, %c0_i32_0 : i32, i32
  }
  func.func @transform_10(%arg0: i32) -> (i32, i32) {
    %c0_i32 = arith.constant 0 : i32
    %c0_i32_0 = arith.constant 0 : i32
    %c0_i32_1 = arith.constant 0 : i32
    return %c0_i32, %c0_i32_0 : i32, i32
  }
  func.func @transform_11(%arg0: i32) -> (i32, i32) {
    %c0_i32 = arith.constant 0 : i32
    %c0_i32_0 = arith.constant 0 : i32
    %c0_i32_1 = arith.constant 0 : i32
    return %c0_i32, %c0_i32_0 : i32, i32
  }
  func.func @transform_12(%arg0: i32) -> (i32, i32, i32) {
    %c0_i32 = arith.constant 0 : i32
    %c0_i32_0 = arith.constant 0 : i32
    %c0_i32_1 = arith.constant 0 : i32
    return %arg0, %c0_i32, %c0_i32_0 : i32, i32, i32
  }
}

</mosaic_0001>

<llo_original>
// kernel: tpu_custom_call.1
$region0: #{tpu_custom_call.1}
  #allocation0 [shape = 'u32[]', space=smem, size = 0x4, offset = 0x4, fixed_abs, tag = 'smem constant byte address 0x4 - core index']
  #allocation1 [shape = 'u32[144,128]{1,0:T(1,128)}', space=vmem, size = 0x12000, scoped, tag = 'internal scratch']
  %s0 = inlined_call_operand.vmem [shape: f32[4,8,32], index: 0, kind: input, shape index: {}]
  %s1 = inlined_call_operand.vmem [shape: f32[4,8,1], index: 1, kind: input, shape index: {}]
  %s2 = inlined_call_operand.hbm [shape: f32[4,1,8], index: 2, kind: input, shape index: {}]
  %s3 = inlined_call_operand.hbm [shape: f32[32,192], index: 3, kind: input, shape index: {}]
  %s4 = inlined_call_operand.vmem [shape: f32[1,192], index: 4, kind: input, shape index: {}]
  %s5 = inlined_call_operand.hbm [shape: f32[32,96], index: 5, kind: input, shape index: {}]
  %s6 = inlined_call_operand.hbm [shape: f32[1,96], index: 6, kind: input, shape index: {}]
  %s7 = inlined_call_operand.hbm [shape: f32[32,32], index: 7, kind: input, shape index: {}]
  %s8 = inlined_call_operand.hbm [shape: f32[1,32], index: 8, kind: input, shape index: {}]
  %s9 = inlined_call_operand.vmem [shape: f32[32,32], index: 9, kind: input, shape index: {}]
  %s10 = inlined_call_operand.hbm [shape: f32[32,32], index: 10, kind: input, shape index: {}]
  %s11 = inlined_call_operand.vmem [shape: f32[1,32], index: 11, kind: input, shape index: {}]
  %s12 = inlined_call_operand.hbm [shape: f32[4,8,32], index: 12, kind: output, shape index: {}]
  %s13 = sld [smem:[#allocation0]]
  $region109: #{tpu_custom_call.1} parent=0
    _
  %s15 = ssub.s32 1, %s13
  %s16 = scalar_select 0, %s15, %s13
  $region1: #{tpu_custom_call.1} parent=0
    #allocation2 [shape = 'u8[2048]{0}', space=vmem, size = 0x800, scoped, tag = 'input window, operand 2']
    #allocation3 [shape = 's32[2]{0}', space=sflag, size = 0x8, scoped, tag = 'scoped memory for tpu_custom_call.1']
    #allocation4 [shape = 's32[2]{0}', space=sflag, size = 0x8, scoped, tag = 'scoped memory for tpu_custom_call.1']
    #allocation5 [shape = 'u8[32768]{0}', space=vmem, size = 0x8000, scoped, tag = 'input window, operand 3, single buffered']
    #allocation6 [shape = 's32[1]{0}', space=sflag, size = 0x4, scoped, tag = 'scoped memory for tpu_custom_call.1']
    #allocation7 [shape = 'u8[16384]{0}', space=vmem, size = 0x4000, scoped, tag = 'input window, operand 5, single buffered']
    #allocation8 [shape = 'u8[512]{0}', space=vmem, size = 0x400, scoped, tag = 'input window, operand 6, single buffered']
    #allocation9 [shape = 's32[1]{0}', space=sflag, size = 0x4, scoped, tag = 'scoped memory for tpu_custom_call.1']
    #allocation10 [shape = 'u8[16384]{0}', space=vmem, size = 0x4000, scoped, tag = 'input window, operand 7, single buffered']
    #allocation11 [shape = 'u8[512]{0}', space=vmem, size = 0x400, scoped, tag = 'input window, operand 8, single buffered']
    #allocation12 [shape = 's32[1]{0}', space=sflag, size = 0x4, scoped, tag = 'scoped memory for tpu_custom_call.1']
    #allocation13 [shape = 'u8[16384]{0}', space=vmem, size = 0x4000, scoped, tag = 'input window, operand 10, single buffered']
    #allocation14 [shape = 'u8[16384]{0}', space=vmem, size = 0x4000, scoped, tag = 'output window, operand 0']
    %17 = vsyncpa [#allocation3], 0
    %s18 = scalar_lea.sflag [#allocation3], 1
    %19 = vsyncpa %s18, 0
    %20 = vsyncpa [#allocation6], 0
    %21 = vsyncpa [#allocation9], 0
    %22 = vsyncpa [#allocation12], 0
    %23 = vsyncpa [#allocation4], 0
    %s24 = scalar_lea.sflag [#allocation4], 1
    %25 = vsyncpa %s24, 0
    loop: start=0, step=1, limit=4
    $region2: #{tpu_custom_call.1} parent=1 // loop_pre_header
      _
    $region3: #{tpu_custom_call.1} parent=1 // loop_header
      %s27 = sphi 0, %s31
      %p28 = scmp.ge.s32.totalorder %s27, 4
      %s37 = sphi 0, %s39
      %s40 = sphi 0, %s37
      %s41 = sphi 0, %s40
      %s57 = sphi 0, %s41
      %s63 = sphi 0, %s65
      %s66 = sphi 0, %s63
      %s67 = sphi 0, %s66
      %s83 = sphi 0, %s67
      %s89 = sphi 0, %s91
      %s92 = sphi 0, %s89
      %s93 = sphi 0, %s92
      %s109 = sphi 0, %s93
      %s113 = sphi 0, %s113
      %s115 = sphi 0, %s113
      %s116 = sphi 0, %s115
      %s130 = sphi 0, %s116
      %s134 = sphi 0, %s134
      %s136 = sphi 0, %s134
      %s137 = sphi 0, %s136
      %s151 = sphi 0, %s137
      %s155 = sphi 0, %s155
      %s157 = sphi 0, %s155
      %s158 = sphi 0, %s157
      %s172 = sphi 0, %s158
      %s176 = sphi 0, %s176
      %s178 = sphi 0, %s176
      %s179 = sphi 0, %s178
      %s193 = sphi 0, %s179
      %s197 = sphi 0, %s197
      %s199 = sphi 0, %s197
      %s200 = sphi 0, %s199
      %s214 = sphi 0, %s200
      %s218 = sphi 0, %s218
      %s220 = sphi 0, %s218
      %s221 = sphi 0, %s220
      %s235 = sphi 0, %s221
      %s239 = sphi 0, %s239
      %s241 = sphi 0, %s239
      %s242 = sphi 0, %s241
      %s256 = sphi 0, %s242
      %s260 = sphi 0, %s260
      %s262 = sphi 0, %s260
      %s263 = sphi 0, %s262
      %s277 = sphi 0, %s263
      %s281 = sphi 0, %s281
      %s283 = sphi 0, %s281
      %s284 = sphi 0, %s283
      %s298 = sphi 0, %s284
      %s304 = sphi 0, %s306
      %s307 = sphi 0, %s304
      %s308 = sphi 0, %s307
      %s324 = sphi 0, %s308
    $region4: #{tpu_custom_call.1} parent=1 // loop_header_branch
      %30 = sbr.rel (%p28) target = $region8
    $region5: #{tpu_custom_call.1} parent=1 // loop_body
      %s32 = ssub.s32 %s27, 1
      %s33 = ssub.s32 %s27, 2
      %s34 = sadd.s32 %s27, 1
      %s35 = ssub.s32 %s27, %s34
      %p36 = scmp.eq.s32.totalorder %s35, 0
      %s38 = sadd.s32 %s37, 1
      %s39 = scalar_select %p36, %s37, %s38
      %p42 = pneg %p36
      %p43 = scmp.eq.s32.totalorder %s27, 1
      %p44 = por %p42, %p43
      %p45 = scmp.ne.s32.totalorder %s37, %s40
      %p46 = scmp.eq.s32.totalorder %s27, 0
      %p47 = por %p45, %p46
      %p48 = scmp.ne.s32.totalorder %s37, %s40
      %p49 = scmp.eq.s32.totalorder %s32, 1
      %p50 = por %p48, %p49
      %p51 = scmp.ne.s32.totalorder %s40, %s41
      %p52 = scmp.eq.s32.totalorder %s32, 0
      %p53 = por %p51, %p52
      %p54 = scmp.ne.s32.totalorder %s40, %s41
      %p55 = scmp.eq.s32.totalorder %s33, 1
      %p56 = por %p54, %p55
      %p58 = scmp.ne.s32.totalorder %s41, %s57
      %p59 = scmp.eq.s32.totalorder %s33, 0
      %p60 = por %p58, %p59
      %s61 = ssub.s32 %s27, %s34
      %p62 = scmp.eq.s32.totalorder %s61, 0
      %s64 = sadd.s32 %s63, 1
      %s65 = scalar_select %p62, %s63, %s64
      %p68 = pneg %p62
      %p69 = scmp.eq.s32.totalorder %s27, 1
      %p70 = por %p68, %p69
      %p71 = scmp.ne.s32.totalorder %s63, %s66
      %p72 = scmp.eq.s32.totalorder %s27, 0
      %p73 = por %p71, %p72
      %p74 = scmp.ne.s32.totalorder %s63, %s66
      %p75 = scmp.eq.s32.totalorder %s32, 1
      %p76 = por %p74, %p75
      %p77 = scmp.ne.s32.totalorder %s66, %s67
      %p78 = scmp.eq.s32.totalorder %s32, 0
      %p79 = por %p77, %p78
      %p80 = scmp.ne.s32.totalorder %s66, %s67
      %p81 = scmp.eq.s32.totalorder %s33, 1
      %p82 = por %p80, %p81
      %p84 = scmp.ne.s32.totalorder %s67, %s83
      %p85 = scmp.eq.s32.totalorder %s33, 0
      %p86 = por %p84, %p85
      %s87 = ssub.s32 %s27, %s34
      %p88 = scmp.eq.s32.totalorder %s87, 0
      %s90 = sadd.s32 %s89, 1
      %s91 = scalar_select %p88, %s89, %s90
      %p94 = pneg %p88
      %p95 = scmp.eq.s32.totalorder %s27, 1
      %p96 = por %p94, %p95
      %p97 = scmp.ne.s32.totalorder %s89, %s92
      %p98 = scmp.eq.s32.totalorder %s27, 0
      %p99 = por %p97, %p98
      %p100 = scmp.ne.s32.totalorder %s89, %s92
      %p101 = scmp.eq.s32.totalorder %s32, 1
      %p102 = por %p100, %p101
      %p103 = scmp.ne.s32.totalorder %s92, %s93
      %p104 = scmp.eq.s32.totalorder %s32, 0
      %p105 = por %p103, %p104
      %p106 = scmp.ne.s32.totalorder %s92, %s93
      %p107 = scmp.eq.s32.totalorder %s33, 1
      %p108 = por %p106, %p107
      %p110 = scmp.ne.s32.totalorder %s93, %s109
      %p111 = scmp.eq.s32.totalorder %s33, 0
      %p112 = por %p110, %p111
      %s114 = sadd.s32 %s113, 1
      %p117 = scmp.eq.s32.totalorder %s27, 1
      %p118 = scmp.ne.s32.totalorder %s113, %s115
      %p119 = scmp.eq.s32.totalorder %s27, 0
      %p120 = por %p118, %p119
      %p121 = scmp.ne.s32.totalorder %s113, %s115
      %p122 = scmp.eq.s32.totalorder %s32, 1
      %p123 = por %p121, %p122
      %p124 = scmp.ne.s32.totalorder %s115, %s116
      %p125 = scmp.eq.s32.totalorder %s32, 0
      %p126 = por %p124, %p125
      %p127 = scmp.ne.s32.totalorder %s115, %s116
      %p128 = scmp.eq.s32.totalorder %s33, 1
      %p129 = por %p127, %p128
      %p131 = scmp.ne.s32.totalorder %s116, %s130
      %p132 = scmp.eq.s32.totalorder %s33, 0
      %p133 = por %p131, %p132
      %s135 = sadd.s32 %s134, 1
      %p138 = scmp.eq.s32.totalorder %s27, 1
      %p139 = scmp.ne.s32.totalorder %s134, %s136
      %p140 = scmp.eq.s32.totalorder %s27, 0
      %p141 = por %p139, %p140
      %p142 = scmp.ne.s32.totalorder %s134, %s136
      %p143 = scmp.eq.s32.totalorder %s32, 1
      %p144 = por %p142, %p143
      %p145 = scmp.ne.s32.totalorder %s136, %s137
      %p146 = scmp.eq.s32.totalorder %s32, 0
      %p147 = por %p145, %p146
      %p148 = scmp.ne.s32.totalorder %s136, %s137
      %p149 = scmp.eq.s32.totalorder %s33, 1
      %p150 = por %p148, %p149
      %p152 = scmp.ne.s32.totalorder %s137, %s151
      %p153 = scmp.eq.s32.totalorder %s33, 0
      %p154 = por %p152, %p153
      %s156 = sadd.s32 %s155, 1
      %p159 = scmp.eq.s32.totalorder %s27, 1
      %p160 = scmp.ne.s32.totalorder %s155, %s157
      %p161 = scmp.eq.s32.totalorder %s27, 0
      %p162 = por %p160, %p161
      %p163 = scmp.ne.s32.totalorder %s155, %s157
      %p164 = scmp.eq.s32.totalorder %s32, 1
      %p165 = por %p163, %p164
      %p166 = scmp.ne.s32.totalorder %s157, %s158
      %p167 = scmp.eq.s32.totalorder %s32, 0
      %p168 = por %p166, %p167
      %p169 = scmp.ne.s32.totalorder %s157, %s158
      %p170 = scmp.eq.s32.totalorder %s33, 1
      %p171 = por %p169, %p170
      %p173 = scmp.ne.s32.totalorder %s158, %s172
      %p174 = scmp.eq.s32.totalorder %s33, 0
      %p175 = por %p173, %p174
      %s177 = sadd.s32 %s176, 1
      %p180 = scmp.eq.s32.totalorder %s27, 1
      %p181 = scmp.ne.s32.totalorder %s176, %s178
      %p182 = scmp.eq.s32.totalorder %s27, 0
      %p183 = por %p181, %p182
      %p184 = scmp.ne.s32.totalorder %s176, %s178
      %p185 = scmp.eq.s32.totalorder %s32, 1
      %p186 = por %p184, %p185
      %p187 = scmp.ne.s32.totalorder %s178, %s179
      %p188 = scmp.eq.s32.totalorder %s32, 0
      %p189 = por %p187, %p188
      %p190 = scmp.ne.s32.totalorder %s178, %s179
      %p191 = scmp.eq.s32.totalorder %s33, 1
      %p192 = por %p190, %p191
      %p194 = scmp.ne.s32.totalorder %s179, %s193
      %p195 = scmp.eq.s32.totalorder %s33, 0
      %p196 = por %p194, %p195
      %s198 = sadd.s32 %s197, 1
      %p201 = scmp.eq.s32.totalorder %s27, 1
      %p202 = scmp.ne.s32.totalorder %s197, %s199
      %p203 = scmp.eq.s32.totalorder %s27, 0
      %p204 = por %p202, %p203
      %p205 = scmp.ne.s32.totalorder %s197, %s199
      %p206 = scmp.eq.s32.totalorder %s32, 1
      %p207 = por %p205, %p206
      %p208 = scmp.ne.s32.totalorder %s199, %s200
      %p209 = scmp.eq.s32.totalorder %s32, 0
      %p210 = por %p208, %p209
      %p211 = scmp.ne.s32.totalorder %s199, %s200
      %p212 = scmp.eq.s32.totalorder %s33, 1
      %p213 = por %p211, %p212
      %p215 = scmp.ne.s32.totalorder %s200, %s214
      %p216 = scmp.eq.s32.totalorder %s33, 0
      %p217 = por %p215, %p216
      %s219 = sadd.s32 %s218, 1
      %p222 = scmp.eq.s32.totalorder %s27, 1
      %p223 = scmp.ne.s32.totalorder %s218, %s220
      %p224 = scmp.eq.s32.totalorder %s27, 0
      %p225 = por %p223, %p224
      %p226 = scmp.ne.s32.totalorder %s218, %s220
      %p227 = scmp.eq.s32.totalorder %s32, 1
      %p228 = por %p226, %p227
      %p229 = scmp.ne.s32.totalorder %s220, %s221
      %p230 = scmp.eq.s32.totalorder %s32, 0
      %p231 = por %p229, %p230
      %p232 = scmp.ne.s32.totalorder %s220, %s221
      %p233 = scmp.eq.s32.totalorder %s33, 1
      %p234 = por %p232, %p233
      %p236 = scmp.ne.s32.totalorder %s221, %s235
      %p237 = scmp.eq.s32.totalorder %s33, 0
      %p238 = por %p236, %p237
      %s240 = sadd.s32 %s239, 1
      %p243 = scmp.eq.s32.totalorder %s27, 1
      %p244 = scmp.ne.s32.totalorder %s239, %s241
      %p245 = scmp.eq.s32.totalorder %s27, 0
      %p246 = por %p244, %p245
      %p247 = scmp.ne.s32.totalorder %s239, %s241
      %p248 = scmp.eq.s32.totalorder %s32, 1
      %p249 = por %p247, %p248
      %p250 = scmp.ne.s32.totalorder %s241, %s242
      %p251 = scmp.eq.s32.totalorder %s32, 0
      %p252 = por %p250, %p251
      %p253 = scmp.ne.s32.totalorder %s241, %s242
      %p254 = scmp.eq.s32.totalorder %s33, 1
      %p255 = por %p253, %p254
      %p257 = scmp.ne.s32.totalorder %s242, %s256
      %p258 = scmp.eq.s32.totalorder %s33, 0
      %p259 = por %p257, %p258
      %s261 = sadd.s32 %s260, 1
      %p264 = scmp.eq.s32.totalorder %s27, 1
      %p265 = scmp.ne.s32.totalorder %s260, %s262
      %p266 = scmp.eq.s32.totalorder %s27, 0
      %p267 = por %p265, %p266
      %p268 = scmp.ne.s32.totalorder %s260, %s262
      %p269 = scmp.eq.s32.totalorder %s32, 1
      %p270 = por %p268, %p269
      %p271 = scmp.ne.s32.totalorder %s262, %s263
      %p272 = scmp.eq.s32.totalorder %s32, 0
      %p273 = por %p271, %p272
      %p274 = scmp.ne.s32.totalorder %s262, %s263
      %p275 = scmp.eq.s32.totalorder %s33, 1
      %p276 = por %p274, %p275
      %p278 = scmp.ne.s32.totalorder %s263, %s277
      %p279 = scmp.eq.s32.totalorder %s33, 0
      %p280 = por %p278, %p279
      %s282 = sadd.s32 %s281, 1
      %p285 = scmp.eq.s32.totalorder %s27, 1
      %p286 = scmp.ne.s32.totalorder %s281, %s283
      %p287 = scmp.eq.s32.totalorder %s27, 0
      %p288 = por %p286, %p287
      %p289 = scmp.ne.s32.totalorder %s281, %s283
      %p290 = scmp.eq.s32.totalorder %s32, 1
      %p291 = por %p289, %p290
      %p292 = scmp.ne.s32.totalorder %s283, %s284
      %p293 = scmp.eq.s32.totalorder %s32, 0
      %p294 = por %p292, %p293
      %p295 = scmp.ne.s32.totalorder %s283, %s284
      %p296 = scmp.eq.s32.totalorder %s33, 1
      %p297 = por %p295, %p296
      %p299 = scmp.ne.s32.totalorder %s284, %s298
      %p300 = scmp.eq.s32.totalorder %s33, 0
      %p301 = por %p299, %p300
      %s302 = ssub.s32 %s27, %s34
      %p303 = scmp.eq.s32.totalorder %s302, 0
      %s305 = sadd.s32 %s304, 1
      %s306 = scalar_select %p303, %s304, %s305
      %p309 = pneg %p303
      %p310 = scmp.eq.s32.totalorder %s27, 1
      %p311 = por %p309, %p310
      %p312 = scmp.ne.s32.totalorder %s304, %s307
      %p313 = scmp.eq.s32.totalorder %s27, 0
      %p314 = por %p312, %p313
      %p315 = scmp.ne.s32.totalorder %s304, %s307
      %p316 = scmp.eq.s32.totalorder %s32, 1
      %p317 = por %p315, %p316
      %p318 = scmp.ne.s32.totalorder %s307, %s308
      %p319 = scmp.eq.s32.totalorder %s32, 0
      %p320 = por %p318, %p319
      %p321 = scmp.ne.s32.totalorder %s307, %s308
      %p322 = scmp.eq.s32.totalorder %s33, 1
      %p323 = por %p321, %p322
      %p325 = scmp.ne.s32.totalorder %s308, %s324
      %p326 = scmp.eq.s32.totalorder %s33, 0
      %p327 = por %p325, %p326
      %p328 = scmp.le.s32.totalorder 1, %s27
      %p329 = scmp.lt.s32.totalorder %s27, 3
      %p330 = pnand %p328, %p329
      %p331 = pneg %p330
      // Predicated region
      $region9: #{tpu_custom_call.1} parent=5 // pred_check
        _
      $region10: #{tpu_custom_call.1} parent=5 // pred_check_branch
        %333 = sbr.rel (%p330) target = $region12
      $region11: #{tpu_custom_call.1} parent=5 // pred_region
        %s334 = ssub.s32 %s27, 1
        // Predicated region
        $region13: #{tpu_custom_call.1} parent=11 // pred_check
          %p335 = pneg %p126
        $region14: #{tpu_custom_call.1} parent=11 // pred_check_branch
          %337 = sbr.rel (%p335) target = $region16
        $region15: #{tpu_custom_call.1} parent=11 // pred_region
          %s339 = ssub.s32 1024, 1024
          %340 = vsyncadd [#allocation6], %s339
          %s341 = sshll.u32 [#allocation5], 4
          %s342 = int_to_ptr.vmem [resolvable:$true] %s341
          %347 = dma.hbm_to_vmem [thread:$0]  %s3, 1024, %s342, [#allocation6], 256, 256, 16
        $region16: #{tpu_custom_call.1} parent=11 // pred_fallthru
          _
        // Predicated region
        $region17: #{tpu_custom_call.1} parent=11 // pred_check
          %p348 = pneg %p147
        $region18: #{tpu_custom_call.1} parent=11 // pred_check_branch
          %350 = sbr.rel (%p348) target = $region20
        $region19: #{tpu_custom_call.1} parent=11 // pred_region
          _
        $region20: #{tpu_custom_call.1} parent=11 // pred_fallthru
          _
        // Predicated region
        $region21: #{tpu_custom_call.1} parent=11 // pred_check
          %p351 = pneg %p168
        $region22: #{tpu_custom_call.1} parent=11 // pred_check_branch
          %353 = sbr.rel (%p351) target = $region24
        $region23: #{tpu_custom_call.1} parent=11 // pred_region
          %s355 = ssub.s32 512, 512
          %356 = vsyncadd [#allocation6], %s355
          %s357 = sshll.u32 [#allocation7], 4
          %s358 = int_to_ptr.vmem [resolvable:$true] %s357
          %363 = dma.hbm_to_vmem [thread:$0]  %s5, 512, %s358, [#allocation6], 128, 128, 8
        $region24: #{tpu_custom_call.1} parent=11 // pred_fallthru
          _
        // Predicated region
        $region25: #{tpu_custom_call.1} parent=11 // pred_check
          %p364 = pneg %p189
        $region26: #{tpu_custom_call.1} parent=11 // pred_check_branch
          %366 = sbr.rel (%p364) target = $region28
        $region27: #{tpu_custom_call.1} parent=11 // pred_region
          %s368 = ssub.s32 16, 16
          %369 = vsyncadd [#allocation9], %s368
          %s371 = sshll.u32 [#allocation8], 4
          %s372 = int_to_ptr.vmem [resolvable:$true] %s371
          %374 = dma.hbm_to_vmem [thread:$0]  %s6, 16, %s372, [#allocation9]
        $region28: #{tpu_custom_call.1} parent=11 // pred_fallthru
          _
        // Predicated region
        $region29: #{tpu_custom_call.1} parent=11 // pred_check
          %p375 = pneg %p210
        $region30: #{tpu_custom_call.1} parent=11 // pred_check_branch
          %377 = sbr.rel (%p375) target = $region32
        $region31: #{tpu_custom_call.1} parent=11 // pred_region
          %s379 = ssub.s32 512, 512
          %380 = vsyncadd [#allocation9], %s379
          %s381 = sshll.u32 [#allocation10], 4
          %s382 = int_to_ptr.vmem [resolvable:$true] %s381
          %387 = dma.hbm_to_vmem [thread:$0]  %s7, 512, %s382, [#allocation9], 128, 128, 8
        $region32: #{tpu_custom_call.1} parent=11 // pred_fallthru
          _
        // Predicated region
        $region33: #{tpu_custom_call.1} parent=11 // pred_check
          %p388 = pneg %p231
        $region34: #{tpu_custom_call.1} parent=11 // pred_check_branch
          %390 = sbr.rel (%p388) target = $region36
        $region35: #{tpu_custom_call.1} parent=11 // pred_region
          %s392 = ssub.s32 16, 16
          %393 = vsyncadd [#allocation12], %s392
          %s395 = sshll.u32 [#allocation11], 4
          %s396 = int_to_ptr.vmem [resolvable:$true] %s395
          %398 = dma.hbm_to_vmem [thread:$0]  %s8, 16, %s396, [#allocation12]
        $region36: #{tpu_custom_call.1} parent=11 // pred_fallthru
          _
        // Predicated region
        $region37: #{tpu_custom_call.1} parent=11 // pred_check
          %p399 = pneg %p252
        $region38: #{tpu_custom_call.1} parent=11 // pred_check_branch
          %401 = sbr.rel (%p399) target = $region40
        $region39: #{tpu_custom_call.1} parent=11 // pred_region
          _
        $region40: #{tpu_custom_call.1} parent=11 // pred_fallthru
          _
        // Predicated region
        $region41: #{tpu_custom_call.1} parent=11 // pred_check
          %p402 = pneg %p273
        $region42: #{tpu_custom_call.1} parent=11 // pred_check_branch
          %404 = sbr.rel (%p402) target = $region44
        $region43: #{tpu_custom_call.1} parent=11 // pred_region
          %s406 = ssub.s32 512, 512
          %407 = vsyncadd [#allocation12], %s406
          %s408 = sshll.u32 [#allocation13], 4
          %s409 = int_to_ptr.vmem [resolvable:$true] %s408
          %414 = dma.hbm_to_vmem [thread:$0]  %s10, 512, %s409, [#allocation12], 128, 128, 8
        $region44: #{tpu_custom_call.1} parent=11 // pred_fallthru
          _
        // Predicated region
        $region45: #{tpu_custom_call.1} parent=11 // pred_check
          %p415 = pneg %p294
        $region46: #{tpu_custom_call.1} parent=11 // pred_check_branch
          %417 = sbr.rel (%p415) target = $region48
        $region47: #{tpu_custom_call.1} parent=11 // pred_region
          _
        $region48: #{tpu_custom_call.1} parent=11 // pred_fallthru
          _
      $region12: #{tpu_custom_call.1} parent=5 // pred_fallthru
        _
      %p418 = scmp.lt.s32.totalorder %s27, 2
      // Predicated region
      $region49: #{tpu_custom_call.1} parent=5 // pred_check
        %p419 = pneg %p418
      $region50: #{tpu_custom_call.1} parent=5 // pred_check_branch
        %421 = sbr.rel (%p419) target = $region52
      $region51: #{tpu_custom_call.1} parent=5 // pred_region
        // Predicated region
        $region53: #{tpu_custom_call.1} parent=51 // pred_check
          %p422 = pneg %p47
        $region54: #{tpu_custom_call.1} parent=51 // pred_check_branch
          %424 = sbr.rel (%p422) target = $region56
        $region55: #{tpu_custom_call.1} parent=51 // pred_region
          %s425 = smul.u32 2, %s27
          %p426 = scmp.lt.s32.totalorder %s425, 3
          %s427 = scalar_select %p426, %s425, 3
          %s428 = smul.addr %s427, 8
          %s429 = scalar_lea.vmem %s0, %s428
          %s430 = smul.u32 2, %s27
        $region56: #{tpu_custom_call.1} parent=51 // pred_fallthru
          _
        // Predicated region
        $region57: #{tpu_custom_call.1} parent=51 // pred_check
          %p431 = pneg %p73
        $region58: #{tpu_custom_call.1} parent=51 // pred_check_branch
          %433 = sbr.rel (%p431) target = $region60
        $region59: #{tpu_custom_call.1} parent=51 // pred_region
          %s434 = smul.u32 2, %s27
          %p435 = scmp.lt.s32.totalorder %s434, 3
          %s436 = scalar_select %p435, %s434, 3
          %s437 = smul.addr %s436, 8
          %s438 = scalar_lea.vmem %s1, %s437
          %s439 = smul.u32 2, %s27
        $region60: #{tpu_custom_call.1} parent=51 // pred_fallthru
          _
        // Predicated region
        $region61: #{tpu_custom_call.1} parent=51 // pred_check
          %p440 = pneg %p99
        $region62: #{tpu_custom_call.1} parent=51 // pred_check_branch
          %442 = sbr.rel (%p440) target = $region64
        $region63: #{tpu_custom_call.1} parent=51 // pred_region
          %s443 = sand.u32 %s89, 1
          %s444 = scalar_lea.sflag [#allocation3], %s443
          %s445 = sand.u32 %s89, 1
          %s446 = smul.addr %s445, 2
          %s447 = scalar_lea.vmem [#allocation2], %s446
          %s448 = smul.u32 2, %s27
          %s450 = ssub.s32 32, 32
          %451 = vsyncadd %s444, %s450
          %s452 = smul.addr %s448, 16
          %s453 = scalar_lea.hbm %s2, %s452
          %s454 = sshll.u32 %s447, 4
          %s455 = int_to_ptr.vmem [resolvable:$true] %s454
          %460 = dma.hbm_to_vmem [thread:$0]  %s453, 32, %s455, %s444, 16, 16, 1
        $region64: #{tpu_custom_call.1} parent=51 // pred_fallthru
          _
      $region52: #{tpu_custom_call.1} parent=5 // pred_fallthru
        _
      %p461 = scmp.le.s32.totalorder 1, %s27
      %p462 = scmp.lt.s32.totalorder %s27, 3
      %p463 = pnand %p461, %p462
      %p464 = pneg %p463
      // Predicated region
      $region65: #{tpu_custom_call.1} parent=5 // pred_check
        _
      $region66: #{tpu_custom_call.1} parent=5 // pred_check_branch
        %466 = sbr.rel (%p463) target = $region68
      $region67: #{tpu_custom_call.1} parent=5 // pred_region
        %s467 = ssub.s32 %s27, 1
        %s468 = sand.u32 %s92, 1
        %s469 = scalar_lea.sflag [#allocation3], %s468
        %s470 = sand.u32 %s92, 1
        %s471 = smul.addr %s470, 2
        %s472 = scalar_lea.vmem [#allocation2], %s471
        // Predicated region
        $region69: #{tpu_custom_call.1} parent=67 // pred_check
          %p473 = pneg %p105
        $region70: #{tpu_custom_call.1} parent=67 // pred_check_branch
          %475 = sbr.rel (%p473) target = $region72
        $region71: #{tpu_custom_call.1} parent=67 // pred_region
          %476 = dma.done %s469, 32
        $region72: #{tpu_custom_call.1} parent=67 // pred_fallthru
          _
        // Predicated region
        $region73: #{tpu_custom_call.1} parent=67 // pred_check
          %p477 = pneg %p126
        $region74: #{tpu_custom_call.1} parent=67 // pred_check_branch
          %479 = sbr.rel (%p477) target = $region76
        $region75: #{tpu_custom_call.1} parent=67 // pred_region
          %480 = dma.done [#allocation6], 1024
        $region76: #{tpu_custom_call.1} parent=67 // pred_fallthru
          _
        // Predicated region
        $region77: #{tpu_custom_call.1} parent=67 // pred_check
          %p481 = pneg %p168
        $region78: #{tpu_custom_call.1} parent=67 // pred_check_branch
          %483 = sbr.rel (%p481) target = $region80
        $region79: #{tpu_custom_call.1} parent=67 // pred_region
          %484 = dma.done [#allocation6], 512
        $region80: #{tpu_custom_call.1} parent=67 // pred_fallthru
          _
        // Predicated region
        $region81: #{tpu_custom_call.1} parent=67 // pred_check
          %p485 = pneg %p189
        $region82: #{tpu_custom_call.1} parent=67 // pred_check_branch
          %487 = sbr.rel (%p485) target = $region84
        $region83: #{tpu_custom_call.1} parent=67 // pred_region
          %488 = dma.done [#allocation9], 16
        $region84: #{tpu_custom_call.1} parent=67 // pred_fallthru
          _
        // Predicated region
        $region85: #{tpu_custom_call.1} parent=67 // pred_check
          %p489 = pneg %p210
        $region86: #{tpu_custom_call.1} parent=67 // pred_check_branch
          %491 = sbr.rel (%p489) target = $region88
        $region87: #{tpu_custom_call.1} parent=67 // pred_region
          %492 = dma.done [#allocation9], 512
        $region88: #{tpu_custom_call.1} parent=67 // pred_fallthru
          _
        // Predicated region
        $region89: #{tpu_custom_call.1} parent=67 // pred_check
          %p493 = pneg %p231
        $region90: #{tpu_custom_call.1} parent=67 // pred_check_branch
          %495 = sbr.rel (%p493) target = $region92
        $region91: #{tpu_custom_call.1} parent=67 // pred_region
          %496 = dma.done [#allocation12], 16
        $region92: #{tpu_custom_call.1} parent=67 // pred_fallthru
          _
        // Predicated region
        $region93: #{tpu_custom_call.1} parent=67 // pred_check
          %p497 = pneg %p273
        $region94: #{tpu_custom_call.1} parent=67 // pred_check_branch
          %499 = sbr.rel (%p497) target = $region96
        $region95: #{tpu_custom_call.1} parent=67 // pred_region
          %500 = dma.done [#allocation12], 512
        $region96: #{tpu_custom_call.1} parent=67 // pred_fallthru
          _
        %s501 = smul.u32 2, %s32
        %p502 = scmp.lt.s32.totalorder %s501, 3
        %s503 = scalar_select %p502, %s501, 3
        %s504 = smul.addr %s503, 8
        %s505 = scalar_lea.vmem %s0, %s504
        %p506 = pneg %p53
        %p507 = pneg %p50
        %s508 = smul.u32 2, %s32
        %p509 = scmp.lt.s32.totalorder %s508, 3
        %s510 = scalar_select %p509, %s508, 3
        %s511 = smul.addr %s510, 8
        %s512 = scalar_lea.vmem %s1, %s511
        %p513 = pneg %p79
        %p514 = pneg %p76
        %s515 = sand.u32 %s92, 1
        %s516 = scalar_lea.sflag [#allocation3], %s515
        %s517 = sand.u32 %s92, 1
        %s518 = smul.addr %s517, 2
        %s519 = scalar_lea.vmem [#allocation2], %s518
        %p520 = pneg %p105
        %p521 = pneg %p102
        %p522 = pneg %p126
        %p523 = pneg %p123
        %p524 = pneg %p147
        %p525 = pneg %p144
        %p526 = pneg %p168
        %p527 = pneg %p165
        %p528 = pneg %p189
        %p529 = pneg %p186
        %p530 = pneg %p210
        %p531 = pneg %p207
        %p532 = pneg %p231
        %p533 = pneg %p228
        %p534 = pneg %p252
        %p535 = pneg %p249
        %p536 = pneg %p273
        %p537 = pneg %p270
        %p538 = pneg %p294
        %p539 = pneg %p291
        %p540 = pneg %p320
        %p541 = pneg %p317
        %s542 = sand.u32 %s307, 1
        %s543 = scalar_lea.sflag [#allocation4], %s542
        %s544 = sand.u32 %s307, 1
        %s545 = smul.addr %s544, 16
        %s546 = scalar_lea.vmem [#allocation14], %s545
        %s547 = smul.u32 2, %s32
        %p548 = scmp.lt.s32.totalorder %s547, 3
        %s549 = scalar_select %p548, %s547, 3
        %s550 = smul.addr %s549, 8
        %s551 = scalar_lea.vmem %s0, %s550
        %s552 = smul.u32 2, %s32
        %s553 = smul.u32 2, %s32
        %p554 = scmp.lt.s32.totalorder %s553, 3
        %s555 = scalar_select %p554, %s553, 3
        %s556 = smul.addr %s555, 8
        %s557 = scalar_lea.vmem %s1, %s556
        %s558 = smul.u32 2, %s32
        %s559 = smul.u32 2, %s32
        %s560 = smul.u32 2, %s32
        %v561 = vld [vmem:[%s551] sm:$0xff]
        %v562 = vld [vmem:[%s551 + $0x8] sm:$0xff]
        %v563 = vld [vmem:[%s557] sm:$0xff]
        %v564 = vld [vmem:[%s557 + $0x8] sm:$0xff]
        %v565 = vld [vmem:[%s472] sm:$0x1]
        %v566 = vld [vmem:[%s472 + $0x1] sm:$0x1]
        %v567 = vld [vmem:[#allocation5] sm:$0xff]
        %v568 = vld [vmem:[#allocation5 + $0x8] sm:$0xff]
        %v569 = vld [vmem:[#allocation5 + $0x10] sm:$0xff]
        %v570 = vld [vmem:[#allocation5 + $0x18] sm:$0xff]
        %v571 = vld [vmem:[#allocation5 + $0x20] sm:$0xff]
        %v572 = vld [vmem:[#allocation5 + $0x28] sm:$0xff]
        %v573 = vld [vmem:[#allocation5 + $0x30] sm:$0xff]
        %v574 = vld [vmem:[#allocation5 + $0x38] sm:$0xff]
        %v575 = vld [vmem:[%s4] sm:$0x3]
        %v577 = vlaneseq
        %v578 = vshrl.u32 %v577, 7
        %v579 = vsub.s32 0, %v578
        %v580 = vrot.slane %v575, %v579
        %v581 = vlaneseq
        %v582 = vshrl.u32 %v581, 7
        %v583 = vsub.s32 1, %v582
        %v584 = vrot.slane %v575, %v583
        %vm587 = vcmask 261120
        %v589 = vsel %vm587, %v561, 0
        %v592 = vsel %vm587, %v562, 0
        %594 = vmatprep.subr.mxu0 %v568
        %595 = vmatpush1.msra.mxu0 %v567
        %596 = vmatprep.subr.mxu0 %v570
        %597 = vmatpush1.msra.mxu0 %v569
        %598 = vmatprep.subr.mxu0 %v572
        %599 = vmatpush1.msra.mxu0 %v571
        %600 = vmatprep.subr.mxu0 %v574
        %601 = vmatpush1.msra.mxu0 %v573
        %602 = vmatprep.subr.mxu0 0.0
        %603 = vmatpush1.msra.mxu0 0.0
        %604 = vmatprep.subr.mxu0 0.0
        %605 = vmatpush1.msra.mxu0 0.0
        %606 = vmatprep.subr.mxu0 0.0
        %607 = vmatpush1.msra.mxu0 0.0
        %608 = vmatprep.subr.mxu0 0.0
        %609 = vmatpush1.msra.mxu0 0.0
        %610 = vmatprep.subr.mxu0 0.0
        %611 = vmatpush1.msra.mxu0 0.0
        %612 = vmatprep.subr.mxu0 0.0
        %613 = vmatpush1.msra.mxu0 0.0
        %614 = vmatprep.subr.mxu0 0.0
        %615 = vmatpush1.msra.mxu0 0.0
        %616 = vmatprep.subr.mxu0 0.0
        %617 = vmatpush1.msra.mxu0 0.0
        %618 = vmatprep.subr.mxu0 0.0
        %619 = vmatpush1.msra.mxu0 0.0
        %620 = vmatprep.subr.mxu0 0.0
        %621 = vmatpush1.msra.mxu0 0.0
        %622 = vmatprep.subr.mxu0 0.0
        %623 = vmatpush1.msra.mxu0 0.0
        %624 = vmatprep.subr.mxu0 0.0
        %625 = vmatpush1.msra.mxu0 0.0
        %626 = vmatprep.subr.mxu0 0.0
        %627 = vmatpush1.msra.mxu0 0.0
        %628 = vmatprep.subr.mxu0 0.0
        %629 = vmatpush1.msra.mxu0 0.0
        %630 = vmatprep.subr.mxu0 0.0
        %631 = vmatpush1.msra.mxu0 0.0
        %632 = vmatprep.subr.mxu0 0.0
        %633 = vmatpush1.msra.mxu0 0.0
        %634 = vmatprep.subr.mxu0 0.0
        %635 = vmatpush1.msra.mxu0 0.0
        %636 = vmatprep.subr.mxu0 0.0
        %637 = vmatpush1.msra.mxu0 0.0
        %638 = vmatprep.subr.mxu0 0.0
        %639 = vmatpush1.msra.mxu0 0.0
        %640 = vmatprep.subr.mxu0 0.0
        %641 = vmatpush1.msra.mxu0 0.0
        %642 = vmatprep.subr.mxu0 0.0
        %643 = vmatpush1.msra.mxu0 0.0
        %644 = vmatprep.subr.mxu0 0.0
        %645 = vmatpush1.msra.mxu0 0.0
        %646 = vmatprep.subr.mxu0 0.0
        %647 = vmatpush1.msra.mxu0 0.0
        %648 = vmatprep.subr.mxu0 0.0
        %649 = vmatpush1.msra.mxu0 0.0
        %650 = vmatprep.subr.mxu0 0.0
        %651 = vmatpush1.msra.mxu0 0.0
        %652 = vmatprep.subr.mxu0 0.0
        %653 = vmatpush1.msra.mxu0 0.0
        %654 = vmatprep.subr.mxu0 0.0
        %655 = vmatpush1.msra.mxu0 0.0
        %656 = vmatprep.subr.mxu0 0.0
        %657 = vmatpush1.msra.mxu0 0.0
        %658 = vmatprep.mubr.f32.mxu0 0.0
        %659 = vmatmul.mubr.f32.gmra.mrb[0].mxu0 %v589
        %v660 = vpop.f32.mrb[0].mxu0
        %v661 = vadd.f32 %v580, %v660
        %v662 = vpop.f32.mrb[0].mxu0
        %v663 = vadd.f32 %v584, %v662
        %664 = vmatprep.mubr.f32.mxu0 0.0
        %665 = vmatmul.mubr.f32.gmra.mrb[0].mxu0 %v592
        %v666 = vpop.f32.mrb[0].mxu0
        %v667 = vadd.f32 %v580, %v666
        %v668 = vpop.f32.mrb[0].mxu0
        %v669 = vadd.f32 %v584, %v668
        %670 = vdwg.mxu0
        %v671 = vld [vmem:[#allocation7] sm:$0xff]
        %v672 = vld [vmem:[#allocation7 + $0x8] sm:$0xff]
        %v673 = vld [vmem:[#allocation7 + $0x10] sm:$0xff]
        %v674 = vld [vmem:[#allocation7 + $0x18] sm:$0xff]
        %v675 = vld [vmem:[#allocation8] sm:$0x1]
        %v677 = vlaneseq
        %v678 = vshrl.u32 %v677, 7
        %v679 = vsub.s32 0, %v678
        %v680 = vrot.slane %v675, %v679
        %v683 = vsel %vm587, 0.0, 0
        %685 = vmatprep.subr.mxu0 0.0
        %686 = vmatpush1.msra.mxu0 %v671
        %687 = vmatprep.subr.mxu0 0.0
        %688 = vmatpush1.msra.mxu0 %v672
        %689 = vmatprep.subr.mxu0 0.0
        %690 = vmatpush1.msra.mxu0 %v673
        %691 = vmatprep.subr.mxu0 0.0
        %692 = vmatpush1.msra.mxu0 %v674
        %693 = vmatprep.subr.mxu0 0.0
        %694 = vmatpush1.msra.mxu0 0.0
        %695 = vmatprep.subr.mxu0 0.0
        %696 = vmatpush1.msra.mxu0 0.0
        %697 = vmatprep.subr.mxu0 0.0
        %698 = vmatpush1.msra.mxu0 0.0
        %699 = vmatprep.subr.mxu0 0.0
        %700 = vmatpush1.msra.mxu0 0.0
        %701 = vmatprep.subr.mxu0 0.0
        %702 = vmatpush1.msra.mxu0 0.0
        %703 = vmatprep.subr.mxu0 0.0
        %704 = vmatpush1.msra.mxu0 0.0
        %705 = vmatprep.subr.mxu0 0.0
        %706 = vmatpush1.msra.mxu0 0.0
        %707 = vmatprep.subr.mxu0 0.0
        %708 = vmatpush1.msra.mxu0 0.0
        %709 = vmatprep.subr.mxu0 0.0
        %710 = vmatpush1.msra.mxu0 0.0
        %711 = vmatprep.subr.mxu0 0.0
        %712 = vmatpush1.msra.mxu0 0.0
        %713 = vmatprep.subr.mxu0 0.0
        %714 = vmatpush1.msra.mxu0 0.0
        %715 = vmatprep.subr.mxu0 0.0
        %716 = vmatpush1.msra.mxu0 0.0
        %717 = vmatprep.subr.mxu0 0.0
        %718 = vmatpush1.msra.mxu0 0.0
        %719 = vmatprep.subr.mxu0 0.0
        %720 = vmatpush1.msra.mxu0 0.0
        %721 = vmatprep.subr.mxu0 0.0
        %722 = vmatpush1.msra.mxu0 0.0
        %723 = vmatprep.subr.mxu0 0.0
        %724 = vmatpush1.msra.mxu0 0.0
        %725 = vmatprep.subr.mxu0 0.0
        %726 = vmatpush1.msra.mxu0 0.0
        %727 = vmatprep.subr.mxu0 0.0
        %728 = vmatpush1.msra.mxu0 0.0
        %729 = vmatprep.subr.mxu0 0.0
        %730 = vmatpush1.msra.mxu0 0.0
        %731 = vmatprep.subr.mxu0 0.0
        %732 = vmatpush1.msra.mxu0 0.0
        %733 = vmatprep.subr.mxu0 0.0
        %734 = vmatpush1.msra.mxu0 0.0
        %735 = vmatprep.subr.mxu0 0.0
        %736 = vmatpush1.msra.mxu0 0.0
        %737 = vmatprep.subr.mxu0 0.0
        %738 = vmatpush1.msra.mxu0 0.0
        %739 = vmatprep.subr.mxu0 0.0
        %740 = vmatpush1.msra.mxu0 0.0
        %741 = vmatprep.subr.mxu0 0.0
        %742 = vmatpush1.msra.mxu0 0.0
        %743 = vmatprep.subr.mxu0 0.0
        %744 = vmatpush1.msra.mxu0 0.0
        %745 = vmatprep.subr.mxu0 0.0
        %746 = vmatpush1.msra.mxu0 0.0
        %747 = vmatprep.subr.mxu0 0.0
        %748 = vmatpush1.msra.mxu0 0.0
        %749 = vmatprep.mubr.f32.mxu0 0.0
        %750 = vmatmul.mubr.f32.gmra.mrb[0].mxu0 %v683
        %v751 = vpop.f32.mrb[0].mxu0
        %v752 = vadd.f32 %v680, %v751
        %v753 = vpop.f32.mrb[0].mxu0
        %754 = vdwg.mxu0
        %v756 = vrot.slane %v752, 1
        %v759 = vadd.f32 %v661, %v752
        %v760 = vadd.f32 %v667, %v756
        %v761 = vxor.u32 %v759, 2147483648
        %v762 = vxor.u32 %v760, 2147483648
        %v763 = vmul.f32 %v761, 1.442695
        %v764 = vpow.pop %v763
        %v765 = vmul.f32 %v762, 1.442695
        %v766 = vpow.pop %v765
        %v767 = vadd.f32 %v764, 1.0
        %v768 = vadd.f32 %v766, 1.0
        %v769 = vrcp.pop %v767
        %v770 = vmul.f32 1.0, %v769
        %v771 = vrcp.pop %v768
        %v772 = vmul.f32 1.0, %v771
        %773 = vrot.lane.b32.xlu0 %v752, 64
        %v774 = vpop.permute.xlu0 %773
        %775 = vrot.lane.b32.xlu0 %v756, 64
        %v776 = vpop.permute.xlu0 %775
        %v779 = vmul.f32 %v770, %v774
        %v780 = vmul.f32 %v772, %v776
        %783 = vrot.lane.b32.xlu0 %v779, 64
        %v784 = vpop.permute.xlu0 %783
        %785 = vrot.lane.b32.xlu0 %v780, 64
        %v786 = vpop.permute.xlu0 %785
        %v789 = vadd.f32 %v661, %v784
        %v790 = vadd.f32 %v667, %v786
        %v791 = vtanh.pop %v789
        %v792 = vtanh.pop %v790
        %v793 = vsub.f32 1.0, %v770
        %v794 = vsub.f32 1.0, %v772
        %797 = vrot.lane.b32.xlu0 %v791, 96
        %v798 = vpop.permute.xlu0 %797
        %799 = vrot.lane.b32.xlu0 %v792, 96
        %v800 = vpop.permute.xlu0 %799
        %v803 = vmul.f32 %v793, %v798
        %v804 = vmul.f32 %v794, %v800
        %v805 = vmul.f32 %v770, 0.0
        %v806 = vmul.f32 %v772, 0.0
        %v807 = vadd.f32 %v803, %v805
        %v808 = vadd.f32 %v804, %v806
        %v811 = vrot.slane %v808, 7
        %vm812 = vcmask 1041409
        %v813 = vsel %vm812, %v811, %v807
        %814 = vrot.lane.b32.xlu0 %v813, 96
        %v815 = vpop.permute.xlu0 %814
        %v816 = vsel %vm587, %v815, 0
        %818 = vmatprep.subr.mxu0 0.0
        %819 = vmatpush1.msra.mxu0 %v671
        %820 = vmatprep.subr.mxu0 0.0
        %821 = vmatpush1.msra.mxu0 %v672
        %822 = vmatprep.subr.mxu0 0.0
        %823 = vmatpush1.msra.mxu0 %v673
        %824 = vmatprep.subr.mxu0 0.0
        %825 = vmatpush1.msra.mxu0 %v674
        %826 = vmatprep.subr.mxu0 0.0
        %827 = vmatpush1.msra.mxu0 0.0
        %828 = vmatprep.subr.mxu0 0.0
        %829 = vmatpush1.msra.mxu0 0.0
        %830 = vmatprep.subr.mxu0 0.0
        %831 = vmatpush1.msra.mxu0 0.0
        %832 = vmatprep.subr.mxu0 0.0
        %833 = vmatpush1.msra.mxu0 0.0
        %834 = vmatprep.subr.mxu0 0.0
        %835 = vmatpush1.msra.mxu0 0.0
        %836 = vmatprep.subr.mxu0 0.0
        %837 = vmatpush1.msra.mxu0 0.0
        %838 = vmatprep.subr.mxu0 0.0
        %839 = vmatpush1.msra.mxu0 0.0
        %840 = vmatprep.subr.mxu0 0.0
        %841 = vmatpush1.msra.mxu0 0.0
        %842 = vmatprep.subr.mxu0 0.0
        %843 = vmatpush1.msra.mxu0 0.0
        %844 = vmatprep.subr.mxu0 0.0
        %845 = vmatpush1.msra.mxu0 0.0
        %846 = vmatprep.subr.mxu0 0.0
        %847 = vmatpush1.msra.mxu0 0.0
        %848 = vmatprep.subr.mxu0 0.0
        %849 = vmatpush1.msra.mxu0 0.0
        %850 = vmatprep.subr.mxu0 0.0
        %851 = vmatpush1.msra.mxu0 0.0
        %852 = vmatprep.subr.mxu0 0.0
        %853 = vmatpush1.msra.mxu0 0.0
        %854 = vmatprep.subr.mxu0 0.0
        %855 = vmatpush1.msra.mxu0 0.0
        %856 = vmatprep.subr.mxu0 0.0
        %857 = vmatpush1.msra.mxu0 0.0
        %858 = vmatprep.subr.mxu0 0.0
        %859 = vmatpush1.msra.mxu0 0.0
        %860 = vmatprep.subr.mxu0 0.0
        %861 = vmatpush1.msra.mxu0 0.0
        %862 = vmatprep.subr.mxu0 0.0
        %863 = vmatpush1.msra.mxu0 0.0
        %864 = vmatprep.subr.mxu0 0.0
        %865 = vmatpush1.msra.mxu0 0.0
        %866 = vmatprep.subr.mxu0 0.0
        %867 = vmatpush1.msra.mxu0 0.0
        %868 = vmatprep.subr.mxu0 0.0
        %869 = vmatpush1.msra.mxu0 0.0
        %870 = vmatprep.subr.mxu0 0.0
        %871 = vmatpush1.msra.mxu0 0.0
        %872 = vmatprep.subr.mxu0 0.0
        %873 = vmatpush1.msra.mxu0 0.0
        %874 = vmatprep.subr.mxu0 0.0
        %875 = vmatpush1.msra.mxu0 0.0
        %876 = vmatprep.subr.mxu0 0.0
        %877 = vmatpush1.msra.mxu0 0.0
        %878 = vmatprep.subr.mxu0 0.0
        %879 = vmatpush1.msra.mxu0 0.0
        %880 = vmatprep.subr.mxu0 0.0
        %881 = vmatpush1.msra.mxu0 0.0
        %882 = vmatprep.mubr.f32.mxu0 0.0
        %883 = vmatmul.mubr.f32.gmra.mrb[0].mxu0 %v816
        %v884 = vpop.f32.mrb[0].mxu0
        %v885 = vadd.f32 %v680, %v884
        %v886 = vpop.f32.mrb[0].mxu0
        %887 = vdwg.mxu0
        %v889 = vrot.slane %v885, 7
        %v892 = vadd.f32 %v661, %v889
        %v893 = vadd.f32 %v667, %v885
        %v894 = vxor.u32 %v892, 2147483648
        %v895 = vxor.u32 %v893, 2147483648
        %v896 = vmul.f32 %v894, 1.442695
        %v897 = vpow.pop %v896
        %v898 = vmul.f32 %v895, 1.442695
        %v899 = vpow.pop %v898
        %v900 = vadd.f32 %v897, 1.0
        %v901 = vadd.f32 %v899, 1.0
        %v902 = vrcp.pop %v900
        %v903 = vmul.f32 1.0, %v902
        %v904 = vrcp.pop %v901
        %v905 = vmul.f32 1.0, %v904
        %906 = vrot.lane.b32.xlu0 %v889, 64
        %v907 = vpop.permute.xlu0 %906
        %908 = vrot.lane.b32.xlu0 %v885, 64
        %v909 = vpop.permute.xlu0 %908
        %v912 = vmul.f32 %v903, %v907
        %v913 = vmul.f32 %v905, %v909
        %916 = vrot.lane.b32.xlu0 %v912, 64
        %v917 = vpop.permute.xlu0 %916
        %918 = vrot.lane.b32.xlu0 %v913, 64
        %v919 = vpop.permute.xlu0 %918
        %v922 = vadd.f32 %v661, %v917
        %v923 = vadd.f32 %v667, %v919
        %v924 = vtanh.pop %v922
        %v925 = vtanh.pop %v923
        %v926 = vsub.f32 1.0, %v903
        %v927 = vsub.f32 1.0, %v905
        %930 = vrot.lane.b32.xlu0 %v924, 96
        %v931 = vpop.permute.xlu0 %930
        %932 = vrot.lane.b32.xlu0 %v925, 96
        %v933 = vpop.permute.xlu0 %932
        %v936 = vmul.f32 %v926, %v931
        %v937 = vmul.f32 %v927, %v933
        %v938 = vrot.slane %v807, 7
        %v941 = vmul.f32 %v903, %v938
        %v942 = vmul.f32 %v905, %v811
        %v943 = vadd.f32 %v936, %v941
        %v944 = vadd.f32 %v937, %v942
        %v947 = vrot.slane %v943, 1
        %v948 = vsel %vm812, %v944, %v947
        %949 = vrot.lane.b32.xlu0 %v948, 96
        %v950 = vpop.permute.xlu0 %949
        %v951 = vsel %vm587, %v950, 0
        %953 = vmatprep.subr.mxu0 0.0
        %954 = vmatpush1.msra.mxu0 %v671
        %955 = vmatprep.subr.mxu0 0.0
        %956 = vmatpush1.msra.mxu0 %v672
        %957 = vmatprep.subr.mxu0 0.0
        %958 = vmatpush1.msra.mxu0 %v673
        %959 = vmatprep.subr.mxu0 0.0
        %960 = vmatpush1.msra.mxu0 %v674
        %961 = vmatprep.subr.mxu0 0.0
        %962 = vmatpush1.msra.mxu0 0.0
        %963 = vmatprep.subr.mxu0 0.0
        %964 = vmatpush1.msra.mxu0 0.0
        %965 = vmatprep.subr.mxu0 0.0
        %966 = vmatpush1.msra.mxu0 0.0
        %967 = vmatprep.subr.mxu0 0.0
        %968 = vmatpush1.msra.mxu0 0.0
        %969 = vmatprep.subr.mxu0 0.0
        %970 = vmatpush1.msra.mxu0 0.0
        %971 = vmatprep.subr.mxu0 0.0
        %972 = vmatpush1.msra.mxu0 0.0
        %973 = vmatprep.subr.mxu0 0.0
        %974 = vmatpush1.msra.mxu0 0.0
        %975 = vmatprep.subr.mxu0 0.0
        %976 = vmatpush1.msra.mxu0 0.0
        %977 = vmatprep.subr.mxu0 0.0
        %978 = vmatpush1.msra.mxu0 0.0
        %979 = vmatprep.subr.mxu0 0.0
        %980 = vmatpush1.msra.mxu0 0.0
        %981 = vmatprep.subr.mxu0 0.0
        %982 = vmatpush1.msra.mxu0 0.0
        %983 = vmatprep.subr.mxu0 0.0
        %984 = vmatpush1.msra.mxu0 0.0
        %985 = vmatprep.subr.mxu0 0.0
        %986 = vmatpush1.msra.mxu0 0.0
        %987 = vmatprep.subr.mxu0 0.0
        %988 = vmatpush1.msra.mxu0 0.0
        %989 = vmatprep.subr.mxu0 0.0
        %990 = vmatpush1.msra.mxu0 0.0
        %991 = vmatprep.subr.mxu0 0.0
        %992 = vmatpush1.msra.mxu0 0.0
        %993 = vmatprep.subr.mxu0 0.0
        %994 = vmatpush1.msra.mxu0 0.0
        %995 = vmatprep.subr.mxu0 0.0
        %996 = vmatpush1.msra.mxu0 0.0
        %997 = vmatprep.subr.mxu0 0.0
        %998 = vmatpush1.msra.mxu0 0.0
        %999 = vmatprep.subr.mxu0 0.0
        %1000 = vmatpush1.msra.mxu0 0.0
        %1001 = vmatprep.subr.mxu0 0.0
        %1002 = vmatpush1.msra.mxu0 0.0
        %1003 = vmatprep.subr.mxu0 0.0
        %1004 = vmatpush1.msra.mxu0 0.0
        %1005 = vmatprep.subr.mxu0 0.0
        %1006 = vmatpush1.msra.mxu0 0.0
        %1007 = vmatprep.subr.mxu0 0.0
        %1008 = vmatpush1.msra.mxu0 0.0
        %1009 = vmatprep.subr.mxu0 0.0
        %1010 = vmatpush1.msra.mxu0 0.0
        %1011 = vmatprep.subr.mxu0 0.0
        %1012 = vmatpush1.msra.mxu0 0.0
        %1013 = vmatprep.subr.mxu0 0.0
        %1014 = vmatpush1.msra.mxu0 0.0
        %1015 = vmatprep.subr.mxu0 0.0
        %1016 = vmatpush1.msra.mxu0 0.0
        %1017 = vmatprep.mubr.f32.mxu0 0.0
        %1018 = vmatmul.mubr.f32.gmra.mrb[0].mxu0 %v951
        %v1019 = vpop.f32.mrb[0].mxu0
        %v1020 = vadd.f32 %v680, %v1019
        %v1021 = vpop.f32.mrb[0].mxu0
        %1022 = vdwg.mxu0
        %v1024 = vrot.slane %v1020, 6
        %v1025 = vrot.slane %v1020, 7
        %v1028 = vadd.f32 %v661, %v1024
        %v1029 = vadd.f32 %v667, %v1025
        %v1030 = vxor.u32 %v1028, 2147483648
        %v1031 = vxor.u32 %v1029, 2147483648
        %v1032 = vmul.f32 %v1030, 1.442695
        %v1033 = vpow.pop %v1032
        %v1034 = vmul.f32 %v1031, 1.442695
        %v1035 = vpow.pop %v1034
        %v1036 = vadd.f32 %v1033, 1.0
        %v1037 = vadd.f32 %v1035, 1.0
        %v1038 = vrcp.pop %v1036
        %v1039 = vmul.f32 1.0, %v1038
        %v1040 = vrcp.pop %v1037
        %v1041 = vmul.f32 1.0, %v1040
        %1042 = vrot.lane.b32.xlu0 %v1024, 64
        %v1043 = vpop.permute.xlu0 %1042
        %1044 = vrot.lane.b32.xlu0 %v1025, 64
        %v1045 = vpop.permute.xlu0 %1044
        %v1048 = vmul.f32 %v1039, %v1043
        %v1049 = vmul.f32 %v1041, %v1045
        %1052 = vrot.lane.b32.xlu0 %v1048, 64
        %v1053 = vpop.permute.xlu0 %1052
        %1054 = vrot.lane.b32.xlu0 %v1049, 64
        %v1055 = vpop.permute.xlu0 %1054
        %v1058 = vadd.f32 %v661, %v1053
        %v1059 = vadd.f32 %v667, %v1055
        %v1060 = vtanh.pop %v1058
        %v1061 = vtanh.pop %v1059
        %v1062 = vsub.f32 1.0, %v1039
        %v1063 = vsub.f32 1.0, %v1041
        %1066 = vrot.lane.b32.xlu0 %v1060, 96
        %v1067 = vpop.permute.xlu0 %1066
        %1068 = vrot.lane.b32.xlu0 %v1061, 96
        %v1069 = vpop.permute.xlu0 %1068
        %v1072 = vmul.f32 %v1062, %v1067
        %v1073 = vmul.f32 %v1063, %v1069
        %v1074 = vrot.slane %v943, 7
        %v1075 = vrot.slane %v944, 7
        %v1078 = vmul.f32 %v1039, %v1074
        %v1079 = vmul.f32 %v1041, %v1075
        %v1080 = vadd.f32 %v1072, %v1078
        %v1081 = vadd.f32 %v1073, %v1079
        %v1084 = vrot.slane %v1080, 2
        %v1085 = vrot.slane %v1081, 1
        %v1086 = vsel %vm812, %v1085, %v1084
        %1087 = vrot.lane.b32.xlu0 %v1086, 96
        %v1088 = vpop.permute.xlu0 %1087
        %v1089 = vsel %vm587, %v1088, 0
        %1091 = vmatprep.subr.mxu0 0.0
        %1092 = vmatpush1.msra.mxu0 %v671
        %1093 = vmatprep.subr.mxu0 0.0
        %1094 = vmatpush1.msra.mxu0 %v672
        %1095 = vmatprep.subr.mxu0 0.0
        %1096 = vmatpush1.msra.mxu0 %v673
        %1097 = vmatprep.subr.mxu0 0.0
        %1098 = vmatpush1.msra.mxu0 %v674
        %1099 = vmatprep.subr.mxu0 0.0
        %1100 = vmatpush1.msra.mxu0 0.0
        %1101 = vmatprep.subr.mxu0 0.0
        %1102 = vmatpush1.msra.mxu0 0.0
        %1103 = vmatprep.subr.mxu0 0.0
        %1104 = vmatpush1.msra.mxu0 0.0
        %1105 = vmatprep.subr.mxu0 0.0
        %1106 = vmatpush1.msra.mxu0 0.0
        %1107 = vmatprep.subr.mxu0 0.0
        %1108 = vmatpush1.msra.mxu0 0.0
        %1109 = vmatprep.subr.mxu0 0.0
        %1110 = vmatpush1.msra.mxu0 0.0
        %1111 = vmatprep.subr.mxu0 0.0
        %1112 = vmatpush1.msra.mxu0 0.0
        %1113 = vmatprep.subr.mxu0 0.0
        %1114 = vmatpush1.msra.mxu0 0.0
        %1115 = vmatprep.subr.mxu0 0.0
        %1116 = vmatpush1.msra.mxu0 0.0
        %1117 = vmatprep.subr.mxu0 0.0
        %1118 = vmatpush1.msra.mxu0 0.0
        %1119 = vmatprep.subr.mxu0 0.0
        %1120 = vmatpush1.msra.mxu0 0.0
        %1121 = vmatprep.subr.mxu0 0.0
        %1122 = vmatpush1.msra.mxu0 0.0
        %1123 = vmatprep.subr.mxu0 0.0
        %1124 = vmatpush1.msra.mxu0 0.0
        %1125 = vmatprep.subr.mxu0 0.0
        %1126 = vmatpush1.msra.mxu0 0.0
        %1127 = vmatprep.subr.mxu0 0.0
        %1128 = vmatpush1.msra.mxu0 0.0
        %1129 = vmatprep.subr.mxu0 0.0
        %1130 = vmatpush1.msra.mxu0 0.0
        %1131 = vmatprep.subr.mxu0 0.0
        %1132 = vmatpush1.msra.mxu0 0.0
        %1133 = vmatprep.subr.mxu0 0.0
        %1134 = vmatpush1.msra.mxu0 0.0
        %1135 = vmatprep.subr.mxu0 0.0
        %1136 = vmatpush1.msra.mxu0 0.0
        %1137 = vmatprep.subr.mxu0 0.0
        %1138 = vmatpush1.msra.mxu0 0.0
        %1139 = vmatprep.subr.mxu0 0.0
        %1140 = vmatpush1.msra.mxu0 0.0
        %1141 = vmatprep.subr.mxu0 0.0
        %1142 = vmatpush1.msra.mxu0 0.0
        %1143 = vmatprep.subr.mxu0 0.0
        %1144 = vmatpush1.msra.mxu0 0.0
        %1145 = vmatprep.subr.mxu0 0.0
        %1146 = vmatpush1.msra.mxu0 0.0
        %1147 = vmatprep.subr.mxu0 0.0
        %1148 = vmatpush1.msra.mxu0 0.0
        %1149 = vmatprep.subr.mxu0 0.0
        %1150 = vmatpush1.msra.mxu0 0.0
        %1151 = vmatprep.subr.mxu0 0.0
        %1152 = vmatpush1.msra.mxu0 0.0
        %1153 = vmatprep.subr.mxu0 0.0
        %1154 = vmatpush1.msra.mxu0 0.0
        %1155 = vmatprep.mubr.f32.mxu0 0.0
        %1156 = vmatmul.mubr.f32.gmra.mrb[0].mxu0 %v1089
        %v1157 = vpop.f32.mrb[0].mxu0
        %v1158 = vadd.f32 %v680, %v1157
        %v1159 = vpop.f32.mrb[0].mxu0
        %1160 = vdwg.mxu0
        %v1162 = vrot.slane %v1158, 5
        %v1163 = vrot.slane %v1158, 6
        %v1166 = vadd.f32 %v661, %v1162
        %v1167 = vadd.f32 %v667, %v1163
        %v1168 = vxor.u32 %v1166, 2147483648
        %v1169 = vxor.u32 %v1167, 2147483648
        %v1170 = vmul.f32 %v1168, 1.442695
        %v1171 = vpow.pop %v1170
        %v1172 = vmul.f32 %v1169, 1.442695
        %v1173 = vpow.pop %v1172
        %v1174 = vadd.f32 %v1171, 1.0
        %v1175 = vadd.f32 %v1173, 1.0
        %v1176 = vrcp.pop %v1174
        %v1177 = vmul.f32 1.0, %v1176
        %v1178 = vrcp.pop %v1175
        %v1179 = vmul.f32 1.0, %v1178
        %1180 = vrot.lane.b32.xlu0 %v1162, 64
        %v1181 = vpop.permute.xlu0 %1180
        %1182 = vrot.lane.b32.xlu0 %v1163, 64
        %v1183 = vpop.permute.xlu0 %1182
        %v1186 = vmul.f32 %v1177, %v1181
        %v1187 = vmul.f32 %v1179, %v1183
        %1190 = vrot.lane.b32.xlu0 %v1186, 64
        %v1191 = vpop.permute.xlu0 %1190
        %1192 = vrot.lane.b32.xlu0 %v1187, 64
        %v1193 = vpop.permute.xlu0 %1192
        %v1196 = vadd.f32 %v661, %v1191
        %v1197 = vadd.f32 %v667, %v1193
        %v1198 = vtanh.pop %v1196
        %v1199 = vtanh.pop %v1197
        %v1200 = vsub.f32 1.0, %v1177
        %v1201 = vsub.f32 1.0, %v1179
        %1204 = vrot.lane.b32.xlu0 %v1198, 96
        %v1205 = vpop.permute.xlu0 %1204
        %1206 = vrot.lane.b32.xlu0 %v1199, 96
        %v1207 = vpop.permute.xlu0 %1206
        %v1210 = vmul.f32 %v1200, %v1205
        %v1211 = vmul.f32 %v1201, %v1207
        %v1212 = vrot.slane %v1080, 7
        %v1213 = vrot.slane %v1081, 7
        %v1216 = vmul.f32 %v1177, %v1212
        %v1217 = vmul.f32 %v1179, %v1213
        %v1218 = vadd.f32 %v1210, %v1216
        %v1219 = vadd.f32 %v1211, %v1217
        %v1222 = vrot.slane %v1218, 3
        %v1223 = vrot.slane %v1219, 2
        %v1224 = vsel %vm812, %v1223, %v1222
        %1225 = vrot.lane.b32.xlu0 %v1224, 96
        %v1226 = vpop.permute.xlu0 %1225
        %v1227 = vsel %vm587, %v1226, 0
        %1229 = vmatprep.subr.mxu0 0.0
        %1230 = vmatpush1.msra.mxu0 %v671
        %1231 = vmatprep.subr.mxu0 0.0
        %1232 = vmatpush1.msra.mxu0 %v672
        %1233 = vmatprep.subr.mxu0 0.0
        %1234 = vmatpush1.msra.mxu0 %v673
        %1235 = vmatprep.subr.mxu0 0.0
        %1236 = vmatpush1.msra.mxu0 %v674
        %1237 = vmatprep.subr.mxu0 0.0
        %1238 = vmatpush1.msra.mxu0 0.0
        %1239 = vmatprep.subr.mxu0 0.0
        %1240 = vmatpush1.msra.mxu0 0.0
        %1241 = vmatprep.subr.mxu0 0.0
        %1242 = vmatpush1.msra.mxu0 0.0
        %1243 = vmatprep.subr.mxu0 0.0
        %1244 = vmatpush1.msra.mxu0 0.0
        %1245 = vmatprep.subr.mxu0 0.0
        %1246 = vmatpush1.msra.mxu0 0.0
        %1247 = vmatprep.subr.mxu0 0.0
        %1248 = vmatpush1.msra.mxu0 0.0
        %1249 = vmatprep.subr.mxu0 0.0
        %1250 = vmatpush1.msra.mxu0 0.0
        %1251 = vmatprep.subr.mxu0 0.0
        %1252 = vmatpush1.msra.mxu0 0.0
        %1253 = vmatprep.subr.mxu0 0.0
        %1254 = vmatpush1.msra.mxu0 0.0
        %1255 = vmatprep.subr.mxu0 0.0
        %1256 = vmatpush1.msra.mxu0 0.0
        %1257 = vmatprep.subr.mxu0 0.0
        %1258 = vmatpush1.msra.mxu0 0.0
        %1259 = vmatprep.subr.mxu0 0.0
        %1260 = vmatpush1.msra.mxu0 0.0
        %1261 = vmatprep.subr.mxu0 0.0
        %1262 = vmatpush1.msra.mxu0 0.0
        %1263 = vmatprep.subr.mxu0 0.0
        %1264 = vmatpush1.msra.mxu0 0.0
        %1265 = vmatprep.subr.mxu0 0.0
        %1266 = vmatpush1.msra.mxu0 0.0
        %1267 = vmatprep.subr.mxu0 0.0
        %1268 = vmatpush1.msra.mxu0 0.0
        %1269 = vmatprep.subr.mxu0 0.0
        %1270 = vmatpush1.msra.mxu0 0.0
        %1271 = vmatprep.subr.mxu0 0.0
        %1272 = vmatpush1.msra.mxu0 0.0
        %1273 = vmatprep.subr.mxu0 0.0
        %1274 = vmatpush1.msra.mxu0 0.0
        %1275 = vmatprep.subr.mxu0 0.0
        %1276 = vmatpush1.msra.mxu0 0.0
        %1277 = vmatprep.subr.mxu0 0.0
        %1278 = vmatpush1.msra.mxu0 0.0
        %1279 = vmatprep.subr.mxu0 0.0
        %1280 = vmatpush1.msra.mxu0 0.0
        %1281 = vmatprep.subr.mxu0 0.0
        %1282 = vmatpush1.msra.mxu0 0.0
        %1283 = vmatprep.subr.mxu0 0.0
        %1284 = vmatpush1.msra.mxu0 0.0
        %1285 = vmatprep.subr.mxu0 0.0
        %1286 = vmatpush1.msra.mxu0 0.0
        %1287 = vmatprep.subr.mxu0 0.0
        %1288 = vmatpush1.msra.mxu0 0.0
        %1289 = vmatprep.subr.mxu0 0.0
        %1290 = vmatpush1.msra.mxu0 0.0
        %1291 = vmatprep.subr.mxu0 0.0
        %1292 = vmatpush1.msra.mxu0 0.0
        %1293 = vmatprep.mubr.f32.mxu0 0.0
        %1294 = vmatmul.mubr.f32.gmra.mrb[0].mxu0 %v1227
        %v1295 = vpop.f32.mrb[0].mxu0
        %v1296 = vadd.f32 %v680, %v1295
        %v1297 = vpop.f32.mrb[0].mxu0
        %1298 = vdwg.mxu0
        %v1300 = vrot.slane %v1296, 4
        %v1301 = vrot.slane %v1296, 5
        %v1304 = vadd.f32 %v661, %v1300
        %v1305 = vadd.f32 %v667, %v1301
        %v1306 = vxor.u32 %v1304, 2147483648
        %v1307 = vxor.u32 %v1305, 2147483648
        %v1308 = vmul.f32 %v1306, 1.442695
        %v1309 = vpow.pop %v1308
        %v1310 = vmul.f32 %v1307, 1.442695
        %v1311 = vpow.pop %v1310
        %v1312 = vadd.f32 %v1309, 1.0
        %v1313 = vadd.f32 %v1311, 1.0
        %v1314 = vrcp.pop %v1312
        %v1315 = vmul.f32 1.0, %v1314
        %v1316 = vrcp.pop %v1313
        %v1317 = vmul.f32 1.0, %v1316
        %1318 = vrot.lane.b32.xlu0 %v1300, 64
        %v1319 = vpop.permute.xlu0 %1318
        %1320 = vrot.lane.b32.xlu0 %v1301, 64
        %v1321 = vpop.permute.xlu0 %1320
        %v1324 = vmul.f32 %v1315, %v1319
        %v1325 = vmul.f32 %v1317, %v1321
        %1328 = vrot.lane.b32.xlu0 %v1324, 64
        %v1329 = vpop.permute.xlu0 %1328
        %1330 = vrot.lane.b32.xlu0 %v1325, 64
        %v1331 = vpop.permute.xlu0 %1330
        %v1334 = vadd.f32 %v661, %v1329
        %v1335 = vadd.f32 %v667, %v1331
        %v1336 = vtanh.pop %v1334
        %v1337 = vtanh.pop %v1335
        %v1338 = vsub.f32 1.0, %v1315
        %v1339 = vsub.f32 1.0, %v1317
        %1342 = vrot.lane.b32.xlu0 %v1336, 96
        %v1343 = vpop.permute.xlu0 %1342
        %1344 = vrot.lane.b32.xlu0 %v1337, 96
        %v1345 = vpop.permute.xlu0 %1344
        %v1348 = vmul.f32 %v1338, %v1343
        %v1349 = vmul.f32 %v1339, %v1345
        %v1350 = vrot.slane %v1218, 7
        %v1351 = vrot.slane %v1219, 7
        %v1354 = vmul.f32 %v1315, %v1350
        %v1355 = vmul.f32 %v1317, %v1351
        %v1356 = vadd.f32 %v1348, %v1354
        %v1357 = vadd.f32 %v1349, %v1355
        %v1360 = vrot.slane %v1356, 4
        %v1361 = vrot.slane %v1357, 3
        %v1362 = vsel %vm812, %v1361, %v1360
        %1363 = vrot.lane.b32.xlu0 %v1362, 96
        %v1364 = vpop.permute.xlu0 %1363
        %v1365 = vsel %vm587, %v1364, 0
        %1367 = vmatprep.subr.mxu0 0.0
        %1368 = vmatpush1.msra.mxu0 %v671
        %1369 = vmatprep.subr.mxu0 0.0
        %1370 = vmatpush1.msra.mxu0 %v672
        %1371 = vmatprep.subr.mxu0 0.0
        %1372 = vmatpush1.msra.mxu0 %v673
        %1373 = vmatprep.subr.mxu0 0.0
        %1374 = vmatpush1.msra.mxu0 %v674
        %1375 = vmatprep.subr.mxu0 0.0
        %1376 = vmatpush1.msra.mxu0 0.0
        %1377 = vmatprep.subr.mxu0 0.0
        %1378 = vmatpush1.msra.mxu0 0.0
        %1379 = vmatprep.subr.mxu0 0.0
        %1380 = vmatpush1.msra.mxu0 0.0
        %1381 = vmatprep.subr.mxu0 0.0
        %1382 = vmatpush1.msra.mxu0 0.0
        %1383 = vmatprep.subr.mxu0 0.0
        %1384 = vmatpush1.msra.mxu0 0.0
        %1385 = vmatprep.subr.mxu0 0.0
        %1386 = vmatpush1.msra.mxu0 0.0
        %1387 = vmatprep.subr.mxu0 0.0
        %1388 = vmatpush1.msra.mxu0 0.0
        %1389 = vmatprep.subr.mxu0 0.0
        %1390 = vmatpush1.msra.mxu0 0.0
        %1391 = vmatprep.subr.mxu0 0.0
        %1392 = vmatpush1.msra.mxu0 0.0
        %1393 = vmatprep.subr.mxu0 0.0
        %1394 = vmatpush1.msra.mxu0 0.0
        %1395 = vmatprep.subr.mxu0 0.0
        %1396 = vmatpush1.msra.mxu0 0.0
        %1397 = vmatprep.subr.mxu0 0.0
        %1398 = vmatpush1.msra.mxu0 0.0
        %1399 = vmatprep.subr.mxu0 0.0
        %1400 = vmatpush1.msra.mxu0 0.0
        %1401 = vmatprep.subr.mxu0 0.0
        %1402 = vmatpush1.msra.mxu0 0.0
        %1403 = vmatprep.subr.mxu0 0.0
        %1404 = vmatpush1.msra.mxu0 0.0
        %1405 = vmatprep.subr.mxu0 0.0
        %1406 = vmatpush1.msra.mxu0 0.0
        %1407 = vmatprep.subr.mxu0 0.0
        %1408 = vmatpush1.msra.mxu0 0.0
        %1409 = vmatprep.subr.mxu0 0.0
        %1410 = vmatpush1.msra.mxu0 0.0
        %1411 = vmatprep.subr.mxu0 0.0
        %1412 = vmatpush1.msra.mxu0 0.0
        %1413 = vmatprep.subr.mxu0 0.0
        %1414 = vmatpush1.msra.mxu0 0.0
        %1415 = vmatprep.subr.mxu0 0.0
        %1416 = vmatpush1.msra.mxu0 0.0
        %1417 = vmatprep.subr.mxu0 0.0
        %1418 = vmatpush1.msra.mxu0 0.0
        %1419 = vmatprep.subr.mxu0 0.0
        %1420 = vmatpush1.msra.mxu0 0.0
        %1421 = vmatprep.subr.mxu0 0.0
        %1422 = vmatpush1.msra.mxu0 0.0
        %1423 = vmatprep.subr.mxu0 0.0
        %1424 = vmatpush1.msra.mxu0 0.0
        %1425 = vmatprep.subr.mxu0 0.0
        %1426 = vmatpush1.msra.mxu0 0.0
        %1427 = vmatprep.subr.mxu0 0.0
        %1428 = vmatpush1.msra.mxu0 0.0
        %1429 = vmatprep.subr.mxu0 0.0
        %1430 = vmatpush1.msra.mxu0 0.0
        %1431 = vmatprep.mubr.f32.mxu0 0.0
        %1432 = vmatmul.mubr.f32.gmra.mrb[0].mxu0 %v1365
        %v1433 = vpop.f32.mrb[0].mxu0
        %v1434 = vadd.f32 %v680, %v1433
        %v1435 = vpop.f32.mrb[0].mxu0
        %1436 = vdwg.mxu0
        %v1438 = vrot.slane %v1434, 3
        %v1439 = vrot.slane %v1434, 4
        %v1442 = vadd.f32 %v661, %v1438
        %v1443 = vadd.f32 %v667, %v1439
        %v1444 = vxor.u32 %v1442, 2147483648
        %v1445 = vxor.u32 %v1443, 2147483648
        %v1446 = vmul.f32 %v1444, 1.442695
        %v1447 = vpow.pop %v1446
        %v1448 = vmul.f32 %v1445, 1.442695
        %v1449 = vpow.pop %v1448
        %v1450 = vadd.f32 %v1447, 1.0
        %v1451 = vadd.f32 %v1449, 1.0
        %v1452 = vrcp.pop %v1450
        %v1453 = vmul.f32 1.0, %v1452
        %v1454 = vrcp.pop %v1451
        %v1455 = vmul.f32 1.0, %v1454
        %1456 = vrot.lane.b32.xlu0 %v1438, 64
        %v1457 = vpop.permute.xlu0 %1456
        %1458 = vrot.lane.b32.xlu0 %v1439, 64
        %v1459 = vpop.permute.xlu0 %1458
        %v1462 = vmul.f32 %v1453, %v1457
        %v1463 = vmul.f32 %v1455, %v1459
        %1466 = vrot.lane.b32.xlu0 %v1462, 64
        %v1467 = vpop.permute.xlu0 %1466
        %1468 = vrot.lane.b32.xlu0 %v1463, 64
        %v1469 = vpop.permute.xlu0 %1468
        %v1472 = vadd.f32 %v661, %v1467
        %v1473 = vadd.f32 %v667, %v1469
        %v1474 = vtanh.pop %v1472
        %v1475 = vtanh.pop %v1473
        %v1476 = vsub.f32 1.0, %v1453
        %v1477 = vsub.f32 1.0, %v1455
        %1480 = vrot.lane.b32.xlu0 %v1474, 96
        %v1481 = vpop.permute.xlu0 %1480
        %1482 = vrot.lane.b32.xlu0 %v1475, 96
        %v1483 = vpop.permute.xlu0 %1482
        %v1486 = vmul.f32 %v1476, %v1481
        %v1487 = vmul.f32 %v1477, %v1483
        %v1488 = vrot.slane %v1356, 7
        %v1489 = vrot.slane %v1357, 7
        %v1492 = vmul.f32 %v1453, %v1488
        %v1493 = vmul.f32 %v1455, %v1489
        %v1494 = vadd.f32 %v1486, %v1492
        %v1495 = vadd.f32 %v1487, %v1493
        %v1498 = vrot.slane %v1494, 5
        %v1499 = vrot.slane %v1495, 4
        %v1500 = vsel %vm812, %v1499, %v1498
        %1501 = vrot.lane.b32.xlu0 %v1500, 96
        %v1502 = vpop.permute.xlu0 %1501
        %v1503 = vsel %vm587, %v1502, 0
        %1505 = vmatprep.subr.mxu0 0.0
        %1506 = vmatpush1.msra.mxu0 %v671
        %1507 = vmatprep.subr.mxu0 0.0
        %1508 = vmatpush1.msra.mxu0 %v672
        %1509 = vmatprep.subr.mxu0 0.0
        %1510 = vmatpush1.msra.mxu0 %v673
        %1511 = vmatprep.subr.mxu0 0.0
        %1512 = vmatpush1.msra.mxu0 %v674
        %1513 = vmatprep.subr.mxu0 0.0
        %1514 = vmatpush1.msra.mxu0 0.0
        %1515 = vmatprep.subr.mxu0 0.0
        %1516 = vmatpush1.msra.mxu0 0.0
        %1517 = vmatprep.subr.mxu0 0.0
        %1518 = vmatpush1.msra.mxu0 0.0
        %1519 = vmatprep.subr.mxu0 0.0
        %1520 = vmatpush1.msra.mxu0 0.0
        %1521 = vmatprep.subr.mxu0 0.0
        %1522 = vmatpush1.msra.mxu0 0.0
        %1523 = vmatprep.subr.mxu0 0.0
        %1524 = vmatpush1.msra.mxu0 0.0
        %1525 = vmatprep.subr.mxu0 0.0
        %1526 = vmatpush1.msra.mxu0 0.0
        %1527 = vmatprep.subr.mxu0 0.0
        %1528 = vmatpush1.msra.mxu0 0.0
        %1529 = vmatprep.subr.mxu0 0.0
        %1530 = vmatpush1.msra.mxu0 0.0
        %1531 = vmatprep.subr.mxu0 0.0
        %1532 = vmatpush1.msra.mxu0 0.0
        %1533 = vmatprep.subr.mxu0 0.0
        %1534 = vmatpush1.msra.mxu0 0.0
        %1535 = vmatprep.subr.mxu0 0.0
        %1536 = vmatpush1.msra.mxu0 0.0
        %1537 = vmatprep.subr.mxu0 0.0
        %1538 = vmatpush1.msra.mxu0 0.0
        %1539 = vmatprep.subr.mxu0 0.0
        %1540 = vmatpush1.msra.mxu0 0.0
        %1541 = vmatprep.subr.mxu0 0.0
        %1542 = vmatpush1.msra.mxu0 0.0
        %1543 = vmatprep.subr.mxu0 0.0
        %1544 = vmatpush1.msra.mxu0 0.0
        %1545 = vmatprep.subr.mxu0 0.0
        %1546 = vmatpush1.msra.mxu0 0.0
        %1547 = vmatprep.subr.mxu0 0.0
        %1548 = vmatpush1.msra.mxu0 0.0
        %1549 = vmatprep.subr.mxu0 0.0
        %1550 = vmatpush1.msra.mxu0 0.0
        %1551 = vmatprep.subr.mxu0 0.0
        %1552 = vmatpush1.msra.mxu0 0.0
        %1553 = vmatprep.subr.mxu0 0.0
        %1554 = vmatpush1.msra.mxu0 0.0
        %1555 = vmatprep.subr.mxu0 0.0
        %1556 = vmatpush1.msra.mxu0 0.0
        %1557 = vmatprep.subr.mxu0 0.0
        %1558 = vmatpush1.msra.mxu0 0.0
        %1559 = vmatprep.subr.mxu0 0.0
        %1560 = vmatpush1.msra.mxu0 0.0
        %1561 = vmatprep.subr.mxu0 0.0
        %1562 = vmatpush1.msra.mxu0 0.0
        %1563 = vmatprep.subr.mxu0 0.0
        %1564 = vmatpush1.msra.mxu0 0.0
        %1565 = vmatprep.subr.mxu0 0.0
        %1566 = vmatpush1.msra.mxu0 0.0
        %1567 = vmatprep.subr.mxu0 0.0
        %1568 = vmatpush1.msra.mxu0 0.0
        %1569 = vmatprep.mubr.f32.mxu0 0.0
        %1570 = vmatmul.mubr.f32.gmra.mrb[0].mxu0 %v1503
        %v1571 = vpop.f32.mrb[0].mxu0
        %v1572 = vadd.f32 %v680, %v1571
        %v1573 = vpop.f32.mrb[0].mxu0
        %1574 = vdwg.mxu0
        %v1576 = vrot.slane %v1572, 2
        %v1577 = vrot.slane %v1572, 3
        %v1580 = vadd.f32 %v661, %v1576
        %v1581 = vadd.f32 %v667, %v1577
        %v1582 = vxor.u32 %v1580, 2147483648
        %v1583 = vxor.u32 %v1581, 2147483648
        %v1584 = vmul.f32 %v1582, 1.442695
        %v1585 = vpow.pop %v1584
        %v1586 = vmul.f32 %v1583, 1.442695
        %v1587 = vpow.pop %v1586
        %v1588 = vadd.f32 %v1585, 1.0
        %v1589 = vadd.f32 %v1587, 1.0
        %v1590 = vrcp.pop %v1588
        %v1591 = vmul.f32 1.0, %v1590
        %v1592 = vrcp.pop %v1589
        %v1593 = vmul.f32 1.0, %v1592
        %1594 = vrot.lane.b32.xlu0 %v1576, 64
        %v1595 = vpop.permute.xlu0 %1594
        %1596 = vrot.lane.b32.xlu0 %v1577, 64
        %v1597 = vpop.permute.xlu0 %1596
        %v1600 = vmul.f32 %v1591, %v1595
        %v1601 = vmul.f32 %v1593, %v1597
        %1604 = vrot.lane.b32.xlu0 %v1600, 64
        %v1605 = vpop.permute.xlu0 %1604
        %1606 = vrot.lane.b32.xlu0 %v1601, 64
        %v1607 = vpop.permute.xlu0 %1606
        %v1610 = vadd.f32 %v661, %v1605
        %v1611 = vadd.f32 %v667, %v1607
        %v1612 = vtanh.pop %v1610
        %v1613 = vtanh.pop %v1611
        %v1614 = vsub.f32 1.0, %v1591
        %v1615 = vsub.f32 1.0, %v1593
        %1618 = vrot.lane.b32.xlu0 %v1612, 96
        %v1619 = vpop.permute.xlu0 %1618
        %1620 = vrot.lane.b32.xlu0 %v1613, 96
        %v1621 = vpop.permute.xlu0 %1620
        %v1624 = vmul.f32 %v1614, %v1619
        %v1625 = vmul.f32 %v1615, %v1621
        %v1626 = vrot.slane %v1494, 7
        %v1627 = vrot.slane %v1495, 7
        %v1630 = vmul.f32 %v1591, %v1626
        %v1631 = vmul.f32 %v1593, %v1627
        %v1632 = vadd.f32 %v1624, %v1630
        %v1633 = vadd.f32 %v1625, %v1631
        %v1636 = vrot.slane %v1632, 6
        %v1637 = vrot.slane %v1633, 5
        %v1638 = vsel %vm812, %v1637, %v1636
        %1639 = vrot.lane.b32.xlu0 %v1638, 96
        %v1640 = vpop.permute.xlu0 %1639
        %v1641 = vsel %vm587, %v1640, 0
        %1643 = vmatprep.subr.mxu0 0.0
        %1644 = vmatpush1.msra.mxu0 %v671
        %1645 = vmatprep.subr.mxu0 0.0
        %1646 = vmatpush1.msra.mxu0 %v672
        %1647 = vmatprep.subr.mxu0 0.0
        %1648 = vmatpush1.msra.mxu0 %v673
        %1649 = vmatprep.subr.mxu0 0.0
        %1650 = vmatpush1.msra.mxu0 %v674
        %1651 = vmatprep.subr.mxu0 0.0
        %1652 = vmatpush1.msra.mxu0 0.0
        %1653 = vmatprep.subr.mxu0 0.0
        %1654 = vmatpush1.msra.mxu0 0.0
        %1655 = vmatprep.subr.mxu0 0.0
        %1656 = vmatpush1.msra.mxu0 0.0
        %1657 = vmatprep.subr.mxu0 0.0
        %1658 = vmatpush1.msra.mxu0 0.0
        %1659 = vmatprep.subr.mxu0 0.0
        %1660 = vmatpush1.msra.mxu0 0.0
        %1661 = vmatprep.subr.mxu0 0.0
        %1662 = vmatpush1.msra.mxu0 0.0
        %1663 = vmatprep.subr.mxu0 0.0
        %1664 = vmatpush1.msra.mxu0 0.0
        %1665 = vmatprep.subr.mxu0 0.0
        %1666 = vmatpush1.msra.mxu0 0.0
        %1667 = vmatprep.subr.mxu0 0.0
        %1668 = vmatpush1.msra.mxu0 0.0
        %1669 = vmatprep.subr.mxu0 0.0
        %1670 = vmatpush1.msra.mxu0 0.0
        %1671 = vmatprep.subr.mxu0 0.0
        %1672 = vmatpush1.msra.mxu0 0.0
        %1673 = vmatprep.subr.mxu0 0.0
        %1674 = vmatpush1.msra.mxu0 0.0
        %1675 = vmatprep.subr.mxu0 0.0
        %1676 = vmatpush1.msra.mxu0 0.0
        %1677 = vmatprep.subr.mxu0 0.0
        %1678 = vmatpush1.msra.mxu0 0.0
        %1679 = vmatprep.subr.mxu0 0.0
        %1680 = vmatpush1.msra.mxu0 0.0
        %1681 = vmatprep.subr.mxu0 0.0
        %1682 = vmatpush1.msra.mxu0 0.0
        %1683 = vmatprep.subr.mxu0 0.0
        %1684 = vmatpush1.msra.mxu0 0.0
        %1685 = vmatprep.subr.mxu0 0.0
        %1686 = vmatpush1.msra.mxu0 0.0
        %1687 = vmatprep.subr.mxu0 0.0
        %1688 = vmatpush1.msra.mxu0 0.0
        %1689 = vmatprep.subr.mxu0 0.0
        %1690 = vmatpush1.msra.mxu0 0.0
        %1691 = vmatprep.subr.mxu0 0.0
        %1692 = vmatpush1.msra.mxu0 0.0
        %1693 = vmatprep.subr.mxu0 0.0
        %1694 = vmatpush1.msra.mxu0 0.0
        %1695 = vmatprep.subr.mxu0 0.0
        %1696 = vmatpush1.msra.mxu0 0.0
        %1697 = vmatprep.subr.mxu0 0.0
        %1698 = vmatpush1.msra.mxu0 0.0
        %1699 = vmatprep.subr.mxu0 0.0
        %1700 = vmatpush1.msra.mxu0 0.0
        %1701 = vmatprep.subr.mxu0 0.0
        %1702 = vmatpush1.msra.mxu0 0.0
        %1703 = vmatprep.subr.mxu0 0.0
        %1704 = vmatpush1.msra.mxu0 0.0
        %1705 = vmatprep.subr.mxu0 0.0
        %1706 = vmatpush1.msra.mxu0 0.0
        %1707 = vmatprep.mubr.f32.mxu0 0.0
        %1708 = vmatmul.mubr.f32.gmra.mrb[0].mxu0 %v1641
        %v1709 = vpop.f32.mrb[0].mxu0
        %v1710 = vadd.f32 %v680, %v1709
        %v1711 = vpop.f32.mrb[0].mxu0
        %1712 = vdwg.mxu0
        %v1714 = vrot.slane %v1710, 1
        %v1715 = vrot.slane %v1710, 2
        %v1718 = vadd.f32 %v661, %v1714
        %v1719 = vadd.f32 %v667, %v1715
        %v1720 = vxor.u32 %v1718, 2147483648
        %v1721 = vxor.u32 %v1719, 2147483648
        %v1722 = vmul.f32 %v1720, 1.442695
        %v1723 = vpow.pop %v1722
        %v1724 = vmul.f32 %v1721, 1.442695
        %v1725 = vpow.pop %v1724
        %v1726 = vadd.f32 %v1723, 1.0
        %v1727 = vadd.f32 %v1725, 1.0
        %v1728 = vrcp.pop %v1726
        %v1729 = vmul.f32 1.0, %v1728
        %v1730 = vrcp.pop %v1727
        %v1731 = vmul.f32 1.0, %v1730
        %1732 = vrot.lane.b32.xlu0 %v1714, 64
        %v1733 = vpop.permute.xlu0 %1732
        %1734 = vrot.lane.b32.xlu0 %v1715, 64
        %v1735 = vpop.permute.xlu0 %1734
        %v1738 = vmul.f32 %v1729, %v1733
        %v1739 = vmul.f32 %v1731, %v1735
        %1742 = vrot.lane.b32.xlu0 %v1738, 64
        %v1743 = vpop.permute.xlu0 %1742
        %1744 = vrot.lane.b32.xlu0 %v1739, 64
        %v1745 = vpop.permute.xlu0 %1744
        %v1748 = vadd.f32 %v661, %v1743
        %v1749 = vadd.f32 %v667, %v1745
        %v1750 = vtanh.pop %v1748
        %v1751 = vtanh.pop %v1749
        %v1752 = vsub.f32 1.0, %v1729
        %v1753 = vsub.f32 1.0, %v1731
        %1756 = vrot.lane.b32.xlu0 %v1750, 96
        %v1757 = vpop.permute.xlu0 %1756
        %1758 = vrot.lane.b32.xlu0 %v1751, 96
        %v1759 = vpop.permute.xlu0 %1758
        %v1762 = vmul.f32 %v1752, %v1757
        %v1763 = vmul.f32 %v1753, %v1759
        %v1764 = vrot.slane %v1632, 7
        %v1765 = vrot.slane %v1633, 7
        %v1768 = vmul.f32 %v1729, %v1764
        %v1769 = vmul.f32 %v1731, %v1765
        %v1770 = vadd.f32 %v1762, %v1768
        %v1771 = vadd.f32 %v1763, %v1769
        %vm1772 = vcmask 1040384
        %v1773 = vsel %vm1772, %v807, %v943
        %v1774 = vsel %vm1772, %v808, %v944
        %vm1775 = vcmask 1041408
        %v1776 = vsel %vm1775, %v1773, %v1080
        %v1777 = vsel %vm1775, %v1774, %v1081
        %vm1778 = vcmask 1042432
        %v1779 = vsel %vm1778, %v1776, %v1218
        %v1780 = vsel %vm1778, %v1777, %v1219
        %vm1781 = vcmask 1043456
        %v1782 = vsel %vm1781, %v1779, %v1356
        %v1783 = vsel %vm1781, %v1780, %v1357
        %vm1784 = vcmask 1044480
        %v1785 = vsel %vm1784, %v1782, %v1494
        %v1786 = vsel %vm1784, %v1783, %v1495
        %vm1787 = vcmask 1045504
        %v1788 = vsel %vm1787, %v1785, %v1632
        %v1789 = vsel %vm1787, %v1786, %v1633
        %vm1790 = vcmask 1046528
        %v1791 = vsel %vm1790, %v1788, %v1770
        %v1792 = vsel %vm1790, %v1789, %v1771
        %vm1793 = vcmp.ne.f32.partialorder %v563, 0.0
        %vm1794 = vcmp.ne.f32.partialorder %v564, 0.0
        %vm1795 = vcmp.ne.f32.partialorder %v565, 0.0
        %vm1796 = vcmp.ne.f32.partialorder %v566, 0.0
        %v1797 = vsel %vm1793, 1, 0
        %v1798 = vsel %vm1794, 1, 0
        %1799 = vset.pattern.permute.xlu0 0
        %1800 = vperm.xlu0 %1799, %v1797
        %v1801 = vpop.permute.xlu0 %1800
        %1802 = vset.pattern.permute.xlu0 0
        %1803 = vperm.xlu0 %1802, %v1798
        %v1804 = vpop.permute.xlu0 %1803
        %vm1805 = vcmp.eq.s32.totalorder %v1801, 1
        %vm1806 = vcmp.eq.s32.totalorder %v1804, 1
        %v1807 = vsel %vm1795, 1, 0
        %v1808 = vsel %vm1796, 1, 0
        %v1809 = vlaneseq
        %v1810 = vshrl.u32 %v1809, 7
        %v1811 = vsub.s32 0, %v1810
        %v1812 = vrot.slane %v1807, %v1811
        %v1813 = vlaneseq
        %v1814 = vshrl.u32 %v1813, 7
        %v1815 = vsub.s32 0, %v1814
        %v1816 = vrot.slane %v1808, %v1815
        %vm1817 = vcmp.eq.s32.totalorder %v1812, 1
        %vm1818 = vcmp.eq.s32.totalorder %v1816, 1
        %vm1819 = vmand %vm1805, %vm1817
        %vm1820 = vmand %vm1806, %vm1818
        %1822 = vrot.lane.b32.xlu0 %v661, 32
        %v1823 = vpop.permute.xlu0 %1822
        %vm1824 = vcmask 64512
        %v1825 = vsel %vm1824, %v1823, 0
        %v1828 = vsel %vm1824, %v663, 0
        %1830 = vmatprep.subr.mxu0 0.0
        %1831 = vmatpush1.xpose.msra.mxu0 %v1828
        %1832 = vmatprep.subr.mxu0 0.0
        %1833 = vmatpush1.xpose.msra.mxu0 0.0
        %1834 = vmatprep.subr.mxu0 0.0
        %1835 = vmatpush1.xpose.msra.mxu0 0.0
        %1836 = vmatprep.subr.mxu0 0.0
        %1837 = vmatpush1.xpose.msra.mxu0 0.0
        %1838 = vmatprep.subr.mxu0 0.0
        %1839 = vmatpush1.xpose.msra.mxu0 0.0
        %1840 = vmatprep.subr.mxu0 0.0
        %1841 = vmatpush1.xpose.msra.mxu0 0.0
        %1842 = vmatprep.subr.mxu0 0.0
        %1843 = vmatpush1.xpose.msra.mxu0 0.0
        %1844 = vmatprep.subr.mxu0 0.0
        %1845 = vmatpush1.xpose.msra.mxu0 0.0
        %1846 = vmatprep.subr.mxu0 0.0
        %1847 = vmatpush1.xpose.msra.mxu0 0.0
        %1848 = vmatprep.subr.mxu0 0.0
        %1849 = vmatpush1.xpose.msra.mxu0 0.0
        %1850 = vmatprep.subr.mxu0 0.0
        %1851 = vmatpush1.xpose.msra.mxu0 0.0
        %1852 = vmatprep.subr.mxu0 0.0
        %1853 = vmatpush1.xpose.msra.mxu0 0.0
        %1854 = vmatprep.subr.mxu0 0.0
        %1855 = vmatpush1.xpose.msra.mxu0 0.0
        %1856 = vmatprep.subr.mxu0 0.0
        %1857 = vmatpush1.xpose.msra.mxu0 0.0
        %1858 = vmatprep.subr.mxu0 0.0
        %1859 = vmatpush1.xpose.msra.mxu0 0.0
        %1860 = vmatprep.subr.mxu0 0.0
        %1861 = vmatpush1.xpose.msra.mxu0 0.0
        %1862 = vmatprep.subr.mxu0 0.0
        %1863 = vmatpush1.xpose.msra.mxu0 0.0
        %1864 = vmatprep.subr.mxu0 0.0
        %1865 = vmatpush1.xpose.msra.mxu0 0.0
        %1866 = vmatprep.subr.mxu0 0.0
        %1867 = vmatpush1.xpose.msra.mxu0 0.0
        %1868 = vmatprep.subr.mxu0 0.0
        %1869 = vmatpush1.xpose.msra.mxu0 0.0
        %1870 = vmatprep.subr.mxu0 0.0
        %1871 = vmatpush1.xpose.msra.mxu0 0.0
        %1872 = vmatprep.subr.mxu0 0.0
        %1873 = vmatpush1.xpose.msra.mxu0 0.0
        %1874 = vmatprep.subr.mxu0 0.0
        %1875 = vmatpush1.xpose.msra.mxu0 0.0
        %1876 = vmatprep.subr.mxu0 0.0
        %1877 = vmatpush1.xpose.msra.mxu0 0.0
        %1878 = vmatprep.subr.mxu0 0.0
        %1879 = vmatpush1.xpose.msra.mxu0 0.0
        %1880 = vmatprep.subr.mxu0 0.0
        %1881 = vmatpush1.xpose.msra.mxu0 0.0
        %1882 = vmatprep.subr.mxu0 0.0
        %1883 = vmatpush1.xpose.msra.mxu0 0.0
        %1884 = vmatprep.subr.mxu0 0.0
        %1885 = vmatpush1.xpose.msra.mxu0 0.0
        %1886 = vmatprep.subr.mxu0 0.0
        %1887 = vmatpush1.xpose.msra.mxu0 0.0
        %1888 = vmatprep.subr.mxu0 0.0
        %1889 = vmatpush1.xpose.msra.mxu0 0.0
        %1890 = vmatprep.subr.mxu0 0.0
        %1891 = vmatpush1.xpose.msra.mxu0 0.0
        %1892 = vmatprep.subr.mxu0 0.0
        %1893 = vmatpush1.xpose.msra.mxu0 0.0
        %1894 = vmatprep.mubr.f32.mxu0 0.0
        %1895 = vmatmul.mubr.f32.gmra.mrb[0].mxu0 %v1825
        %v1896 = vpop.f32.mrb[0].mxu0
        %v1897 = vadd.f32 0.0, %v1896
        %v1898 = vpop.f32.mrb[0].mxu0
        %1899 = vdwg.mxu0
        %1901 = vrot.lane.b32.xlu0 %v667, 32
        %v1902 = vpop.permute.xlu0 %1901
        %v1903 = vsel %vm1824, %v1902, 0
        %v1906 = vsel %vm1824, %v669, 0
        %1908 = vmatprep.subr.mxu0 0.0
        %1909 = vmatpush1.xpose.msra.mxu0 %v1906
        %1910 = vmatprep.subr.mxu0 0.0
        %1911 = vmatpush1.xpose.msra.mxu0 0.0
        %1912 = vmatprep.subr.mxu0 0.0
        %1913 = vmatpush1.xpose.msra.mxu0 0.0
        %1914 = vmatprep.subr.mxu0 0.0
        %1915 = vmatpush1.xpose.msra.mxu0 0.0
        %1916 = vmatprep.subr.mxu0 0.0
        %1917 = vmatpush1.xpose.msra.mxu0 0.0
        %1918 = vmatprep.subr.mxu0 0.0
        %1919 = vmatpush1.xpose.msra.mxu0 0.0
        %1920 = vmatprep.subr.mxu0 0.0
        %1921 = vmatpush1.xpose.msra.mxu0 0.0
        %1922 = vmatprep.subr.mxu0 0.0
        %1923 = vmatpush1.xpose.msra.mxu0 0.0
        %1924 = vmatprep.subr.mxu0 0.0
        %1925 = vmatpush1.xpose.msra.mxu0 0.0
        %1926 = vmatprep.subr.mxu0 0.0
        %1927 = vmatpush1.xpose.msra.mxu0 0.0
        %1928 = vmatprep.subr.mxu0 0.0
        %1929 = vmatpush1.xpose.msra.mxu0 0.0
        %1930 = vmatprep.subr.mxu0 0.0
        %1931 = vmatpush1.xpose.msra.mxu0 0.0
        %1932 = vmatprep.subr.mxu0 0.0
        %1933 = vmatpush1.xpose.msra.mxu0 0.0
        %1934 = vmatprep.subr.mxu0 0.0
        %1935 = vmatpush1.xpose.msra.mxu0 0.0
        %1936 = vmatprep.subr.mxu0 0.0
        %1937 = vmatpush1.xpose.msra.mxu0 0.0
        %1938 = vmatprep.subr.mxu0 0.0
        %1939 = vmatpush1.xpose.msra.mxu0 0.0
        %1940 = vmatprep.subr.mxu0 0.0
        %1941 = vmatpush1.xpose.msra.mxu0 0.0
        %1942 = vmatprep.subr.mxu0 0.0
        %1943 = vmatpush1.xpose.msra.mxu0 0.0
        %1944 = vmatprep.subr.mxu0 0.0
        %1945 = vmatpush1.xpose.msra.mxu0 0.0
        %1946 = vmatprep.subr.mxu0 0.0
        %1947 = vmatpush1.xpose.msra.mxu0 0.0
        %1948 = vmatprep.subr.mxu0 0.0
        %1949 = vmatpush1.xpose.msra.mxu0 0.0
        %1950 = vmatprep.subr.mxu0 0.0
        %1951 = vmatpush1.xpose.msra.mxu0 0.0
        %1952 = vmatprep.subr.mxu0 0.0
        %1953 = vmatpush1.xpose.msra.mxu0 0.0
        %1954 = vmatprep.subr.mxu0 0.0
        %1955 = vmatpush1.xpose.msra.mxu0 0.0
        %1956 = vmatprep.subr.mxu0 0.0
        %1957 = vmatpush1.xpose.msra.mxu0 0.0
        %1958 = vmatprep.subr.mxu0 0.0
        %1959 = vmatpush1.xpose.msra.mxu0 0.0
        %1960 = vmatprep.subr.mxu0 0.0
        %1961 = vmatpush1.xpose.msra.mxu0 0.0
        %1962 = vmatprep.subr.mxu0 0.0
        %1963 = vmatpush1.xpose.msra.mxu0 0.0
        %1964 = vmatprep.subr.mxu0 0.0
        %1965 = vmatpush1.xpose.msra.mxu0 0.0
        %1966 = vmatprep.subr.mxu0 0.0
        %1967 = vmatpush1.xpose.msra.mxu0 0.0
        %1968 = vmatprep.subr.mxu0 0.0
        %1969 = vmatpush1.xpose.msra.mxu0 0.0
        %1970 = vmatprep.subr.mxu0 0.0
        %1971 = vmatpush1.xpose.msra.mxu0 0.0
        %1972 = vmatprep.mubr.f32.mxu0 0.0
        %1973 = vmatmul.mubr.f32.gmra.mrb[0].mxu0 %v1903
        %v1974 = vpop.f32.mrb[0].mxu0
        %v1975 = vadd.f32 0.0, %v1974
        %v1976 = vpop.f32.mrb[0].mxu0
        %1977 = vdwg.mxu0
        %v1978 = vsel %vm1819, %v1897, -1e+09
        %v1979 = vsel %vm1820, %v1975, -1e+09
        %v1980 = vsel %vm1824, %v1978, -inf
        %1981 = vmax.xlane.f32.xlu0 %v1980
        %v1982 = vpop.xlane.xlu0 %1981
        %v1983 = vsel %vm1824, %v1979, -inf
        %1984 = vmax.xlane.f32.xlu0 %v1983
        %v1985 = vpop.xlane.xlu0 %1984
        %v1986 = vsub.f32 %v1978, %v1982
        %v1987 = vsub.f32 %v1979, %v1985
        %v1988 = vmul.f32 %v1986, 1.442695
        %v1989 = vpow.pop %v1988
        %v1990 = vmul.f32 %v1987, 1.442695
        %v1991 = vpow.pop %v1990
        %v1992 = vsel %vm1824, %v1989, 0.0
        %1993 = vadd.xlane.f32.xlu0 %v1992
        %v1994 = vpop.xlane.xlu0 %1993
        %v1995 = vsel %vm1824, %v1991, 0.0
        %1996 = vadd.xlane.f32.xlu0 %v1995
        %v1997 = vpop.xlane.xlu0 %1996
        %v1998 = vrcp.pop %v1994
        %v1999 = vmul.f32 %v1989, %v1998
        %v2000 = vrcp.pop %v1997
        %v2001 = vmul.f32 %v1991, %v2000
        %2002 = vrot.lane.b32.xlu0 %v663, 96
        %v2003 = vpop.permute.xlu0 %2002
        %v2006 = vsel %vm1824, %v1999, 0
        %2008 = vmatprep.subr.mxu0 0.0
        %2009 = vmatpush1.msra.mxu0 %v2003
        %2010 = vmatprep.subr.mxu0 0.0
        %2011 = vmatpush1.msra.mxu0 0.0
        %2012 = vmatprep.subr.mxu0 0.0
        %2013 = vmatpush1.msra.mxu0 0.0
        %2014 = vmatprep.subr.mxu0 0.0
        %2015 = vmatpush1.msra.mxu0 0.0
        %2016 = vmatprep.subr.mxu0 0.0
        %2017 = vmatpush1.msra.mxu0 0.0
        %2018 = vmatprep.subr.mxu0 0.0
        %2019 = vmatpush1.msra.mxu0 0.0
        %2020 = vmatprep.subr.mxu0 0.0
        %2021 = vmatpush1.msra.mxu0 0.0
        %2022 = vmatprep.subr.mxu0 0.0
        %2023 = vmatpush1.msra.mxu0 0.0
        %2024 = vmatprep.subr.mxu0 0.0
        %2025 = vmatpush1.msra.mxu0 0.0
        %2026 = vmatprep.subr.mxu0 0.0
        %2027 = vmatpush1.msra.mxu0 0.0
        %2028 = vmatprep.subr.mxu0 0.0
        %2029 = vmatpush1.msra.mxu0 0.0
        %2030 = vmatprep.subr.mxu0 0.0
        %2031 = vmatpush1.msra.mxu0 0.0
        %2032 = vmatprep.subr.mxu0 0.0
        %2033 = vmatpush1.msra.mxu0 0.0
        %2034 = vmatprep.subr.mxu0 0.0
        %2035 = vmatpush1.msra.mxu0 0.0
        %2036 = vmatprep.subr.mxu0 0.0
        %2037 = vmatpush1.msra.mxu0 0.0
        %2038 = vmatprep.subr.mxu0 0.0
        %2039 = vmatpush1.msra.mxu0 0.0
        %2040 = vmatprep.subr.mxu0 0.0
        %2041 = vmatpush1.msra.mxu0 0.0
        %2042 = vmatprep.subr.mxu0 0.0
        %2043 = vmatpush1.msra.mxu0 0.0
        %2044 = vmatprep.subr.mxu0 0.0
        %2045 = vmatpush1.msra.mxu0 0.0
        %2046 = vmatprep.subr.mxu0 0.0
        %2047 = vmatpush1.msra.mxu0 0.0
        %2048 = vmatprep.subr.mxu0 0.0
        %2049 = vmatpush1.msra.mxu0 0.0
        %2050 = vmatprep.subr.mxu0 0.0
        %2051 = vmatpush1.msra.mxu0 0.0
        %2052 = vmatprep.subr.mxu0 0.0
        %2053 = vmatpush1.msra.mxu0 0.0
        %2054 = vmatprep.subr.mxu0 0.0
        %2055 = vmatpush1.msra.mxu0 0.0
        %2056 = vmatprep.subr.mxu0 0.0
        %2057 = vmatpush1.msra.mxu0 0.0
        %2058 = vmatprep.subr.mxu0 0.0
        %2059 = vmatpush1.msra.mxu0 0.0
        %2060 = vmatprep.subr.mxu0 0.0
        %2061 = vmatpush1.msra.mxu0 0.0
        %2062 = vmatprep.subr.mxu0 0.0
        %2063 = vmatpush1.msra.mxu0 0.0
        %2064 = vmatprep.subr.mxu0 0.0
        %2065 = vmatpush1.msra.mxu0 0.0
        %2066 = vmatprep.subr.mxu0 0.0
        %2067 = vmatpush1.msra.mxu0 0.0
        %2068 = vmatprep.subr.mxu0 0.0
        %2069 = vmatpush1.msra.mxu0 0.0
        %2070 = vmatprep.subr.mxu0 0.0
        %2071 = vmatpush1.msra.mxu0 0.0
        %2072 = vmatprep.mubr.f32.mxu0 0.0
        %2073 = vmatmul.mubr.f32.gmra.mrb[0].mxu0 %v2006
        %v2074 = vpop.f32.mrb[0].mxu0
        %v2075 = vadd.f32 0.0, %v2074
        %v2076 = vpop.f32.mrb[0].mxu0
        %2077 = vdwg.mxu0
        %2078 = vrot.lane.b32.xlu0 %v669, 96
        %v2079 = vpop.permute.xlu0 %2078
        %v2082 = vsel %vm1824, %v2001, 0
        %2084 = vmatprep.subr.mxu0 0.0
        %2085 = vmatpush1.msra.mxu0 %v2079
        %2086 = vmatprep.subr.mxu0 0.0
        %2087 = vmatpush1.msra.mxu0 0.0
        %2088 = vmatprep.subr.mxu0 0.0
        %2089 = vmatpush1.msra.mxu0 0.0
        %2090 = vmatprep.subr.mxu0 0.0
        %2091 = vmatpush1.msra.mxu0 0.0
        %2092 = vmatprep.subr.mxu0 0.0
        %2093 = vmatpush1.msra.mxu0 0.0
        %2094 = vmatprep.subr.mxu0 0.0
        %2095 = vmatpush1.msra.mxu0 0.0
        %2096 = vmatprep.subr.mxu0 0.0
        %2097 = vmatpush1.msra.mxu0 0.0
        %2098 = vmatprep.subr.mxu0 0.0
        %2099 = vmatpush1.msra.mxu0 0.0
        %2100 = vmatprep.subr.mxu0 0.0
        %2101 = vmatpush1.msra.mxu0 0.0
        %2102 = vmatprep.subr.mxu0 0.0
        %2103 = vmatpush1.msra.mxu0 0.0
        %2104 = vmatprep.subr.mxu0 0.0
        %2105 = vmatpush1.msra.mxu0 0.0
        %2106 = vmatprep.subr.mxu0 0.0
        %2107 = vmatpush1.msra.mxu0 0.0
        %2108 = vmatprep.subr.mxu0 0.0
        %2109 = vmatpush1.msra.mxu0 0.0
        %2110 = vmatprep.subr.mxu0 0.0
        %2111 = vmatpush1.msra.mxu0 0.0
        %2112 = vmatprep.subr.mxu0 0.0
        %2113 = vmatpush1.msra.mxu0 0.0
        %2114 = vmatprep.subr.mxu0 0.0
        %2115 = vmatpush1.msra.mxu0 0.0
        %2116 = vmatprep.subr.mxu0 0.0
        %2117 = vmatpush1.msra.mxu0 0.0
        %2118 = vmatprep.subr.mxu0 0.0
        %2119 = vmatpush1.msra.mxu0 0.0
        %2120 = vmatprep.subr.mxu0 0.0
        %2121 = vmatpush1.msra.mxu0 0.0
        %2122 = vmatprep.subr.mxu0 0.0
        %2123 = vmatpush1.msra.mxu0 0.0
        %2124 = vmatprep.subr.mxu0 0.0
        %2125 = vmatpush1.msra.mxu0 0.0
        %2126 = vmatprep.subr.mxu0 0.0
        %2127 = vmatpush1.msra.mxu0 0.0
        %2128 = vmatprep.subr.mxu0 0.0
        %2129 = vmatpush1.msra.mxu0 0.0
        %2130 = vmatprep.subr.mxu0 0.0
        %2131 = vmatpush1.msra.mxu0 0.0
        %2132 = vmatprep.subr.mxu0 0.0
        %2133 = vmatpush1.msra.mxu0 0.0
        %2134 = vmatprep.subr.mxu0 0.0
        %2135 = vmatpush1.msra.mxu0 0.0
        %2136 = vmatprep.subr.mxu0 0.0
        %2137 = vmatpush1.msra.mxu0 0.0
        %2138 = vmatprep.subr.mxu0 0.0
        %2139 = vmatpush1.msra.mxu0 0.0
        %2140 = vmatprep.subr.mxu0 0.0
        %2141 = vmatpush1.msra.mxu0 0.0
        %2142 = vmatprep.subr.mxu0 0.0
        %2143 = vmatpush1.msra.mxu0 0.0
        %2144 = vmatprep.subr.mxu0 0.0
        %2145 = vmatpush1.msra.mxu0 0.0
        %2146 = vmatprep.subr.mxu0 0.0
        %2147 = vmatpush1.msra.mxu0 0.0
        %2148 = vmatprep.mubr.f32.mxu0 0.0
        %2149 = vmatmul.mubr.f32.gmra.mrb[0].mxu0 %v2082
        %v2150 = vpop.f32.mrb[0].mxu0
        %v2151 = vadd.f32 0.0, %v2150
        %v2152 = vpop.f32.mrb[0].mxu0
        %2153 = vdwg.mxu0
        %v2154 = vld [vmem:[#allocation10] sm:$0xff]
        %2155 = vrot.lane.b32.xlu0 %v661, 24
        %v2156 = vpop.permute.xlu0 %2155
        %2157 = vrot.lane.b32.xlu0 %v663, 120
        %v2158 = vpop.permute.xlu0 %2157
        %v2159 = vsel %vm1824, %v2156, 0
        %v2161 = vsel %vm1824, %v2158, 0
        %2163 = vmatprep.subr.mxu0 0.0
        %2164 = vmatpush1.xpose.msra.mxu0 %v2161
        %2165 = vmatprep.subr.mxu0 0.0
        %2166 = vmatpush1.xpose.msra.mxu0 0.0
        %2167 = vmatprep.subr.mxu0 0.0
        %2168 = vmatpush1.xpose.msra.mxu0 0.0
        %2169 = vmatprep.subr.mxu0 0.0
        %2170 = vmatpush1.xpose.msra.mxu0 0.0
        %2171 = vmatprep.subr.mxu0 0.0
        %2172 = vmatpush1.xpose.msra.mxu0 0.0
        %2173 = vmatprep.subr.mxu0 0.0
        %2174 = vmatpush1.xpose.msra.mxu0 0.0
        %2175 = vmatprep.subr.mxu0 0.0
        %2176 = vmatpush1.xpose.msra.mxu0 0.0
        %2177 = vmatprep.subr.mxu0 0.0
        %2178 = vmatpush1.xpose.msra.mxu0 0.0
        %2179 = vmatprep.subr.mxu0 0.0
        %2180 = vmatpush1.xpose.msra.mxu0 0.0
        %2181 = vmatprep.subr.mxu0 0.0
        %2182 = vmatpush1.xpose.msra.mxu0 0.0
        %2183 = vmatprep.subr.mxu0 0.0
        %2184 = vmatpush1.xpose.msra.mxu0 0.0
        %2185 = vmatprep.subr.mxu0 0.0
        %2186 = vmatpush1.xpose.msra.mxu0 0.0
        %2187 = vmatprep.subr.mxu0 0.0
        %2188 = vmatpush1.xpose.msra.mxu0 0.0
        %2189 = vmatprep.subr.mxu0 0.0
        %2190 = vmatpush1.xpose.msra.mxu0 0.0
        %2191 = vmatprep.subr.mxu0 0.0
        %2192 = vmatpush1.xpose.msra.mxu0 0.0
        %2193 = vmatprep.subr.mxu0 0.0
        %2194 = vmatpush1.xpose.msra.mxu0 0.0
        %2195 = vmatprep.subr.mxu0 0.0
        %2196 = vmatpush1.xpose.msra.mxu0 0.0
        %2197 = vmatprep.subr.mxu0 0.0
        %2198 = vmatpush1.xpose.msra.mxu0 0.0
        %2199 = vmatprep.subr.mxu0 0.0
        %2200 = vmatpush1.xpose.msra.mxu0 0.0
        %2201 = vmatprep.subr.mxu0 0.0
        %2202 = vmatpush1.xpose.msra.mxu0 0.0
        %2203 = vmatprep.subr.mxu0 0.0
        %2204 = vmatpush1.xpose.msra.mxu0 0.0
        %2205 = vmatprep.subr.mxu0 0.0
        %2206 = vmatpush1.xpose.msra.mxu0 0.0
        %2207 = vmatprep.subr.mxu0 0.0
        %2208 = vmatpush1.xpose.msra.mxu0 0.0
        %2209 = vmatprep.subr.mxu0 0.0
        %2210 = vmatpush1.xpose.msra.mxu0 0.0
        %2211 = vmatprep.subr.mxu0 0.0
        %2212 = vmatpush1.xpose.msra.mxu0 0.0
        %2213 = vmatprep.subr.mxu0 0.0
        %2214 = vmatpush1.xpose.msra.mxu0 0.0
        %2215 = vmatprep.subr.mxu0 0.0
        %2216 = vmatpush1.xpose.msra.mxu0 0.0
        %2217 = vmatprep.subr.mxu0 0.0
        %2218 = vmatpush1.xpose.msra.mxu0 0.0
        %2219 = vmatprep.subr.mxu0 0.0
        %2220 = vmatpush1.xpose.msra.mxu0 0.0
        %2221 = vmatprep.subr.mxu0 0.0
        %2222 = vmatpush1.xpose.msra.mxu0 0.0
        %2223 = vmatprep.subr.mxu0 0.0
        %2224 = vmatpush1.xpose.msra.mxu0 0.0
        %2225 = vmatprep.subr.mxu0 0.0
        %2226 = vmatpush1.xpose.msra.mxu0 0.0
        %2227 = vmatprep.mubr.f32.mxu0 0.0
        %2228 = vmatmul.mubr.f32.gmra.mrb[0].mxu0 %v2159
        %v2229 = vpop.f32.mrb[0].mxu0
        %v2230 = vadd.f32 0.0, %v2229
        %v2231 = vpop.f32.mrb[0].mxu0
        %2232 = vdwg.mxu0
        %2233 = vrot.lane.b32.xlu0 %v667, 24
        %v2234 = vpop.permute.xlu0 %2233
        %2235 = vrot.lane.b32.xlu0 %v669, 120
        %v2236 = vpop.permute.xlu0 %2235
        %v2237 = vsel %vm1824, %v2234, 0
        %v2239 = vsel %vm1824, %v2236, 0
        %2241 = vmatprep.subr.mxu0 0.0
        %2242 = vmatpush1.xpose.msra.mxu0 %v2239
        %2243 = vmatprep.subr.mxu0 0.0
        %2244 = vmatpush1.xpose.msra.mxu0 0.0
        %2245 = vmatprep.subr.mxu0 0.0
        %2246 = vmatpush1.xpose.msra.mxu0 0.0
        %2247 = vmatprep.subr.mxu0 0.0
        %2248 = vmatpush1.xpose.msra.mxu0 0.0
        %2249 = vmatprep.subr.mxu0 0.0
        %2250 = vmatpush1.xpose.msra.mxu0 0.0
        %2251 = vmatprep.subr.mxu0 0.0
        %2252 = vmatpush1.xpose.msra.mxu0 0.0
        %2253 = vmatprep.subr.mxu0 0.0
        %2254 = vmatpush1.xpose.msra.mxu0 0.0
        %2255 = vmatprep.subr.mxu0 0.0
        %2256 = vmatpush1.xpose.msra.mxu0 0.0
        %2257 = vmatprep.subr.mxu0 0.0
        %2258 = vmatpush1.xpose.msra.mxu0 0.0
        %2259 = vmatprep.subr.mxu0 0.0
        %2260 = vmatpush1.xpose.msra.mxu0 0.0
        %2261 = vmatprep.subr.mxu0 0.0
        %2262 = vmatpush1.xpose.msra.mxu0 0.0
        %2263 = vmatprep.subr.mxu0 0.0
        %2264 = vmatpush1.xpose.msra.mxu0 0.0
        %2265 = vmatprep.subr.mxu0 0.0
        %2266 = vmatpush1.xpose.msra.mxu0 0.0
        %2267 = vmatprep.subr.mxu0 0.0
        %2268 = vmatpush1.xpose.msra.mxu0 0.0
        %2269 = vmatprep.subr.mxu0 0.0
        %2270 = vmatpush1.xpose.msra.mxu0 0.0
        %2271 = vmatprep.subr.mxu0 0.0
        %2272 = vmatpush1.xpose.msra.mxu0 0.0
        %2273 = vmatprep.subr.mxu0 0.0
        %2274 = vmatpush1.xpose.msra.mxu0 0.0
        %2275 = vmatprep.subr.mxu0 0.0
        %2276 = vmatpush1.xpose.msra.mxu0 0.0
        %2277 = vmatprep.subr.mxu0 0.0
        %2278 = vmatpush1.xpose.msra.mxu0 0.0
        %2279 = vmatprep.subr.mxu0 0.0
        %2280 = vmatpush1.xpose.msra.mxu0 0.0
        %2281 = vmatprep.subr.mxu0 0.0
        %2282 = vmatpush1.xpose.msra.mxu0 0.0
        %2283 = vmatprep.subr.mxu0 0.0
        %2284 = vmatpush1.xpose.msra.mxu0 0.0
        %2285 = vmatprep.subr.mxu0 0.0
        %2286 = vmatpush1.xpose.msra.mxu0 0.0
        %2287 = vmatprep.subr.mxu0 0.0
        %2288 = vmatpush1.xpose.msra.mxu0 0.0
        %2289 = vmatprep.subr.mxu0 0.0
        %2290 = vmatpush1.xpose.msra.mxu0 0.0
        %2291 = vmatprep.subr.mxu0 0.0
        %2292 = vmatpush1.xpose.msra.mxu0 0.0
        %2293 = vmatprep.subr.mxu0 0.0
        %2294 = vmatpush1.xpose.msra.mxu0 0.0
        %2295 = vmatprep.subr.mxu0 0.0
        %2296 = vmatpush1.xpose.msra.mxu0 0.0
        %2297 = vmatprep.subr.mxu0 0.0
        %2298 = vmatpush1.xpose.msra.mxu0 0.0
        %2299 = vmatprep.subr.mxu0 0.0
        %2300 = vmatpush1.xpose.msra.mxu0 0.0
        %2301 = vmatprep.subr.mxu0 0.0
        %2302 = vmatpush1.xpose.msra.mxu0 0.0
        %2303 = vmatprep.subr.mxu0 0.0
        %2304 = vmatpush1.xpose.msra.mxu0 0.0
        %2305 = vmatprep.mubr.f32.mxu0 0.0
        %2306 = vmatmul.mubr.f32.gmra.mrb[0].mxu0 %v2237
        %v2307 = vpop.f32.mrb[0].mxu0
        %v2308 = vadd.f32 0.0, %v2307
        %v2309 = vpop.f32.mrb[0].mxu0
        %2310 = vdwg.mxu0
        %v2311 = vsel %vm1819, %v2230, -1e+09
        %v2312 = vsel %vm1820, %v2308, -1e+09
        %v2313 = vsel %vm1824, %v2311, -inf
        %2314 = vmax.xlane.f32.xlu0 %v2313
        %v2315 = vpop.xlane.xlu0 %2314
        %v2316 = vsel %vm1824, %v2312, -inf
        %2317 = vmax.xlane.f32.xlu0 %v2316
        %v2318 = vpop.xlane.xlu0 %2317
        %v2319 = vsub.f32 %v2311, %v2315
        %v2320 = vsub.f32 %v2312, %v2318
        %v2321 = vmul.f32 %v2319, 1.442695
        %v2322 = vpow.pop %v2321
        %v2323 = vmul.f32 %v2320, 1.442695
        %v2324 = vpow.pop %v2323
        %v2325 = vsel %vm1824, %v2322, 0.0
        %2326 = vadd.xlane.f32.xlu0 %v2325
        %v2327 = vpop.xlane.xlu0 %2326
        %v2328 = vsel %vm1824, %v2324, 0.0
        %2329 = vadd.xlane.f32.xlu0 %v2328
        %v2330 = vpop.xlane.xlu0 %2329
        %v2331 = vrcp.pop %v2327
        %v2332 = vmul.f32 %v2322, %v2331
        %v2333 = vrcp.pop %v2330
        %v2334 = vmul.f32 %v2324, %v2333
        %2335 = vrot.lane.b32.xlu0 %v663, 88
        %v2336 = vpop.permute.xlu0 %2335
        %v2339 = vsel %vm1824, %v2332, 0
        %2341 = vmatprep.subr.mxu0 0.0
        %2342 = vmatpush1.msra.mxu0 %v2336
        %2343 = vmatprep.subr.mxu0 0.0
        %2344 = vmatpush1.msra.mxu0 0.0
        %2345 = vmatprep.subr.mxu0 0.0
        %2346 = vmatpush1.msra.mxu0 0.0
        %2347 = vmatprep.subr.mxu0 0.0
        %2348 = vmatpush1.msra.mxu0 0.0
        %2349 = vmatprep.subr.mxu0 0.0
        %2350 = vmatpush1.msra.mxu0 0.0
        %2351 = vmatprep.subr.mxu0 0.0
        %2352 = vmatpush1.msra.mxu0 0.0
        %2353 = vmatprep.subr.mxu0 0.0
        %2354 = vmatpush1.msra.mxu0 0.0
        %2355 = vmatprep.subr.mxu0 0.0
        %2356 = vmatpush1.msra.mxu0 0.0
        %2357 = vmatprep.subr.mxu0 0.0
        %2358 = vmatpush1.msra.mxu0 0.0
        %2359 = vmatprep.subr.mxu0 0.0
        %2360 = vmatpush1.msra.mxu0 0.0
        %2361 = vmatprep.subr.mxu0 0.0
        %2362 = vmatpush1.msra.mxu0 0.0
        %2363 = vmatprep.subr.mxu0 0.0
        %2364 = vmatpush1.msra.mxu0 0.0
        %2365 = vmatprep.subr.mxu0 0.0
        %2366 = vmatpush1.msra.mxu0 0.0
        %2367 = vmatprep.subr.mxu0 0.0
        %2368 = vmatpush1.msra.mxu0 0.0
        %2369 = vmatprep.subr.mxu0 0.0
        %2370 = vmatpush1.msra.mxu0 0.0
        %2371 = vmatprep.subr.mxu0 0.0
        %2372 = vmatpush1.msra.mxu0 0.0
        %2373 = vmatprep.subr.mxu0 0.0
        %2374 = vmatpush1.msra.mxu0 0.0
        %2375 = vmatprep.subr.mxu0 0.0
        %2376 = vmatpush1.msra.mxu0 0.0
        %2377 = vmatprep.subr.mxu0 0.0
        %2378 = vmatpush1.msra.mxu0 0.0
        %2379 = vmatprep.subr.mxu0 0.0
        %2380 = vmatpush1.msra.mxu0 0.0
        %2381 = vmatprep.subr.mxu0 0.0
        %2382 = vmatpush1.msra.mxu0 0.0
        %2383 = vmatprep.subr.mxu0 0.0
        %2384 = vmatpush1.msra.mxu0 0.0
        %2385 = vmatprep.subr.mxu0 0.0
        %2386 = vmatpush1.msra.mxu0 0.0
        %2387 = vmatprep.subr.mxu0 0.0
        %2388 = vmatpush1.msra.mxu0 0.0
        %2389 = vmatprep.subr.mxu0 0.0
        %2390 = vmatpush1.msra.mxu0 0.0
        %2391 = vmatprep.subr.mxu0 0.0
        %2392 = vmatpush1.msra.mxu0 0.0
        %2393 = vmatprep.subr.mxu0 0.0
        %2394 = vmatpush1.msra.mxu0 0.0
        %2395 = vmatprep.subr.mxu0 0.0
        %2396 = vmatpush1.msra.mxu0 0.0
        %2397 = vmatprep.subr.mxu0 0.0
        %2398 = vmatpush1.msra.mxu0 0.0
        %2399 = vmatprep.subr.mxu0 0.0
        %2400 = vmatpush1.msra.mxu0 0.0
        %2401 = vmatprep.subr.mxu0 0.0
        %2402 = vmatpush1.msra.mxu0 0.0
        %2403 = vmatprep.subr.mxu0 0.0
        %2404 = vmatpush1.msra.mxu0 0.0
        %2405 = vmatprep.mubr.f32.mxu0 0.0
        %2406 = vmatmul.mubr.f32.gmra.mrb[0].mxu0 %v2339
        %v2407 = vpop.f32.mrb[0].mxu0
        %v2408 = vadd.f32 0.0, %v2407
        %v2409 = vpop.f32.mrb[0].mxu0
        %2410 = vdwg.mxu0
        %2411 = vrot.lane.b32.xlu0 %v669, 88
        %v2412 = vpop.permute.xlu0 %2411
        %v2415 = vsel %vm1824, %v2334, 0
        %2417 = vmatprep.subr.mxu0 0.0
        %2418 = vmatpush1.msra.mxu0 %v2412
        %2419 = vmatprep.subr.mxu0 0.0
        %2420 = vmatpush1.msra.mxu0 0.0
        %2421 = vmatprep.subr.mxu0 0.0
        %2422 = vmatpush1.msra.mxu0 0.0
        %2423 = vmatprep.subr.mxu0 0.0
        %2424 = vmatpush1.msra.mxu0 0.0
        %2425 = vmatprep.subr.mxu0 0.0
        %2426 = vmatpush1.msra.mxu0 0.0
        %2427 = vmatprep.subr.mxu0 0.0
        %2428 = vmatpush1.msra.mxu0 0.0
        %2429 = vmatprep.subr.mxu0 0.0
        %2430 = vmatpush1.msra.mxu0 0.0
        %2431 = vmatprep.subr.mxu0 0.0
        %2432 = vmatpush1.msra.mxu0 0.0
        %2433 = vmatprep.subr.mxu0 0.0
        %2434 = vmatpush1.msra.mxu0 0.0
        %2435 = vmatprep.subr.mxu0 0.0
        %2436 = vmatpush1.msra.mxu0 0.0
        %2437 = vmatprep.subr.mxu0 0.0
        %2438 = vmatpush1.msra.mxu0 0.0
        %2439 = vmatprep.subr.mxu0 0.0
        %2440 = vmatpush1.msra.mxu0 0.0
        %2441 = vmatprep.subr.mxu0 0.0
        %2442 = vmatpush1.msra.mxu0 0.0
        %2443 = vmatprep.subr.mxu0 0.0
        %2444 = vmatpush1.msra.mxu0 0.0
        %2445 = vmatprep.subr.mxu0 0.0
        %2446 = vmatpush1.msra.mxu0 0.0
        %2447 = vmatprep.subr.mxu0 0.0
        %2448 = vmatpush1.msra.mxu0 0.0
        %2449 = vmatprep.subr.mxu0 0.0
        %2450 = vmatpush1.msra.mxu0 0.0
        %2451 = vmatprep.subr.mxu0 0.0
        %2452 = vmatpush1.msra.mxu0 0.0
        %2453 = vmatprep.subr.mxu0 0.0
        %2454 = vmatpush1.msra.mxu0 0.0
        %2455 = vmatprep.subr.mxu0 0.0
        %2456 = vmatpush1.msra.mxu0 0.0
        %2457 = vmatprep.subr.mxu0 0.0
        %2458 = vmatpush1.msra.mxu0 0.0
        %2459 = vmatprep.subr.mxu0 0.0
        %2460 = vmatpush1.msra.mxu0 0.0
        %2461 = vmatprep.subr.mxu0 0.0
        %2462 = vmatpush1.msra.mxu0 0.0
        %2463 = vmatprep.subr.mxu0 0.0
        %2464 = vmatpush1.msra.mxu0 0.0
        %2465 = vmatprep.subr.mxu0 0.0
        %2466 = vmatpush1.msra.mxu0 0.0
        %2467 = vmatprep.subr.mxu0 0.0
        %2468 = vmatpush1.msra.mxu0 0.0
        %2469 = vmatprep.subr.mxu0 0.0
        %2470 = vmatpush1.msra.mxu0 0.0
        %2471 = vmatprep.subr.mxu0 0.0
        %2472 = vmatpush1.msra.mxu0 0.0
        %2473 = vmatprep.subr.mxu0 0.0
        %2474 = vmatpush1.msra.mxu0 0.0
        %2475 = vmatprep.subr.mxu0 0.0
        %2476 = vmatpush1.msra.mxu0 0.0
        %2477 = vmatprep.subr.mxu0 0.0
        %2478 = vmatpush1.msra.mxu0 0.0
        %2479 = vmatprep.subr.mxu0 0.0
        %2480 = vmatpush1.msra.mxu0 0.0
        %2481 = vmatprep.mubr.f32.mxu0 0.0
        %2482 = vmatmul.mubr.f32.gmra.mrb[0].mxu0 %v2415
        %v2483 = vpop.f32.mrb[0].mxu0
        %v2484 = vadd.f32 0.0, %v2483
        %v2485 = vpop.f32.mrb[0].mxu0
        %2486 = vdwg.mxu0
        %v2487 = vld [vmem:[#allocation10 + $0x8] sm:$0xff]
        %v2489 = vsel %vm1824, %v2408, 0
        %v2492 = vsel %vm1824, %v2484, 0
        %2494 = vmatprep.subr.mxu0 0.0
        %2495 = vmatpush1.msra.mxu0 %v2487
        %2496 = vmatprep.subr.mxu0 0.0
        %2497 = vmatpush1.msra.mxu0 0.0
        %2498 = vmatprep.subr.mxu0 0.0
        %2499 = vmatpush1.msra.mxu0 0.0
        %2500 = vmatprep.subr.mxu0 0.0
        %2501 = vmatpush1.msra.mxu0 0.0
        %2502 = vmatprep.subr.mxu0 0.0
        %2503 = vmatpush1.msra.mxu0 0.0
        %2504 = vmatprep.subr.mxu0 0.0
        %2505 = vmatpush1.msra.mxu0 0.0
        %2506 = vmatprep.subr.mxu0 0.0
        %2507 = vmatpush1.msra.mxu0 0.0
        %2508 = vmatprep.subr.mxu0 0.0
        %2509 = vmatpush1.msra.mxu0 0.0
        %2510 = vmatprep.subr.mxu0 0.0
        %2511 = vmatpush1.msra.mxu0 0.0
        %2512 = vmatprep.subr.mxu0 0.0
        %2513 = vmatpush1.msra.mxu0 0.0
        %2514 = vmatprep.subr.mxu0 0.0
        %2515 = vmatpush1.msra.mxu0 0.0
        %2516 = vmatprep.subr.mxu0 0.0
        %2517 = vmatpush1.msra.mxu0 0.0
        %2518 = vmatprep.subr.mxu0 0.0
        %2519 = vmatpush1.msra.mxu0 0.0
        %2520 = vmatprep.subr.mxu0 0.0
        %2521 = vmatpush1.msra.mxu0 0.0
        %2522 = vmatprep.subr.mxu0 0.0
        %2523 = vmatpush1.msra.mxu0 0.0
        %2524 = vmatprep.subr.mxu0 0.0
        %2525 = vmatpush1.msra.mxu0 0.0
        %2526 = vmatprep.subr.mxu0 0.0
        %2527 = vmatpush1.msra.mxu0 0.0
        %2528 = vmatprep.subr.mxu0 0.0
        %2529 = vmatpush1.msra.mxu0 0.0
        %2530 = vmatprep.subr.mxu0 0.0
        %2531 = vmatpush1.msra.mxu0 0.0
        %2532 = vmatprep.subr.mxu0 0.0
        %2533 = vmatpush1.msra.mxu0 0.0
        %2534 = vmatprep.subr.mxu0 0.0
        %2535 = vmatpush1.msra.mxu0 0.0
        %2536 = vmatprep.subr.mxu0 0.0
        %2537 = vmatpush1.msra.mxu0 0.0
        %2538 = vmatprep.subr.mxu0 0.0
        %2539 = vmatpush1.msra.mxu0 0.0
        %2540 = vmatprep.subr.mxu0 0.0
        %2541 = vmatpush1.msra.mxu0 0.0
        %2542 = vmatprep.subr.mxu0 0.0
        %2543 = vmatpush1.msra.mxu0 0.0
        %2544 = vmatprep.subr.mxu0 0.0
        %2545 = vmatpush1.msra.mxu0 0.0
        %2546 = vmatprep.subr.mxu0 0.0
        %2547 = vmatpush1.msra.mxu0 0.0
        %2548 = vmatprep.subr.mxu0 0.0
        %2549 = vmatpush1.msra.mxu0 0.0
        %2550 = vmatprep.subr.mxu0 0.0
        %2551 = vmatpush1.msra.mxu0 0.0
        %2552 = vmatprep.subr.mxu0 0.0
        %2553 = vmatpush1.msra.mxu0 0.0
        %2554 = vmatprep.subr.mxu0 0.0
        %2555 = vmatpush1.msra.mxu0 0.0
        %2556 = vmatprep.subr.mxu0 0.0
        %2557 = vmatpush1.msra.mxu0 0.0
        %2558 = vmatprep.mubr.f32.mxu0 0.0
        %2559 = vmatmul.mubr.f32.gmra.mrb[0].mxu0 %v2489
        %v2560 = vpop.f32.mrb[0].mxu0
        %v2561 = vadd.f32 0.0, %v2560
        %v2562 = vpop.f32.mrb[0].mxu0
        %2563 = vmatprep.mubr.f32.mxu0 0.0
        %2564 = vmatmul.mubr.f32.gmra.mrb[0].mxu0 %v2492
        %v2565 = vpop.f32.mrb[0].mxu0
        %v2566 = vadd.f32 0.0, %v2565
        %v2567 = vpop.f32.mrb[0].mxu0
        %2568 = vdwg.mxu0
        %v2570 = vsel %vm1824, %v2075, 0
        %v2573 = vsel %vm1824, %v2151, 0
        %2575 = vmatprep.subr.mxu0 0.0
        %2576 = vmatpush1.msra.mxu0 %v2154
        %2577 = vmatprep.subr.mxu0 0.0
        %2578 = vmatpush1.msra.mxu0 0.0
        %2579 = vmatprep.subr.mxu0 0.0
        %2580 = vmatpush1.msra.mxu0 0.0
        %2581 = vmatprep.subr.mxu0 0.0
        %2582 = vmatpush1.msra.mxu0 0.0
        %2583 = vmatprep.subr.mxu0 0.0
        %2584 = vmatpush1.msra.mxu0 0.0
        %2585 = vmatprep.subr.mxu0 0.0
        %2586 = vmatpush1.msra.mxu0 0.0
        %2587 = vmatprep.subr.mxu0 0.0
        %2588 = vmatpush1.msra.mxu0 0.0
        %2589 = vmatprep.subr.mxu0 0.0
        %2590 = vmatpush1.msra.mxu0 0.0
        %2591 = vmatprep.subr.mxu0 0.0
        %2592 = vmatpush1.msra.mxu0 0.0
        %2593 = vmatprep.subr.mxu0 0.0
        %2594 = vmatpush1.msra.mxu0 0.0
        %2595 = vmatprep.subr.mxu0 0.0
        %2596 = vmatpush1.msra.mxu0 0.0
        %2597 = vmatprep.subr.mxu0 0.0
        %2598 = vmatpush1.msra.mxu0 0.0
        %2599 = vmatprep.subr.mxu0 0.0
        %2600 = vmatpush1.msra.mxu0 0.0
        %2601 = vmatprep.subr.mxu0 0.0
        %2602 = vmatpush1.msra.mxu0 0.0
        %2603 = vmatprep.subr.mxu0 0.0
        %2604 = vmatpush1.msra.mxu0 0.0
        %2605 = vmatprep.subr.mxu0 0.0
        %2606 = vmatpush1.msra.mxu0 0.0
        %2607 = vmatprep.subr.mxu0 0.0
        %2608 = vmatpush1.msra.mxu0 0.0
        %2609 = vmatprep.subr.mxu0 0.0
        %2610 = vmatpush1.msra.mxu0 0.0
        %2611 = vmatprep.subr.mxu0 0.0
        %2612 = vmatpush1.msra.mxu0 0.0
        %2613 = vmatprep.subr.mxu0 0.0
        %2614 = vmatpush1.msra.mxu0 0.0
        %2615 = vmatprep.subr.mxu0 0.0
        %2616 = vmatpush1.msra.mxu0 0.0
        %2617 = vmatprep.subr.mxu0 0.0
        %2618 = vmatpush1.msra.mxu0 0.0
        %2619 = vmatprep.subr.mxu0 0.0
        %2620 = vmatpush1.msra.mxu0 0.0
        %2621 = vmatprep.subr.mxu0 0.0
        %2622 = vmatpush1.msra.mxu0 0.0
        %2623 = vmatprep.subr.mxu0 0.0
        %2624 = vmatpush1.msra.mxu0 0.0
        %2625 = vmatprep.subr.mxu0 0.0
        %2626 = vmatpush1.msra.mxu0 0.0
        %2627 = vmatprep.subr.mxu0 0.0
        %2628 = vmatpush1.msra.mxu0 0.0
        %2629 = vmatprep.subr.mxu0 0.0
        %2630 = vmatpush1.msra.mxu0 0.0
        %2631 = vmatprep.subr.mxu0 0.0
        %2632 = vmatpush1.msra.mxu0 0.0
        %2633 = vmatprep.subr.mxu0 0.0
        %2634 = vmatpush1.msra.mxu0 0.0
        %2635 = vmatprep.subr.mxu0 0.0
        %2636 = vmatpush1.msra.mxu0 0.0
        %2637 = vmatprep.subr.mxu0 0.0
        %2638 = vmatpush1.msra.mxu0 0.0
        %2639 = vmatprep.mubr.f32.mxu0 0.0
        %2640 = vmatmul.mubr.f32.gmra.mrb[0].mxu0 %v2570
        %v2641 = vpop.f32.mrb[0].mxu0
        %v2642 = vadd.f32 %v2561, %v2641
        %v2643 = vpop.f32.mrb[0].mxu0
        %2644 = vmatprep.mubr.f32.mxu0 0.0
        %2645 = vmatmul.mubr.f32.gmra.mrb[0].mxu0 %v2573
        %v2646 = vpop.f32.mrb[0].mxu0
        %v2647 = vadd.f32 %v2566, %v2646
        %v2648 = vpop.f32.mrb[0].mxu0
        %2649 = vdwg.mxu0
        %2650 = vrot.lane.b32.xlu0 %v661, 16
        %v2651 = vpop.permute.xlu0 %2650
        %2652 = vrot.lane.b32.xlu0 %v663, 112
        %v2653 = vpop.permute.xlu0 %2652
        %v2654 = vsel %vm1824, %v2651, 0
        %v2656 = vsel %vm1824, %v2653, 0
        %2658 = vmatprep.subr.mxu0 0.0
        %2659 = vmatpush1.xpose.msra.mxu0 %v2656
        %2660 = vmatprep.subr.mxu0 0.0
        %2661 = vmatpush1.xpose.msra.mxu0 0.0
        %2662 = vmatprep.subr.mxu0 0.0
        %2663 = vmatpush1.xpose.msra.mxu0 0.0
        %2664 = vmatprep.subr.mxu0 0.0
        %2665 = vmatpush1.xpose.msra.mxu0 0.0
        %2666 = vmatprep.subr.mxu0 0.0
        %2667 = vmatpush1.xpose.msra.mxu0 0.0
        %2668 = vmatprep.subr.mxu0 0.0
        %2669 = vmatpush1.xpose.msra.mxu0 0.0
        %2670 = vmatprep.subr.mxu0 0.0
        %2671 = vmatpush1.xpose.msra.mxu0 0.0
        %2672 = vmatprep.subr.mxu0 0.0
        %2673 = vmatpush1.xpose.msra.mxu0 0.0
        %2674 = vmatprep.subr.mxu0 0.0
        %2675 = vmatpush1.xpose.msra.mxu0 0.0
        %2676 = vmatprep.subr.mxu0 0.0
        %2677 = vmatpush1.xpose.msra.mxu0 0.0
        %2678 = vmatprep.subr.mxu0 0.0
        %2679 = vmatpush1.xpose.msra.mxu0 0.0
        %2680 = vmatprep.subr.mxu0 0.0
        %2681 = vmatpush1.xpose.msra.mxu0 0.0
        %2682 = vmatprep.subr.mxu0 0.0
        %2683 = vmatpush1.xpose.msra.mxu0 0.0
        %2684 = vmatprep.subr.mxu0 0.0
        %2685 = vmatpush1.xpose.msra.mxu0 0.0
        %2686 = vmatprep.subr.mxu0 0.0
        %2687 = vmatpush1.xpose.msra.mxu0 0.0
        %2688 = vmatprep.subr.mxu0 0.0
        %2689 = vmatpush1.xpose.msra.mxu0 0.0
        %2690 = vmatprep.subr.mxu0 0.0
        %2691 = vmatpush1.xpose.msra.mxu0 0.0
        %2692 = vmatprep.subr.mxu0 0.0
        %2693 = vmatpush1.xpose.msra.mxu0 0.0
        %2694 = vmatprep.subr.mxu0 0.0
        %2695 = vmatpush1.xpose.msra.mxu0 0.0
        %2696 = vmatprep.subr.mxu0 0.0
        %2697 = vmatpush1.xpose.msra.mxu0 0.0
        %2698 = vmatprep.subr.mxu0 0.0
        %2699 = vmatpush1.xpose.msra.mxu0 0.0
        %2700 = vmatprep.subr.mxu0 0.0
        %2701 = vmatpush1.xpose.msra.mxu0 0.0
        %2702 = vmatprep.subr.mxu0 0.0
        %2703 = vmatpush1.xpose.msra.mxu0 0.0
        %2704 = vmatprep.subr.mxu0 0.0
        %2705 = vmatpush1.xpose.msra.mxu0 0.0
        %2706 = vmatprep.subr.mxu0 0.0
        %2707 = vmatpush1.xpose.msra.mxu0 0.0
        %2708 = vmatprep.subr.mxu0 0.0
        %2709 = vmatpush1.xpose.msra.mxu0 0.0
        %2710 = vmatprep.subr.mxu0 0.0
        %2711 = vmatpush1.xpose.msra.mxu0 0.0
        %2712 = vmatprep.subr.mxu0 0.0
        %2713 = vmatpush1.xpose.msra.mxu0 0.0
        %2714 = vmatprep.subr.mxu0 0.0
        %2715 = vmatpush1.xpose.msra.mxu0 0.0
        %2716 = vmatprep.subr.mxu0 0.0
        %2717 = vmatpush1.xpose.msra.mxu0 0.0
        %2718 = vmatprep.subr.mxu0 0.0
        %2719 = vmatpush1.xpose.msra.mxu0 0.0
        %2720 = vmatprep.subr.mxu0 0.0
        %2721 = vmatpush1.xpose.msra.mxu0 0.0
        %2722 = vmatprep.mubr.f32.mxu0 0.0
        %2723 = vmatmul.mubr.f32.gmra.mrb[0].mxu0 %v2654
        %v2724 = vpop.f32.mrb[0].mxu0
        %v2725 = vadd.f32 0.0, %v2724
        %v2726 = vpop.f32.mrb[0].mxu0
        %2727 = vdwg.mxu0
        %2728 = vrot.lane.b32.xlu0 %v667, 16
        %v2729 = vpop.permute.xlu0 %2728
        %2730 = vrot.lane.b32.xlu0 %v669, 112
        %v2731 = vpop.permute.xlu0 %2730
        %v2732 = vsel %vm1824, %v2729, 0
        %v2734 = vsel %vm1824, %v2731, 0
        %2736 = vmatprep.subr.mxu0 0.0
        %2737 = vmatpush1.xpose.msra.mxu0 %v2734
        %2738 = vmatprep.subr.mxu0 0.0
        %2739 = vmatpush1.xpose.msra.mxu0 0.0
        %2740 = vmatprep.subr.mxu0 0.0
        %2741 = vmatpush1.xpose.msra.mxu0 0.0
        %2742 = vmatprep.subr.mxu0 0.0
        %2743 = vmatpush1.xpose.msra.mxu0 0.0
        %2744 = vmatprep.subr.mxu0 0.0
        %2745 = vmatpush1.xpose.msra.mxu0 0.0
        %2746 = vmatprep.subr.mxu0 0.0
        %2747 = vmatpush1.xpose.msra.mxu0 0.0
        %2748 = vmatprep.subr.mxu0 0.0
        %2749 = vmatpush1.xpose.msra.mxu0 0.0
        %2750 = vmatprep.subr.mxu0 0.0
        %2751 = vmatpush1.xpose.msra.mxu0 0.0
        %2752 = vmatprep.subr.mxu0 0.0
        %2753 = vmatpush1.xpose.msra.mxu0 0.0
        %2754 = vmatprep.subr.mxu0 0.0
        %2755 = vmatpush1.xpose.msra.mxu0 0.0
        %2756 = vmatprep.subr.mxu0 0.0
        %2757 = vmatpush1.xpose.msra.mxu0 0.0
        %2758 = vmatprep.subr.mxu0 0.0
        %2759 = vmatpush1.xpose.msra.mxu0 0.0
        %2760 = vmatprep.subr.mxu0 0.0
        %2761 = vmatpush1.xpose.msra.mxu0 0.0
        %2762 = vmatprep.subr.mxu0 0.0
        %2763 = vmatpush1.xpose.msra.mxu0 0.0
        %2764 = vmatprep.subr.mxu0 0.0
        %2765 = vmatpush1.xpose.msra.mxu0 0.0
        %2766 = vmatprep.subr.mxu0 0.0
        %2767 = vmatpush1.xpose.msra.mxu0 0.0
        %2768 = vmatprep.subr.mxu0 0.0
        %2769 = vmatpush1.xpose.msra.mxu0 0.0
        %2770 = vmatprep.subr.mxu0 0.0
        %2771 = vmatpush1.xpose.msra.mxu0 0.0
        %2772 = vmatprep.subr.mxu0 0.0
        %2773 = vmatpush1.xpose.msra.mxu0 0.0
        %2774 = vmatprep.subr.mxu0 0.0
        %2775 = vmatpush1.xpose.msra.mxu0 0.0
        %2776 = vmatprep.subr.mxu0 0.0
        %2777 = vmatpush1.xpose.msra.mxu0 0.0
        %2778 = vmatprep.subr.mxu0 0.0
        %2779 = vmatpush1.xpose.msra.mxu0 0.0
        %2780 = vmatprep.subr.mxu0 0.0
        %2781 = vmatpush1.xpose.msra.mxu0 0.0
        %2782 = vmatprep.subr.mxu0 0.0
        %2783 = vmatpush1.xpose.msra.mxu0 0.0
        %2784 = vmatprep.subr.mxu0 0.0
        %2785 = vmatpush1.xpose.msra.mxu0 0.0
        %2786 = vmatprep.subr.mxu0 0.0
        %2787 = vmatpush1.xpose.msra.mxu0 0.0
        %2788 = vmatprep.subr.mxu0 0.0
        %2789 = vmatpush1.xpose.msra.mxu0 0.0
        %2790 = vmatprep.subr.mxu0 0.0
        %2791 = vmatpush1.xpose.msra.mxu0 0.0
        %2792 = vmatprep.subr.mxu0 0.0
        %2793 = vmatpush1.xpose.msra.mxu0 0.0
        %2794 = vmatprep.subr.mxu0 0.0
        %2795 = vmatpush1.xpose.msra.mxu0 0.0
        %2796 = vmatprep.subr.mxu0 0.0
        %2797 = vmatpush1.xpose.msra.mxu0 0.0
        %2798 = vmatprep.subr.mxu0 0.0
        %2799 = vmatpush1.xpose.msra.mxu0 0.0
        %2800 = vmatprep.mubr.f32.mxu0 0.0
        %2801 = vmatmul.mubr.f32.gmra.mrb[0].mxu0 %v2732
        %v2802 = vpop.f32.mrb[0].mxu0
        %v2803 = vadd.f32 0.0, %v2802
        %v2804 = vpop.f32.mrb[0].mxu0
        %2805 = vdwg.mxu0
        %v2806 = vsel %vm1819, %v2725, -1e+09
        %v2807 = vsel %vm1820, %v2803, -1e+09
        %v2808 = vsel %vm1824, %v2806, -inf
        %2809 = vmax.xlane.f32.xlu0 %v2808
        %v2810 = vpop.xlane.xlu0 %2809
        %v2811 = vsel %vm1824, %v2807, -inf
        %2812 = vmax.xlane.f32.xlu0 %v2811
        %v2813 = vpop.xlane.xlu0 %2812
        %v2814 = vsub.f32 %v2806, %v2810
        %v2815 = vsub.f32 %v2807, %v2813
        %v2816 = vmul.f32 %v2814, 1.442695
        %v2817 = vpow.pop %v2816
        %v2818 = vmul.f32 %v2815, 1.442695
        %v2819 = vpow.pop %v2818
        %v2820 = vsel %vm1824, %v2817, 0.0
        %2821 = vadd.xlane.f32.xlu0 %v2820
        %v2822 = vpop.xlane.xlu0 %2821
        %v2823 = vsel %vm1824, %v2819, 0.0
        %2824 = vadd.xlane.f32.xlu0 %v2823
        %v2825 = vpop.xlane.xlu0 %2824
        %v2826 = vrcp.pop %v2822
        %v2827 = vmul.f32 %v2817, %v2826
        %v2828 = vrcp.pop %v2825
        %v2829 = vmul.f32 %v2819, %v2828
        %2830 = vrot.lane.b32.xlu0 %v663, 80
        %v2831 = vpop.permute.xlu0 %2830
        %v2834 = vsel %vm1824, %v2827, 0
        %2836 = vmatprep.subr.mxu0 0.0
        %2837 = vmatpush1.msra.mxu0 %v2831
        %2838 = vmatprep.subr.mxu0 0.0
        %2839 = vmatpush1.msra.mxu0 0.0
        %2840 = vmatprep.subr.mxu0 0.0
        %2841 = vmatpush1.msra.mxu0 0.0
        %2842 = vmatprep.subr.mxu0 0.0
        %2843 = vmatpush1.msra.mxu0 0.0
        %2844 = vmatprep.subr.mxu0 0.0
        %2845 = vmatpush1.msra.mxu0 0.0
        %2846 = vmatprep.subr.mxu0 0.0
        %2847 = vmatpush1.msra.mxu0 0.0
        %2848 = vmatprep.subr.mxu0 0.0
        %2849 = vmatpush1.msra.mxu0 0.0
        %2850 = vmatprep.subr.mxu0 0.0
        %2851 = vmatpush1.msra.mxu0 0.0
        %2852 = vmatprep.subr.mxu0 0.0
        %2853 = vmatpush1.msra.mxu0 0.0
        %2854 = vmatprep.subr.mxu0 0.0
        %2855 = vmatpush1.msra.mxu0 0.0
        %2856 = vmatprep.subr.mxu0 0.0
        %2857 = vmatpush1.msra.mxu0 0.0
        %2858 = vmatprep.subr.mxu0 0.0
        %2859 = vmatpush1.msra.mxu0 0.0
        %2860 = vmatprep.subr.mxu0 0.0
        %2861 = vmatpush1.msra.mxu0 0.0
        %2862 = vmatprep.subr.mxu0 0.0
        %2863 = vmatpush1.msra.mxu0 0.0
        %2864 = vmatprep.subr.mxu0 0.0
        %2865 = vmatpush1.msra.mxu0 0.0
        %2866 = vmatprep.subr.mxu0 0.0
        %2867 = vmatpush1.msra.mxu0 0.0
        %2868 = vmatprep.subr.mxu0 0.0
        %2869 = vmatpush1.msra.mxu0 0.0
        %2870 = vmatprep.subr.mxu0 0.0
        %2871 = vmatpush1.msra.mxu0 0.0
        %2872 = vmatprep.subr.mxu0 0.0
        %2873 = vmatpush1.msra.mxu0 0.0
        %2874 = vmatprep.subr.mxu0 0.0
        %2875 = vmatpush1.msra.mxu0 0.0
        %2876 = vmatprep.subr.mxu0 0.0
        %2877 = vmatpush1.msra.mxu0 0.0
        %2878 = vmatprep.subr.mxu0 0.0
        %2879 = vmatpush1.msra.mxu0 0.0
        %2880 = vmatprep.subr.mxu0 0.0
        %2881 = vmatpush1.msra.mxu0 0.0
        %2882 = vmatprep.subr.mxu0 0.0
        %2883 = vmatpush1.msra.mxu0 0.0
        %2884 = vmatprep.subr.mxu0 0.0
        %2885 = vmatpush1.msra.mxu0 0.0
        %2886 = vmatprep.subr.mxu0 0.0
        %2887 = vmatpush1.msra.mxu0 0.0
        %2888 = vmatprep.subr.mxu0 0.0
        %2889 = vmatpush1.msra.mxu0 0.0
        %2890 = vmatprep.subr.mxu0 0.0
        %2891 = vmatpush1.msra.mxu0 0.0
        %2892 = vmatprep.subr.mxu0 0.0
        %2893 = vmatpush1.msra.mxu0 0.0
        %2894 = vmatprep.subr.mxu0 0.0
        %2895 = vmatpush1.msra.mxu0 0.0
        %2896 = vmatprep.subr.mxu0 0.0
        %2897 = vmatpush1.msra.mxu0 0.0
        %2898 = vmatprep.subr.mxu0 0.0
        %2899 = vmatpush1.msra.mxu0 0.0
        %2900 = vmatprep.mubr.f32.mxu0 0.0
        %2901 = vmatmul.mubr.f32.gmra.mrb[0].mxu0 %v2834
        %v2902 = vpop.f32.mrb[0].mxu0
        %v2903 = vadd.f32 0.0, %v2902
        %v2904 = vpop.f32.mrb[0].mxu0
        %2905 = vdwg.mxu0
        %2906 = vrot.lane.b32.xlu0 %v669, 80
        %v2907 = vpop.permute.xlu0 %2906
        %v2910 = vsel %vm1824, %v2829, 0
        %2912 = vmatprep.subr.mxu0 0.0
        %2913 = vmatpush1.msra.mxu0 %v2907
        %2914 = vmatprep.subr.mxu0 0.0
        %2915 = vmatpush1.msra.mxu0 0.0
        %2916 = vmatprep.subr.mxu0 0.0
        %2917 = vmatpush1.msra.mxu0 0.0
        %2918 = vmatprep.subr.mxu0 0.0
        %2919 = vmatpush1.msra.mxu0 0.0
        %2920 = vmatprep.subr.mxu0 0.0
        %2921 = vmatpush1.msra.mxu0 0.0
        %2922 = vmatprep.subr.mxu0 0.0
        %2923 = vmatpush1.msra.mxu0 0.0
        %2924 = vmatprep.subr.mxu0 0.0
        %2925 = vmatpush1.msra.mxu0 0.0
        %2926 = vmatprep.subr.mxu0 0.0
        %2927 = vmatpush1.msra.mxu0 0.0
        %2928 = vmatprep.subr.mxu0 0.0
        %2929 = vmatpush1.msra.mxu0 0.0
        %2930 = vmatprep.subr.mxu0 0.0
        %2931 = vmatpush1.msra.mxu0 0.0
        %2932 = vmatprep.subr.mxu0 0.0
        %2933 = vmatpush1.msra.mxu0 0.0
        %2934 = vmatprep.subr.mxu0 0.0
        %2935 = vmatpush1.msra.mxu0 0.0
        %2936 = vmatprep.subr.mxu0 0.0
        %2937 = vmatpush1.msra.mxu0 0.0
        %2938 = vmatprep.subr.mxu0 0.0
        %2939 = vmatpush1.msra.mxu0 0.0
        %2940 = vmatprep.subr.mxu0 0.0
        %2941 = vmatpush1.msra.mxu0 0.0
        %2942 = vmatprep.subr.mxu0 0.0
        %2943 = vmatpush1.msra.mxu0 0.0
        %2944 = vmatprep.subr.mxu0 0.0
        %2945 = vmatpush1.msra.mxu0 0.0
        %2946 = vmatprep.subr.mxu0 0.0
        %2947 = vmatpush1.msra.mxu0 0.0
        %2948 = vmatprep.subr.mxu0 0.0
        %2949 = vmatpush1.msra.mxu0 0.0
        %2950 = vmatprep.subr.mxu0 0.0
        %2951 = vmatpush1.msra.mxu0 0.0
        %2952 = vmatprep.subr.mxu0 0.0
        %2953 = vmatpush1.msra.mxu0 0.0
        %2954 = vmatprep.subr.mxu0 0.0
        %2955 = vmatpush1.msra.mxu0 0.0
        %2956 = vmatprep.subr.mxu0 0.0
        %2957 = vmatpush1.msra.mxu0 0.0
        %2958 = vmatprep.subr.mxu0 0.0
        %2959 = vmatpush1.msra.mxu0 0.0
        %2960 = vmatprep.subr.mxu0 0.0
        %2961 = vmatpush1.msra.mxu0 0.0
        %2962 = vmatprep.subr.mxu0 0.0
        %2963 = vmatpush1.msra.mxu0 0.0
        %2964 = vmatprep.subr.mxu0 0.0
        %2965 = vmatpush1.msra.mxu0 0.0
        %2966 = vmatprep.subr.mxu0 0.0
        %2967 = vmatpush1.msra.mxu0 0.0
        %2968 = vmatprep.subr.mxu0 0.0
        %2969 = vmatpush1.msra.mxu0 0.0
        %2970 = vmatprep.subr.mxu0 0.0
        %2971 = vmatpush1.msra.mxu0 0.0
        %2972 = vmatprep.subr.mxu0 0.0
        %2973 = vmatpush1.msra.mxu0 0.0
        %2974 = vmatprep.subr.mxu0 0.0
        %2975 = vmatpush1.msra.mxu0 0.0
        %2976 = vmatprep.mubr.f32.mxu0 0.0
        %2977 = vmatmul.mubr.f32.gmra.mrb[0].mxu0 %v2910
        %v2978 = vpop.f32.mrb[0].mxu0
        %v2979 = vadd.f32 0.0, %v2978
        %v2980 = vpop.f32.mrb[0].mxu0
        %2981 = vdwg.mxu0
        %v2982 = vld [vmem:[#allocation10 + $0x10] sm:$0xff]
        %v2984 = vsel %vm1824, %v2903, 0
        %v2987 = vsel %vm1824, %v2979, 0
        %2989 = vmatprep.subr.mxu0 0.0
        %2990 = vmatpush1.msra.mxu0 %v2982
        %2991 = vmatprep.subr.mxu0 0.0
        %2992 = vmatpush1.msra.mxu0 0.0
        %2993 = vmatprep.subr.mxu0 0.0
        %2994 = vmatpush1.msra.mxu0 0.0
        %2995 = vmatprep.subr.mxu0 0.0
        %2996 = vmatpush1.msra.mxu0 0.0
        %2997 = vmatprep.subr.mxu0 0.0
        %2998 = vmatpush1.msra.mxu0 0.0
        %2999 = vmatprep.subr.mxu0 0.0
        %3000 = vmatpush1.msra.mxu0 0.0
        %3001 = vmatprep.subr.mxu0 0.0
        %3002 = vmatpush1.msra.mxu0 0.0
        %3003 = vmatprep.subr.mxu0 0.0
        %3004 = vmatpush1.msra.mxu0 0.0
        %3005 = vmatprep.subr.mxu0 0.0
        %3006 = vmatpush1.msra.mxu0 0.0
        %3007 = vmatprep.subr.mxu0 0.0
        %3008 = vmatpush1.msra.mxu0 0.0
        %3009 = vmatprep.subr.mxu0 0.0
        %3010 = vmatpush1.msra.mxu0 0.0
        %3011 = vmatprep.subr.mxu0 0.0
        %3012 = vmatpush1.msra.mxu0 0.0
        %3013 = vmatprep.subr.mxu0 0.0
        %3014 = vmatpush1.msra.mxu0 0.0
        %3015 = vmatprep.subr.mxu0 0.0
        %3016 = vmatpush1.msra.mxu0 0.0
        %3017 = vmatprep.subr.mxu0 0.0
        %3018 = vmatpush1.msra.mxu0 0.0
        %3019 = vmatprep.subr.mxu0 0.0
        %3020 = vmatpush1.msra.mxu0 0.0
        %3021 = vmatprep.subr.mxu0 0.0
        %3022 = vmatpush1.msra.mxu0 0.0
        %3023 = vmatprep.subr.mxu0 0.0
        %3024 = vmatpush1.msra.mxu0 0.0
        %3025 = vmatprep.subr.mxu0 0.0
        %3026 = vmatpush1.msra.mxu0 0.0
        %3027 = vmatprep.subr.mxu0 0.0
        %3028 = vmatpush1.msra.mxu0 0.0
        %3029 = vmatprep.subr.mxu0 0.0
        %3030 = vmatpush1.msra.mxu0 0.0
        %3031 = vmatprep.subr.mxu0 0.0
        %3032 = vmatpush1.msra.mxu0 0.0
        %3033 = vmatprep.subr.mxu0 0.0
        %3034 = vmatpush1.msra.mxu0 0.0
        %3035 = vmatprep.subr.mxu0 0.0
        %3036 = vmatpush1.msra.mxu0 0.0
        %3037 = vmatprep.subr.mxu0 0.0
        %3038 = vmatpush1.msra.mxu0 0.0
        %3039 = vmatprep.subr.mxu0 0.0
        %3040 = vmatpush1.msra.mxu0 0.0
        %3041 = vmatprep.subr.mxu0 0.0
        %3042 = vmatpush1.msra.mxu0 0.0
        %3043 = vmatprep.subr.mxu0 0.0
        %3044 = vmatpush1.msra.mxu0 0.0
        %3045 = vmatprep.subr.mxu0 0.0
        %3046 = vmatpush1.msra.mxu0 0.0
        %3047 = vmatprep.subr.mxu0 0.0
        %3048 = vmatpush1.msra.mxu0 0.0
        %3049 = vmatprep.subr.mxu0 0.0
        %3050 = vmatpush1.msra.mxu0 0.0
        %3051 = vmatprep.subr.mxu0 0.0
        %3052 = vmatpush1.msra.mxu0 0.0
        %3053 = vmatprep.mubr.f32.mxu0 0.0
        %3054 = vmatmul.mubr.f32.gmra.mrb[0].mxu0 %v2984
        %v3055 = vpop.f32.mrb[0].mxu0
        %v3056 = vadd.f32 0.0, %v3055
        %v3057 = vpop.f32.mrb[0].mxu0
        %3058 = vmatprep.mubr.f32.mxu0 0.0
        %3059 = vmatmul.mubr.f32.gmra.mrb[0].mxu0 %v2987
        %v3060 = vpop.f32.mrb[0].mxu0
        %v3061 = vadd.f32 0.0, %v3060
        %v3062 = vpop.f32.mrb[0].mxu0
        %3063 = vdwg.mxu0
        %v3064 = vadd.f32 %v2642, %v3056
        %v3065 = vadd.f32 %v2647, %v3061
        %3066 = vrot.lane.b32.xlu0 %v661, 8
        %v3067 = vpop.permute.xlu0 %3066
        %3068 = vrot.lane.b32.xlu0 %v663, 104
        %v3069 = vpop.permute.xlu0 %3068
        %v3070 = vsel %vm1824, %v3067, 0
        %v3072 = vsel %vm1824, %v3069, 0
        %3074 = vmatprep.subr.mxu0 0.0
        %3075 = vmatpush1.xpose.msra.mxu0 %v3072
        %3076 = vmatprep.subr.mxu0 0.0
        %3077 = vmatpush1.xpose.msra.mxu0 0.0
        %3078 = vmatprep.subr.mxu0 0.0
        %3079 = vmatpush1.xpose.msra.mxu0 0.0
        %3080 = vmatprep.subr.mxu0 0.0
        %3081 = vmatpush1.xpose.msra.mxu0 0.0
        %3082 = vmatprep.subr.mxu0 0.0
        %3083 = vmatpush1.xpose.msra.mxu0 0.0
        %3084 = vmatprep.subr.mxu0 0.0
        %3085 = vmatpush1.xpose.msra.mxu0 0.0
        %3086 = vmatprep.subr.mxu0 0.0
        %3087 = vmatpush1.xpose.msra.mxu0 0.0
        %3088 = vmatprep.subr.mxu0 0.0
        %3089 = vmatpush1.xpose.msra.mxu0 0.0
        %3090 = vmatprep.subr.mxu0 0.0
        %3091 = vmatpush1.xpose.msra.mxu0 0.0
        %3092 = vmatprep.subr.mxu0 0.0
        %3093 = vmatpush1.xpose.msra.mxu0 0.0
        %3094 = vmatprep.subr.mxu0 0.0
        %3095 = vmatpush1.xpose.msra.mxu0 0.0
        %3096 = vmatprep.subr.mxu0 0.0
        %3097 = vmatpush1.xpose.msra.mxu0 0.0
        %3098 = vmatprep.subr.mxu0 0.0
        %3099 = vmatpush1.xpose.msra.mxu0 0.0
        %3100 = vmatprep.subr.mxu0 0.0
        %3101 = vmatpush1.xpose.msra.mxu0 0.0
        %3102 = vmatprep.subr.mxu0 0.0
        %3103 = vmatpush1.xpose.msra.mxu0 0.0
        %3104 = vmatprep.subr.mxu0 0.0
        %3105 = vmatpush1.xpose.msra.mxu0 0.0
        %3106 = vmatprep.subr.mxu0 0.0
        %3107 = vmatpush1.xpose.msra.mxu0 0.0
        %3108 = vmatprep.subr.mxu0 0.0
        %3109 = vmatpush1.xpose.msra.mxu0 0.0
        %3110 = vmatprep.subr.mxu0 0.0
        %3111 = vmatpush1.xpose.msra.mxu0 0.0
        %3112 = vmatprep.subr.mxu0 0.0
        %3113 = vmatpush1.xpose.msra.mxu0 0.0
        %3114 = vmatprep.subr.mxu0 0.0
        %3115 = vmatpush1.xpose.msra.mxu0 0.0
        %3116 = vmatprep.subr.mxu0 0.0
        %3117 = vmatpush1.xpose.msra.mxu0 0.0
        %3118 = vmatprep.subr.mxu0 0.0
        %3119 = vmatpush1.xpose.msra.mxu0 0.0
        %3120 = vmatprep.subr.mxu0 0.0
        %3121 = vmatpush1.xpose.msra.mxu0 0.0
        %3122 = vmatprep.subr.mxu0 0.0
        %3123 = vmatpush1.xpose.msra.mxu0 0.0
        %3124 = vmatprep.subr.mxu0 0.0
        %3125 = vmatpush1.xpose.msra.mxu0 0.0
        %3126 = vmatprep.subr.mxu0 0.0
        %3127 = vmatpush1.xpose.msra.mxu0 0.0
        %3128 = vmatprep.subr.mxu0 0.0
        %3129 = vmatpush1.xpose.msra.mxu0 0.0
        %3130 = vmatprep.subr.mxu0 0.0
        %3131 = vmatpush1.xpose.msra.mxu0 0.0
        %3132 = vmatprep.subr.mxu0 0.0
        %3133 = vmatpush1.xpose.msra.mxu0 0.0
        %3134 = vmatprep.subr.mxu0 0.0
        %3135 = vmatpush1.xpose.msra.mxu0 0.0
        %3136 = vmatprep.subr.mxu0 0.0
        %3137 = vmatpush1.xpose.msra.mxu0 0.0
        %3138 = vmatprep.mubr.f32.mxu0 0.0
        %3139 = vmatmul.mubr.f32.gmra.mrb[0].mxu0 %v3070
        %v3140 = vpop.f32.mrb[0].mxu0
        %v3141 = vadd.f32 0.0, %v3140
        %v3142 = vpop.f32.mrb[0].mxu0
        %3143 = vdwg.mxu0
        %3144 = vrot.lane.b32.xlu0 %v667, 8
        %v3145 = vpop.permute.xlu0 %3144
        %3146 = vrot.lane.b32.xlu0 %v669, 104
        %v3147 = vpop.permute.xlu0 %3146
        %v3148 = vsel %vm1824, %v3145, 0
        %v3150 = vsel %vm1824, %v3147, 0
        %3152 = vmatprep.subr.mxu0 0.0
        %3153 = vmatpush1.xpose.msra.mxu0 %v3150
        %3154 = vmatprep.subr.mxu0 0.0
        %3155 = vmatpush1.xpose.msra.mxu0 0.0
        %3156 = vmatprep.subr.mxu0 0.0
        %3157 = vmatpush1.xpose.msra.mxu0 0.0
        %3158 = vmatprep.subr.mxu0 0.0
        %3159 = vmatpush1.xpose.msra.mxu0 0.0
        %3160 = vmatprep.subr.mxu0 0.0
        %3161 = vmatpush1.xpose.msra.mxu0 0.0
        %3162 = vmatprep.subr.mxu0 0.0
        %3163 = vmatpush1.xpose.msra.mxu0 0.0
        %3164 = vmatprep.subr.mxu0 0.0
        %3165 = vmatpush1.xpose.msra.mxu0 0.0
        %3166 = vmatprep.subr.mxu0 0.0
        %3167 = vmatpush1.xpose.msra.mxu0 0.0
        %3168 = vmatprep.subr.mxu0 0.0
        %3169 = vmatpush1.xpose.msra.mxu0 0.0
        %3170 = vmatprep.subr.mxu0 0.0
        %3171 = vmatpush1.xpose.msra.mxu0 0.0
        %3172 = vmatprep.subr.mxu0 0.0
        %3173 = vmatpush1.xpose.msra.mxu0 0.0
        %3174 = vmatprep.subr.mxu0 0.0
        %3175 = vmatpush1.xpose.msra.mxu0 0.0
        %3176 = vmatprep.subr.mxu0 0.0
        %3177 = vmatpush1.xpose.msra.mxu0 0.0
        %3178 = vmatprep.subr.mxu0 0.0
        %3179 = vmatpush1.xpose.msra.mxu0 0.0
        %3180 = vmatprep.subr.mxu0 0.0
        %3181 = vmatpush1.xpose.msra.mxu0 0.0
        %3182 = vmatprep.subr.mxu0 0.0
        %3183 = vmatpush1.xpose.msra.mxu0 0.0
        %3184 = vmatprep.subr.mxu0 0.0
        %3185 = vmatpush1.xpose.msra.mxu0 0.0
        %3186 = vmatprep.subr.mxu0 0.0
        %3187 = vmatpush1.xpose.msra.mxu0 0.0
        %3188 = vmatprep.subr.mxu0 0.0
        %3189 = vmatpush1.xpose.msra.mxu0 0.0
        %3190 = vmatprep.subr.mxu0 0.0
        %3191 = vmatpush1.xpose.msra.mxu0 0.0
        %3192 = vmatprep.subr.mxu0 0.0
        %3193 = vmatpush1.xpose.msra.mxu0 0.0
        %3194 = vmatprep.subr.mxu0 0.0
        %3195 = vmatpush1.xpose.msra.mxu0 0.0
        %3196 = vmatprep.subr.mxu0 0.0
        %3197 = vmatpush1.xpose.msra.mxu0 0.0
        %3198 = vmatprep.subr.mxu0 0.0
        %3199 = vmatpush1.xpose.msra.mxu0 0.0
        %3200 = vmatprep.subr.mxu0 0.0
        %3201 = vmatpush1.xpose.msra.mxu0 0.0
        %3202 = vmatprep.subr.mxu0 0.0
        %3203 = vmatpush1.xpose.msra.mxu0 0.0
        %3204 = vmatprep.subr.mxu0 0.0
        %3205 = vmatpush1.xpose.msra.mxu0 0.0
        %3206 = vmatprep.subr.mxu0 0.0
        %3207 = vmatpush1.xpose.msra.mxu0 0.0
        %3208 = vmatprep.subr.mxu0 0.0
        %3209 = vmatpush1.xpose.msra.mxu0 0.0
        %3210 = vmatprep.subr.mxu0 0.0
        %3211 = vmatpush1.xpose.msra.mxu0 0.0
        %3212 = vmatprep.subr.mxu0 0.0
        %3213 = vmatpush1.xpose.msra.mxu0 0.0
        %3214 = vmatprep.subr.mxu0 0.0
        %3215 = vmatpush1.xpose.msra.mxu0 0.0
        %3216 = vmatprep.mubr.f32.mxu0 0.0
        %3217 = vmatmul.mubr.f32.gmra.mrb[0].mxu0 %v3148
        %v3218 = vpop.f32.mrb[0].mxu0
        %v3219 = vadd.f32 0.0, %v3218
        %v3220 = vpop.f32.mrb[0].mxu0
        %3221 = vdwg.mxu0
        %v3222 = vsel %vm1819, %v3141, -1e+09
        %v3223 = vsel %vm1820, %v3219, -1e+09
        %v3224 = vsel %vm1824, %v3222, -inf
        %3225 = vmax.xlane.f32.xlu0 %v3224
        %v3226 = vpop.xlane.xlu0 %3225
        %v3227 = vsel %vm1824, %v3223, -inf
        %3228 = vmax.xlane.f32.xlu0 %v3227
        %v3229 = vpop.xlane.xlu0 %3228
        %v3230 = vsub.f32 %v3222, %v3226
        %v3231 = vsub.f32 %v3223, %v3229
        %v3232 = vmul.f32 %v3230, 1.442695
        %v3233 = vpow.pop %v3232
        %v3234 = vmul.f32 %v3231, 1.442695
        %v3235 = vpow.pop %v3234
        %v3236 = vsel %vm1824, %v3233, 0.0
        %3237 = vadd.xlane.f32.xlu0 %v3236
        %v3238 = vpop.xlane.xlu0 %3237
        %v3239 = vsel %vm1824, %v3235, 0.0
        %3240 = vadd.xlane.f32.xlu0 %v3239
        %v3241 = vpop.xlane.xlu0 %3240
        %v3242 = vrcp.pop %v3238
        %v3243 = vmul.f32 %v3233, %v3242
        %v3244 = vrcp.pop %v3241
        %v3245 = vmul.f32 %v3235, %v3244
        %3246 = vrot.lane.b32.xlu0 %v663, 72
        %v3247 = vpop.permute.xlu0 %3246
        %v3250 = vsel %vm1824, %v3243, 0
        %3252 = vmatprep.subr.mxu0 0.0
        %3253 = vmatpush1.msra.mxu0 %v3247
        %3254 = vmatprep.subr.mxu0 0.0
        %3255 = vmatpush1.msra.mxu0 0.0
        %3256 = vmatprep.subr.mxu0 0.0
        %3257 = vmatpush1.msra.mxu0 0.0
        %3258 = vmatprep.subr.mxu0 0.0
        %3259 = vmatpush1.msra.mxu0 0.0
        %3260 = vmatprep.subr.mxu0 0.0
        %3261 = vmatpush1.msra.mxu0 0.0
        %3262 = vmatprep.subr.mxu0 0.0
        %3263 = vmatpush1.msra.mxu0 0.0
        %3264 = vmatprep.subr.mxu0 0.0
        %3265 = vmatpush1.msra.mxu0 0.0
        %3266 = vmatprep.subr.mxu0 0.0
        %3267 = vmatpush1.msra.mxu0 0.0
        %3268 = vmatprep.subr.mxu0 0.0
        %3269 = vmatpush1.msra.mxu0 0.0
        %3270 = vmatprep.subr.mxu0 0.0
        %3271 = vmatpush1.msra.mxu0 0.0
        %3272 = vmatprep.subr.mxu0 0.0
        %3273 = vmatpush1.msra.mxu0 0.0
        %3274 = vmatprep.subr.mxu0 0.0
        %3275 = vmatpush1.msra.mxu0 0.0
        %3276 = vmatprep.subr.mxu0 0.0
        %3277 = vmatpush1.msra.mxu0 0.0
        %3278 = vmatprep.subr.mxu0 0.0
        %3279 = vmatpush1.msra.mxu0 0.0
        %3280 = vmatprep.subr.mxu0 0.0
        %3281 = vmatpush1.msra.mxu0 0.0
        %3282 = vmatprep.subr.mxu0 0.0
        %3283 = vmatpush1.msra.mxu0 0.0
        %3284 = vmatprep.subr.mxu0 0.0
        %3285 = vmatpush1.msra.mxu0 0.0
        %3286 = vmatprep.subr.mxu0 0.0
        %3287 = vmatpush1.msra.mxu0 0.0
        %3288 = vmatprep.subr.mxu0 0.0
        %3289 = vmatpush1.msra.mxu0 0.0
        %3290 = vmatprep.subr.mxu0 0.0
        %3291 = vmatpush1.msra.mxu0 0.0
        %3292 = vmatprep.subr.mxu0 0.0
        %3293 = vmatpush1.msra.mxu0 0.0
        %3294 = vmatprep.subr.mxu0 0.0
        %3295 = vmatpush1.msra.mxu0 0.0
        %3296 = vmatprep.subr.mxu0 0.0
        %3297 = vmatpush1.msra.mxu0 0.0
        %3298 = vmatprep.subr.mxu0 0.0
        %3299 = vmatpush1.msra.mxu0 0.0
        %3300 = vmatprep.subr.mxu0 0.0
        %3301 = vmatpush1.msra.mxu0 0.0
        %3302 = vmatprep.subr.mxu0 0.0
        %3303 = vmatpush1.msra.mxu0 0.0
        %3304 = vmatprep.subr.mxu0 0.0
        %3305 = vmatpush1.msra.mxu0 0.0
        %3306 = vmatprep.subr.mxu0 0.0
        %3307 = vmatpush1.msra.mxu0 0.0
        %3308 = vmatprep.subr.mxu0 0.0
        %3309 = vmatpush1.msra.mxu0 0.0
        %3310 = vmatprep.subr.mxu0 0.0
        %3311 = vmatpush1.msra.mxu0 0.0
        %3312 = vmatprep.subr.mxu0 0.0
        %3313 = vmatpush1.msra.mxu0 0.0
        %3314 = vmatprep.subr.mxu0 0.0
        %3315 = vmatpush1.msra.mxu0 0.0
        %3316 = vmatprep.mubr.f32.mxu0 0.0
        %3317 = vmatmul.mubr.f32.gmra.mrb[0].mxu0 %v3250
        %v3318 = vpop.f32.mrb[0].mxu0
        %v3319 = vadd.f32 0.0, %v3318
        %v3320 = vpop.f32.mrb[0].mxu0
        %3321 = vdwg.mxu0
        %3322 = vrot.lane.b32.xlu0 %v669, 72
        %v3323 = vpop.permute.xlu0 %3322
        %v3326 = vsel %vm1824, %v3245, 0
        %3328 = vmatprep.subr.mxu0 0.0
        %3329 = vmatpush1.msra.mxu0 %v3323
        %3330 = vmatprep.subr.mxu0 0.0
        %3331 = vmatpush1.msra.mxu0 0.0
        %3332 = vmatprep.subr.mxu0 0.0
        %3333 = vmatpush1.msra.mxu0 0.0
        %3334 = vmatprep.subr.mxu0 0.0
        %3335 = vmatpush1.msra.mxu0 0.0
        %3336 = vmatprep.subr.mxu0 0.0
        %3337 = vmatpush1.msra.mxu0 0.0
        %3338 = vmatprep.subr.mxu0 0.0
        %3339 = vmatpush1.msra.mxu0 0.0
        %3340 = vmatprep.subr.mxu0 0.0
        %3341 = vmatpush1.msra.mxu0 0.0
        %3342 = vmatprep.subr.mxu0 0.0
        %3343 = vmatpush1.msra.mxu0 0.0
        %3344 = vmatprep.subr.mxu0 0.0
        %3345 = vmatpush1.msra.mxu0 0.0
        %3346 = vmatprep.subr.mxu0 0.0
        %3347 = vmatpush1.msra.mxu0 0.0
        %3348 = vmatprep.subr.mxu0 0.0
        %3349 = vmatpush1.msra.mxu0 0.0
        %3350 = vmatprep.subr.mxu0 0.0
        %3351 = vmatpush1.msra.mxu0 0.0
        %3352 = vmatprep.subr.mxu0 0.0
        %3353 = vmatpush1.msra.mxu0 0.0
        %3354 = vmatprep.subr.mxu0 0.0
        %3355 = vmatpush1.msra.mxu0 0.0
        %3356 = vmatprep.subr.mxu0 0.0
        %3357 = vmatpush1.msra.mxu0 0.0
        %3358 = vmatprep.subr.mxu0 0.0
        %3359 = vmatpush1.msra.mxu0 0.0
        %3360 = vmatprep.subr.mxu0 0.0
        %3361 = vmatpush1.msra.mxu0 0.0
        %3362 = vmatprep.subr.mxu0 0.0
        %3363 = vmatpush1.msra.mxu0 0.0
        %3364 = vmatprep.subr.mxu0 0.0
        %3365 = vmatpush1.msra.mxu0 0.0
        %3366 = vmatprep.subr.mxu0 0.0
        %3367 = vmatpush1.msra.mxu0 0.0
        %3368 = vmatprep.subr.mxu0 0.0
        %3369 = vmatpush1.msra.mxu0 0.0
        %3370 = vmatprep.subr.mxu0 0.0
        %3371 = vmatpush1.msra.mxu0 0.0
        %3372 = vmatprep.subr.mxu0 0.0
        %3373 = vmatpush1.msra.mxu0 0.0
        %3374 = vmatprep.subr.mxu0 0.0
        %3375 = vmatpush1.msra.mxu0 0.0
        %3376 = vmatprep.subr.mxu0 0.0
        %3377 = vmatpush1.msra.mxu0 0.0
        %3378 = vmatprep.subr.mxu0 0.0
        %3379 = vmatpush1.msra.mxu0 0.0
        %3380 = vmatprep.subr.mxu0 0.0
        %3381 = vmatpush1.msra.mxu0 0.0
        %3382 = vmatprep.subr.mxu0 0.0
        %3383 = vmatpush1.msra.mxu0 0.0
        %3384 = vmatprep.subr.mxu0 0.0
        %3385 = vmatpush1.msra.mxu0 0.0
        %3386 = vmatprep.subr.mxu0 0.0
        %3387 = vmatpush1.msra.mxu0 0.0
        %3388 = vmatprep.subr.mxu0 0.0
        %3389 = vmatpush1.msra.mxu0 0.0
        %3390 = vmatprep.subr.mxu0 0.0
        %3391 = vmatpush1.msra.mxu0 0.0
        %3392 = vmatprep.mubr.f32.mxu0 0.0
        %3393 = vmatmul.mubr.f32.gmra.mrb[0].mxu0 %v3326
        %v3394 = vpop.f32.mrb[0].mxu0
        %v3395 = vadd.f32 0.0, %v3394
        %v3396 = vpop.f32.mrb[0].mxu0
        %3397 = vdwg.mxu0
        %v3398 = vld [vmem:[#allocation10 + $0x18] sm:$0xff]
        %v3400 = vsel %vm1824, %v3319, 0
        %v3403 = vsel %vm1824, %v3395, 0
        %3405 = vmatprep.subr.mxu0 0.0
        %3406 = vmatpush1.msra.mxu0 %v3398
        %3407 = vmatprep.subr.mxu0 0.0
        %3408 = vmatpush1.msra.mxu0 0.0
        %3409 = vmatprep.subr.mxu0 0.0
        %3410 = vmatpush1.msra.mxu0 0.0
        %3411 = vmatprep.subr.mxu0 0.0
        %3412 = vmatpush1.msra.mxu0 0.0
        %3413 = vmatprep.subr.mxu0 0.0
        %3414 = vmatpush1.msra.mxu0 0.0
        %3415 = vmatprep.subr.mxu0 0.0
        %3416 = vmatpush1.msra.mxu0 0.0
        %3417 = vmatprep.subr.mxu0 0.0
        %3418 = vmatpush1.msra.mxu0 0.0
        %3419 = vmatprep.subr.mxu0 0.0
        %3420 = vmatpush1.msra.mxu0 0.0
        %3421 = vmatprep.subr.mxu0 0.0
        %3422 = vmatpush1.msra.mxu0 0.0
        %3423 = vmatprep.subr.mxu0 0.0
        %3424 = vmatpush1.msra.mxu0 0.0
        %3425 = vmatprep.subr.mxu0 0.0
        %3426 = vmatpush1.msra.mxu0 0.0
        %3427 = vmatprep.subr.mxu0 0.0
        %3428 = vmatpush1.msra.mxu0 0.0
        %3429 = vmatprep.subr.mxu0 0.0
        %3430 = vmatpush1.msra.mxu0 0.0
        %3431 = vmatprep.subr.mxu0 0.0
        %3432 = vmatpush1.msra.mxu0 0.0
        %3433 = vmatprep.subr.mxu0 0.0
        %3434 = vmatpush1.msra.mxu0 0.0
        %3435 = vmatprep.subr.mxu0 0.0
        %3436 = vmatpush1.msra.mxu0 0.0
        %3437 = vmatprep.subr.mxu0 0.0
        %3438 = vmatpush1.msra.mxu0 0.0
        %3439 = vmatprep.subr.mxu0 0.0
        %3440 = vmatpush1.msra.mxu0 0.0
        %3441 = vmatprep.subr.mxu0 0.0
        %3442 = vmatpush1.msra.mxu0 0.0
        %3443 = vmatprep.subr.mxu0 0.0
        %3444 = vmatpush1.msra.mxu0 0.0
        %3445 = vmatprep.subr.mxu0 0.0
        %3446 = vmatpush1.msra.mxu0 0.0
        %3447 = vmatprep.subr.mxu0 0.0
        %3448 = vmatpush1.msra.mxu0 0.0
        %3449 = vmatprep.subr.mxu0 0.0
        %3450 = vmatpush1.msra.mxu0 0.0
        %3451 = vmatprep.subr.mxu0 0.0
        %3452 = vmatpush1.msra.mxu0 0.0
        %3453 = vmatprep.subr.mxu0 0.0
        %3454 = vmatpush1.msra.mxu0 0.0
        %3455 = vmatprep.subr.mxu0 0.0
        %3456 = vmatpush1.msra.mxu0 0.0
        %3457 = vmatprep.subr.mxu0 0.0
        %3458 = vmatpush1.msra.mxu0 0.0
        %3459 = vmatprep.subr.mxu0 0.0
        %3460 = vmatpush1.msra.mxu0 0.0
        %3461 = vmatprep.subr.mxu0 0.0
        %3462 = vmatpush1.msra.mxu0 0.0
        %3463 = vmatprep.subr.mxu0 0.0
        %3464 = vmatpush1.msra.mxu0 0.0
        %3465 = vmatprep.subr.mxu0 0.0
        %3466 = vmatpush1.msra.mxu0 0.0
        %3467 = vmatprep.subr.mxu0 0.0
        %3468 = vmatpush1.msra.mxu0 0.0
        %3469 = vmatprep.mubr.f32.mxu0 0.0
        %3470 = vmatmul.mubr.f32.gmra.mrb[0].mxu0 %v3400
        %v3471 = vpop.f32.mrb[0].mxu0
        %v3472 = vadd.f32 0.0, %v3471
        %v3473 = vpop.f32.mrb[0].mxu0
        %3474 = vmatprep.mubr.f32.mxu0 0.0
        %3475 = vmatmul.mubr.f32.gmra.mrb[0].mxu0 %v3403
        %v3476 = vpop.f32.mrb[0].mxu0
        %v3477 = vadd.f32 0.0, %v3476
        %v3478 = vpop.f32.mrb[0].mxu0
        %3479 = vdwg.mxu0
        %v3480 = vadd.f32 %v3064, %v3472
        %v3481 = vadd.f32 %v3065, %v3477
        %v3482 = vld [vmem:[#allocation11] sm:$0x1]
        %v3484 = vlaneseq
        %v3485 = vshrl.u32 %v3484, 7
        %v3486 = vsub.s32 0, %v3485
        %v3487 = vrot.slane %v3482, %v3486
        %v3489 = vadd.f32 %v3480, %v3487
        %v3490 = vadd.f32 %v3481, %v3487
        %v3491 = vld [vmem:[%s9] sm:$0xff]
        %v3492 = vld [vmem:[%s9 + $0x8] sm:$0xff]
        %v3493 = vld [vmem:[%s9 + $0x10] sm:$0xff]
        %v3494 = vld [vmem:[%s9 + $0x18] sm:$0xff]
        %v3495 = vld [vmem:[#allocation13] sm:$0xff]
        %v3496 = vld [vmem:[#allocation13 + $0x8] sm:$0xff]
        %v3497 = vld [vmem:[#allocation13 + $0x10] sm:$0xff]
        %v3498 = vld [vmem:[#allocation13 + $0x18] sm:$0xff]
        %v3500 = vsel %vm587, %v3489, 0
        %v3503 = vsel %vm587, %v3490, 0
        %3505 = vmatprep.subr.mxu0 0.0
        %3506 = vmatpush1.msra.mxu0 %v3495
        %3507 = vmatprep.subr.mxu0 0.0
        %3508 = vmatpush1.msra.mxu0 %v3496
        %3509 = vmatprep.subr.mxu0 0.0
        %3510 = vmatpush1.msra.mxu0 %v3497
        %3511 = vmatprep.subr.mxu0 0.0
        %3512 = vmatpush1.msra.mxu0 %v3498
        %3513 = vmatprep.subr.mxu0 0.0
        %3514 = vmatpush1.msra.mxu0 0.0
        %3515 = vmatprep.subr.mxu0 0.0
        %3516 = vmatpush1.msra.mxu0 0.0
        %3517 = vmatprep.subr.mxu0 0.0
        %3518 = vmatpush1.msra.mxu0 0.0
        %3519 = vmatprep.subr.mxu0 0.0
        %3520 = vmatpush1.msra.mxu0 0.0
        %3521 = vmatprep.subr.mxu0 0.0
        %3522 = vmatpush1.msra.mxu0 0.0
        %3523 = vmatprep.subr.mxu0 0.0
        %3524 = vmatpush1.msra.mxu0 0.0
        %3525 = vmatprep.subr.mxu0 0.0
        %3526 = vmatpush1.msra.mxu0 0.0
        %3527 = vmatprep.subr.mxu0 0.0
        %3528 = vmatpush1.msra.mxu0 0.0
        %3529 = vmatprep.subr.mxu0 0.0
        %3530 = vmatpush1.msra.mxu0 0.0
        %3531 = vmatprep.subr.mxu0 0.0
        %3532 = vmatpush1.msra.mxu0 0.0
        %3533 = vmatprep.subr.mxu0 0.0
        %3534 = vmatpush1.msra.mxu0 0.0
        %3535 = vmatprep.subr.mxu0 0.0
        %3536 = vmatpush1.msra.mxu0 0.0
        %3537 = vmatprep.subr.mxu0 0.0
        %3538 = vmatpush1.msra.mxu0 0.0
        %3539 = vmatprep.subr.mxu0 0.0
        %3540 = vmatpush1.msra.mxu0 0.0
        %3541 = vmatprep.subr.mxu0 0.0
        %3542 = vmatpush1.msra.mxu0 0.0
        %3543 = vmatprep.subr.mxu0 0.0
        %3544 = vmatpush1.msra.mxu0 0.0
        %3545 = vmatprep.subr.mxu0 0.0
        %3546 = vmatpush1.msra.mxu0 0.0
        %3547 = vmatprep.subr.mxu0 0.0
        %3548 = vmatpush1.msra.mxu0 0.0
        %3549 = vmatprep.subr.mxu0 0.0
        %3550 = vmatpush1.msra.mxu0 0.0
        %3551 = vmatprep.subr.mxu0 0.0
        %3552 = vmatpush1.msra.mxu0 0.0
        %3553 = vmatprep.subr.mxu0 0.0
        %3554 = vmatpush1.msra.mxu0 0.0
        %3555 = vmatprep.subr.mxu0 0.0
        %3556 = vmatpush1.msra.mxu0 0.0
        %3557 = vmatprep.subr.mxu0 0.0
        %3558 = vmatpush1.msra.mxu0 0.0
        %3559 = vmatprep.subr.mxu0 0.0
        %3560 = vmatpush1.msra.mxu0 0.0
        %3561 = vmatprep.subr.mxu0 0.0
        %3562 = vmatpush1.msra.mxu0 0.0
        %3563 = vmatprep.subr.mxu0 0.0
        %3564 = vmatpush1.msra.mxu0 0.0
        %3565 = vmatprep.subr.mxu0 0.0
        %3566 = vmatpush1.msra.mxu0 0.0
        %3567 = vmatprep.subr.mxu0 0.0
        %3568 = vmatpush1.msra.mxu0 0.0
        %3569 = vmatprep.mubr.f32.mxu0 0.0
        %3570 = vmatmul.mubr.f32.gmra.mrb[0].mxu0 %v3500
        %v3571 = vpop.f32.mrb[0].mxu0
        %v3572 = vadd.f32 0.0, %v3571
        %v3573 = vpop.f32.mrb[0].mxu0
        %3574 = vmatprep.mubr.f32.mxu0 0.0
        %3575 = vmatmul.mubr.f32.gmra.mrb[0].mxu0 %v3503
        %v3576 = vpop.f32.mrb[0].mxu0
        %v3577 = vadd.f32 0.0, %v3576
        %v3578 = vpop.f32.mrb[0].mxu0
        %3579 = vdwg.mxu0
        %3582 = vrot.lane.b32.xlu0 %v1791, 96
        %v3583 = vpop.permute.xlu0 %3582
        %3584 = vrot.lane.b32.xlu0 %v1792, 96
        %v3585 = vpop.permute.xlu0 %3584
        %v3586 = vsel %vm587, %v3583, 0
        %v3588 = vsel %vm587, %v3585, 0
        %3590 = vmatprep.subr.mxu0 0.0
        %3591 = vmatpush1.msra.mxu0 %v3491
        %3592 = vmatprep.subr.mxu0 0.0
        %3593 = vmatpush1.msra.mxu0 %v3492
        %3594 = vmatprep.subr.mxu0 0.0
        %3595 = vmatpush1.msra.mxu0 %v3493
        %3596 = vmatprep.subr.mxu0 0.0
        %3597 = vmatpush1.msra.mxu0 %v3494
        %3598 = vmatprep.subr.mxu0 0.0
        %3599 = vmatpush1.msra.mxu0 0.0
        %3600 = vmatprep.subr.mxu0 0.0
        %3601 = vmatpush1.msra.mxu0 0.0
        %3602 = vmatprep.subr.mxu0 0.0
        %3603 = vmatpush1.msra.mxu0 0.0
        %3604 = vmatprep.subr.mxu0 0.0
        %3605 = vmatpush1.msra.mxu0 0.0
        %3606 = vmatprep.subr.mxu0 0.0
        %3607 = vmatpush1.msra.mxu0 0.0
        %3608 = vmatprep.subr.mxu0 0.0
        %3609 = vmatpush1.msra.mxu0 0.0
        %3610 = vmatprep.subr.mxu0 0.0
        %3611 = vmatpush1.msra.mxu0 0.0
        %3612 = vmatprep.subr.mxu0 0.0
        %3613 = vmatpush1.msra.mxu0 0.0
        %3614 = vmatprep.subr.mxu0 0.0
        %3615 = vmatpush1.msra.mxu0 0.0
        %3616 = vmatprep.subr.mxu0 0.0
        %3617 = vmatpush1.msra.mxu0 0.0
        %3618 = vmatprep.subr.mxu0 0.0
        %3619 = vmatpush1.msra.mxu0 0.0
        %3620 = vmatprep.subr.mxu0 0.0
        %3621 = vmatpush1.msra.mxu0 0.0
        %3622 = vmatprep.subr.mxu0 0.0
        %3623 = vmatpush1.msra.mxu0 0.0
        %3624 = vmatprep.subr.mxu0 0.0
        %3625 = vmatpush1.msra.mxu0 0.0
        %3626 = vmatprep.subr.mxu0 0.0
        %3627 = vmatpush1.msra.mxu0 0.0
        %3628 = vmatprep.subr.mxu0 0.0
        %3629 = vmatpush1.msra.mxu0 0.0
        %3630 = vmatprep.subr.mxu0 0.0
        %3631 = vmatpush1.msra.mxu0 0.0
        %3632 = vmatprep.subr.mxu0 0.0
        %3633 = vmatpush1.msra.mxu0 0.0
        %3634 = vmatprep.subr.mxu0 0.0
        %3635 = vmatpush1.msra.mxu0 0.0
        %3636 = vmatprep.subr.mxu0 0.0
        %3637 = vmatpush1.msra.mxu0 0.0
        %3638 = vmatprep.subr.mxu0 0.0
        %3639 = vmatpush1.msra.mxu0 0.0
        %3640 = vmatprep.subr.mxu0 0.0
        %3641 = vmatpush1.msra.mxu0 0.0
        %3642 = vmatprep.subr.mxu0 0.0
        %3643 = vmatpush1.msra.mxu0 0.0
        %3644 = vmatprep.subr.mxu0 0.0
        %3645 = vmatpush1.msra.mxu0 0.0
        %3646 = vmatprep.subr.mxu0 0.0
        %3647 = vmatpush1.msra.mxu0 0.0
        %3648 = vmatprep.subr.mxu0 0.0
        %3649 = vmatpush1.msra.mxu0 0.0
        %3650 = vmatprep.subr.mxu0 0.0
        %3651 = vmatpush1.msra.mxu0 0.0
        %3652 = vmatprep.subr.mxu0 0.0
        %3653 = vmatpush1.msra.mxu0 0.0
        %3654 = vmatprep.mubr.f32.mxu0 0.0
        %3655 = vmatmul.mubr.f32.gmra.mrb[0].mxu0 %v3586
        %v3656 = vpop.f32.mrb[0].mxu0
        %v3657 = vadd.f32 %v3572, %v3656
        %v3658 = vpop.f32.mrb[0].mxu0
        %3659 = vmatprep.mubr.f32.mxu0 0.0
        %3660 = vmatmul.mubr.f32.gmra.mrb[0].mxu0 %v3588
        %v3661 = vpop.f32.mrb[0].mxu0
        %v3662 = vadd.f32 %v3577, %v3661
        %v3663 = vpop.f32.mrb[0].mxu0
        %3664 = vdwg.mxu0
        %v3665 = vld [vmem:[%s11] sm:$0x1]
        %v3667 = vlaneseq
        %v3668 = vshrl.u32 %v3667, 7
        %v3669 = vsub.s32 0, %v3668
        %v3670 = vrot.slane %v3665, %v3669
        %v3672 = vadd.f32 %v3657, %v3670
        %v3673 = vadd.f32 %v3662, %v3670
        %3675 = vset.pattern.permute.xlu0 0
        %3676 = vperm.xlu0 %3675, %v563
        %v3677 = vpop.permute.xlu0 %3676
        %3680 = vset.pattern.permute.xlu0 0
        %3681 = vperm.xlu0 %3680, %v564
        %v3682 = vpop.permute.xlu0 %3681
        %v3684 = vmul.f32 %v3672, %v3677
        %v3685 = vmul.f32 %v3673, %v3682
        %3686 = vst.msk [vmem:[%s546] sm:$0xff] %vm587, %v3684
        %3687 = vst.msk [vmem:[%s546 + $0x8] sm:$0xff] %vm587, %v3685
        %s3688 = sand.u32 %s307, 1
        %s3689 = scalar_lea.sflag [#allocation4], %s3688
        %s3690 = sand.u32 %s307, 1
        %s3691 = smul.addr %s3690, 16
        %s3692 = scalar_lea.vmem [#allocation14], %s3691
        // Predicated region
        $region97: #{tpu_custom_call.1} parent=67 // pred_check
          %p3693 = pneg %p317
        $region98: #{tpu_custom_call.1} parent=67 // pred_check_branch
          %3695 = sbr.rel (%p3693) target = $region100
        $region99: #{tpu_custom_call.1} parent=67 // pred_region
          %s3696 = smul.u32 2, %s32
          %s3698 = ssub.s32 256, 256
          %3699 = vsyncadd %s3689, %s3698
          %s3700 = smul.addr %s3696, 128
          %s3701 = scalar_lea.hbm %s12, %s3700
          %s3702 = sshll.u32 %s3692, 4
          %s3703 = int_to_ptr.vmem [resolvable:$true] %s3702
          %3708 = dma.vmem_to_hbm [thread:$0]  %s3703, 256, %s3701, %s3689, 128, 128, 8
        $region100: #{tpu_custom_call.1} parent=67 // pred_fallthru
          _
      $region68: #{tpu_custom_call.1} parent=5 // pred_fallthru
        _
      %p3709 = scmp.le.s32.totalorder 2, %s27
      // Predicated region
      $region101: #{tpu_custom_call.1} parent=5 // pred_check
        %p3710 = pneg %p3709
      $region102: #{tpu_custom_call.1} parent=5 // pred_check_branch
        %3712 = sbr.rel (%p3710) target = $region104
      $region103: #{tpu_custom_call.1} parent=5 // pred_region
        %s3713 = ssub.s32 %s27, 2
        // Predicated region
        $region105: #{tpu_custom_call.1} parent=103 // pred_check
          %p3714 = pneg %p323
        $region106: #{tpu_custom_call.1} parent=103 // pred_check_branch
          %3716 = sbr.rel (%p3714) target = $region108
        $region107: #{tpu_custom_call.1} parent=103 // pred_region
          %s3717 = sand.u32 %s308, 1
          %s3718 = scalar_lea.sflag [#allocation4], %s3717
          %s3719 = sand.u32 %s308, 1
          %s3720 = smul.addr %s3719, 16
          %s3721 = scalar_lea.vmem [#allocation14], %s3720
          %3722 = dma.done %s3718, 256
        $region108: #{tpu_custom_call.1} parent=103 // pred_fallthru
          _
      $region104: #{tpu_custom_call.1} parent=5 // pred_fallthru
        _
    $region6: #{tpu_custom_call.1} parent=1 // loop_footer
      %s31 = sadd.s32 1, %s27
    $region7: #{tpu_custom_call.1} parent=1 // loop_footer_branch
      %26 = sbr.rel target = $region3
    $region8: #{tpu_custom_call.1} parent=1 // loop_exit
      _
    %3723 = vsyncpa [#allocation3], 1
    %s3724 = scalar_lea.sflag [#allocation3], 1
    %3725 = vsyncpa %s3724, 1
    %3726 = vsyncpa [#allocation6], 1
    %3727 = vsyncpa [#allocation9], 1
    %3728 = vsyncpa [#allocation12], 1
    %3729 = vsyncpa [#allocation4], 1
    %s3730 = scalar_lea.sflag [#allocation4], 1
    %3731 = vsyncpa %s3730, 1

</llo_original>
